<compile_context>
chip_gen: v6e
topology: v6e:2x2x1
jax: 0.10.0
libtpu: 0.0.40
codegen_flags: <defaults>
</compile_context>

<pallas_src>
import functools

import jax
import jax.numpy as jnp
from jax import lax
from jax.experimental import pallas as pl
from jax.experimental.pallas import tpu as pltpu


LEAKY_SLOPE = 0.01
BN_EPS = 1e-5


# ---------------------------------------------------------------------------
# Fused 3x3/s2 conv + BN-fold + LeakyReLU kernel (one image per grid step)
# ---------------------------------------------------------------------------
def _conv3x3s2_bn_lrelu_kernel(xv_ref, w_ref, scale_ref, bias_ref, o_ref, *, Wo, M):
    """9 accumulating bf16 MXU matmuls + f32 BN/LeakyReLU epilogue.

    xv_ref:    (1, 6, (Ho+1)*Wo, Cin)  bf16 tap-view planes (see _build_tap_views)
    w_ref:     (9, Cin, Cout)          bf16 conv weights, tap-major (dy*3+dx)
    scale_ref: (1, Cout)               f32 folded BN scale  gamma / sqrt(var+eps)
    bias_ref:  (1, Cout)               f32 folded BN bias   beta + (b - mean)*scale
    o_ref:     (1, Ho*Wo, Cout)        bf16 (inner layers) / f32 (last layer)
    """
    cout = o_ref.shape[-1]
    acc = jnp.zeros((M, cout), jnp.float32)
    for dy in range(3):
        row_phase = dy % 2
        row_off = (dy // 2) * Wo
        for dx in range(3):
            # Conv tap (dy, dx) is a contiguous row-slice of one tap-view plane.
            tap = xv_ref[0, row_phase * 3 + dx, row_off:row_off + M, :]  # (M, Cin)
            acc = acc + jnp.dot(tap, w_ref[dy * 3 + dx],
                                preferred_element_type=jnp.float32)
    y = acc * scale_ref[...] + bias_ref[...]       # folded eval-mode BatchNorm
    y = jnp.maximum(y, LEAKY_SLOPE * y)            # LeakyReLU(0.01), single VPU op
    o_ref[0] = y.astype(o_ref.dtype)


# ---------------------------------------------------------------------------
# Tap-view construction (pure layout glue, NHWC, ~1.5x activation bytes)
# ---------------------------------------------------------------------------
def _build_tap_views(x_nhwc, Ho, Wo):
    """Rearranges the NHWC input into 6 stride-2 'tap view' planes.

    Plane (rp, c0), rp in {0,1}, c0 in {0,1,2}:
        plane[b, i, w, c] = xpad[b, 2*i + rp, 2*w + c0, c]
    so that conv tap (dy, dx) equals the contiguous row slice
        plane[(dy % 2)*3 + dx][(dy // 2)*Wo : (dy // 2)*Wo + Ho*Wo]
    of the spatially flattened plane (no in-kernel reshapes needed).
    """
    B, H, W, C = x_nhwc.shape
    pad_b = 2 * Ho + 1 - H          # 1 for even H, 2 for odd H
    pad_r = 2 * Wo + 1 - W
    xp = jnp.pad(x_nhwc, ((0, 0), (1, pad_b), (1, pad_r), (0, 0)))
    # [B, 2*Ho+2, 2*Wo+2, C] -> [B, i, rp, j, cp, C]
    xp = xp.reshape(B, Ho + 1, 2, Wo + 1, 2, C)
    planes = []
    for rp in range(2):
        rows = xp[:, :, rp]                                 # [B, Ho+1, Wo+1, 2, C]
        for c0 in range(3):
            cp, ox = c0 % 2, c0 // 2
            planes.append(rows[:, :, ox:ox + Wo, cp, :])    # [B, Ho+1, Wo, C]
    xv = jnp.stack(planes, axis=1)                          # [B, 6, Ho+1, Wo, C]
    return xv.reshape(B, 6, (Ho + 1) * Wo, C)


def _conv_layer(xv, w_taps, scale, bias, *, Ho, Wo, out_dtype):
    """One fused conv+BN+LeakyReLU layer: grid over batch, whole image per step."""
    B, _, Mv, Cin = xv.shape
    Cout = w_taps.shape[-1]
    M = Ho * Wo
    kernel = functools.partial(_conv3x3s2_bn_lrelu_kernel, Wo=Wo, M=M)
    out = pl.pallas_call(
        kernel,
        out_shape=jax.ShapeDtypeStruct((B, M, Cout), out_dtype),
        grid=(B,),
        in_specs=[
            pl.BlockSpec((1, 6, Mv, Cin), lambda b: (b, 0, 0, 0)),  # per-image taps
            pl.BlockSpec((9, Cin, Cout), lambda b: (0, 0, 0)),      # weights (resident)
            pl.BlockSpec((1, Cout), lambda b: (0, 0)),              # folded BN scale
            pl.BlockSpec((1, Cout), lambda b: (0, 0)),              # folded BN bias
        ],
        out_specs=pl.BlockSpec((1, M, Cout), lambda b: (b, 0, 0)),
        compiler_params=pltpu.CompilerParams(
            dimension_semantics=("parallel",),   # >=2 tiles for B>=2 -> both TCs on v7x
        ),
    )(xv, w_taps, scale, bias)
    return out   # [B, Ho*Wo, Cout]


# ---------------------------------------------------------------------------
# convEncoder module
# ---------------------------------------------------------------------------
class ConvEncoder:
    """JAX/Pallas port of convEncoder (4 x Conv2d 3x3/s2/p1 -> BN -> LeakyReLU)."""

    def __init__(self, in_channel, key):
        self.in_channel = in_channel
        chans = [in_channel * (2 ** i) for i in range(5)]  # C, 2C, 4C, 8C, 16C
        self.layers = []
        for li in range(4):
            cin, cout = chans[li], chans[li + 1]
            key, kw, kb, kg, kbt, km, kv = jax.random.split(key, 7)
            w = jax.random.normal(kw, (cout, cin, 3, 3), jnp.float32) * 0.1
            b = jax.random.normal(kb, (cout,), jnp.float32) * 0.1
            gamma = 1.0 + 0.1 * jax.random.normal(kg, (cout,), jnp.float32)
            beta = 0.1 * jax.random.normal(kbt, (cout,), jnp.float32)
            mean = 0.1 * jax.random.normal(km, (cout,), jnp.float32)
            var = jax.random.uniform(kv, (cout,), jnp.float32, minval=0.5, maxval=1.5)
            # Precomputed ONCE (no per-forward transposes / pads / BN folds):
            #   [Cout, Cin, 3, 3] -> [kh, kw, Cin, Cout] -> [9, Cin, Cout], bf16
            w_taps = jnp.transpose(w, (2, 3, 1, 0)).reshape(9, cin, cout)
            w_taps = w_taps.astype(jnp.bfloat16)
            scale = gamma / jnp.sqrt(var + BN_EPS)           # eval-mode BN fold
            bias = beta + (b - mean) * scale
            self.layers.append(dict(
                w=w, b=b, gamma=gamma, beta=beta, mean=mean, var=var,
                w_taps=w_taps,
                scale=scale.reshape(1, cout),
                bias=bias.reshape(1, cout)))

    def forward(self, x_nchw):
        # NCHW -> NHWC once; bf16 activations between layers (MXU-friendly, 1/2 DMA).
        x = jnp.transpose(x_nchw, (0, 2, 3, 1)).astype(jnp.bfloat16)
        B = x.shape[0]
        n_layers = len(self.layers)
        for li, p in enumerate(self.layers):
            H, W = x.shape[1], x.shape[2]
            Ho, Wo = (H + 1) // 2, (W + 1) // 2
            xv = _build_tap_views(x, Ho, Wo)
            out_dtype = jnp.float32 if li == n_layers - 1 else jnp.bfloat16
            y = _conv_layer(xv, p["w_taps"], p["scale"], p["bias"],
                            Ho=Ho, Wo=Wo, out_dtype=out_dtype)
            x = y.reshape(B, Ho, Wo, y.shape[-1])    # free reshape (minor dim kept)
        return jnp.transpose(x, (0, 3, 1, 2))        # back to NCHW (f32)

    __call__ = forward


# ---------------------------------------------------------------------------
# Pure-JAX reference with matching numerics (bf16 conv inputs, f32 accumulate,
# f32 BN/LeakyReLU, bf16 inter-layer activations) for correctness checking.
# ---------------------------------------------------------------------------
def _reference_forward(x_nchw, layers):
    y = x_nchw.astype(jnp.bfloat16)
    n = len(layers)
    for li, p in enumerate(layers):
        w = p["w"].astype(jnp.bfloat16).astype(jnp.float32)
        out = lax.conv_general_dilated(
            y.astype(jnp.float32), w, window_strides=(2, 2),
            padding=((1, 1), (1, 1)),
            dimension_numbers=("NCHW", "OIHW", "NCHW"),
            precision=lax.Precision.HIGHEST)
        out = out * p["scale"][0][None, :, None, None] + p["bias"][0][None, :, None, None]
        out = jnp.maximum(out, LEAKY_SLOPE * out)
        y = out if li == n - 1 else out.astype(jnp.bfloat16)
    return y


if __name__ == "__main__":
    key = jax.random.PRNGKey(0)
    kx, kp = jax.random.split(key)
    B, C, H, W = 2, 4, 16, 16
    x = jax.random.normal(kx, (B, C, H, W), dtype=jnp.float32)

    model = ConvEncoder(in_channel=C, key=kp)
    fwd = jax.jit(model.forward)
    y = jax.block_until_ready(fwd(x))

    # convEncoder halves spatial dims 4x and multiplies channels by 16
    assert y.shape == (B, C * 16, H // 16, W // 16), y.shape
    assert y.dtype == jnp.float32

    y_ref = jax.block_until_ready(_reference_forward(x, model.layers))
    max_err = float(jnp.max(jnp.abs(y - y_ref)))
    # bf16 MXU inputs: compare against a numerics-matched reference; remaining
    # difference is only f32 accumulation order (~1e-5).
    assert bool(jnp.allclose(y, y_ref, atol=2e-2, rtol=2e-2)), f"max abs err {max_err}"

    print("KERNEL_OK")
</pallas_src>

<mosaic_0001>
module attributes {stable_mosaic.version = 11 : i64} {
  func.func @_conv3x3s2_bn_lrelu_kernel(%arg0: i32, %arg1: memref<1x6x72x4xbf16, #tpu.memory_space<vmem>>, %arg2: memref<9x4x8xbf16, #tpu.memory_space<vmem>>, %arg3: memref<1x8xf32, #tpu.memory_space<vmem>>, %arg4: memref<1x8xf32, #tpu.memory_space<vmem>>, %arg5: memref<1x64x8xbf16, #tpu.memory_space<vmem>>) attributes {dimension_semantics = [#tpu.dimension_semantics<parallel>], iteration_bounds = array<i64: 2>, scalar_prefetch = 0 : i64, scratch_operands = 0 : i64, tpu.core_type = #tpu.core_type<tc>, window_params = [{transform_indices = @transform_0, window_bounds = array<i64: 1, 6, 72, 4>}, {pipeline_mode = #tpu.pipeline_mode<synchronous>, transform_indices = @transform_1, window_bounds = array<i64: 9, 4, 8>}, {pipeline_mode = #tpu.pipeline_mode<synchronous>, transform_indices = @transform_2, window_bounds = array<i64: 1, 8>}, {pipeline_mode = #tpu.pipeline_mode<synchronous>, transform_indices = @transform_3, window_bounds = array<i64: 1, 8>}, {transform_indices = @transform_4, window_bounds = array<i64: 1, 64, 8>}]} {
    %cst = arith.constant 0.000000e+00 : f32
    %0 = vector.broadcast %cst : f32 to vector<64x8xf32>
    %c0 = arith.constant 0 : index
    %c0_0 = arith.constant 0 : index
    %c0_1 = arith.constant 0 : index
    %c0_2 = arith.constant 0 : index
    %1 = vector.load %arg1[%c0, %c0_0, %c0_1, %c0_2] : memref<1x6x72x4xbf16, #tpu.memory_space<vmem>>, vector<1x1x64x4xbf16>
    %2 = vector.shape_cast %1 : vector<1x1x64x4xbf16> to vector<64x4xbf16>
    %c0_3 = arith.constant 0 : index
    %c0_4 = arith.constant 0 : index
    %c0_5 = arith.constant 0 : index
    %3 = vector.load %arg2[%c0_3, %c0_4, %c0_5] : memref<9x4x8xbf16, #tpu.memory_space<vmem>>, vector<1x4x8xbf16>
    %4 = vector.shape_cast %3 : vector<1x4x8xbf16> to vector<4x8xbf16>
    %cst_6 = arith.constant dense<0.000000e+00> : vector<64x8xf32>
    %5 = tpu.matmul %2, %4, %cst_6 {dimension_numbers = #tpu.dot_dimension_numbers<[1], [0], [0], [1], [0, 0, 1, 1], [], []>} : vector<64x4xbf16>, vector<4x8xbf16>, vector<64x8xf32> -> vector<64x8xf32>
    %6 = arith.addf %0, %5 : vector<64x8xf32>
    %c0_7 = arith.constant 0 : index
    %c1 = arith.constant 1 : index
    %c0_8 = arith.constant 0 : index
    %c0_9 = arith.constant 0 : index
    %7 = vector.load %arg1[%c0_7, %c1, %c0_8, %c0_9] : memref<1x6x72x4xbf16, #tpu.memory_space<vmem>>, vector<1x1x64x4xbf16>
    %8 = vector.shape_cast %7 : vector<1x1x64x4xbf16> to vector<64x4xbf16>
    %c1_10 = arith.constant 1 : index
    %c0_11 = arith.constant 0 : index
    %c0_12 = arith.constant 0 : index
    %9 = vector.load %arg2[%c1_10, %c0_11, %c0_12] : memref<9x4x8xbf16, #tpu.memory_space<vmem>>, vector<1x4x8xbf16>
    %10 = vector.shape_cast %9 : vector<1x4x8xbf16> to vector<4x8xbf16>
    %cst_13 = arith.constant dense<0.000000e+00> : vector<64x8xf32>
    %11 = tpu.matmul %8, %10, %cst_13 {dimension_numbers = #tpu.dot_dimension_numbers<[1], [0], [0], [1], [0, 0, 1, 1], [], []>} : vector<64x4xbf16>, vector<4x8xbf16>, vector<64x8xf32> -> vector<64x8xf32>
    %12 = arith.addf %6, %11 : vector<64x8xf32>
    %c0_14 = arith.constant 0 : index
    %c2 = arith.constant 2 : index
    %c0_15 = arith.constant 0 : index
    %c0_16 = arith.constant 0 : index
    %13 = vector.load %arg1[%c0_14, %c2, %c0_15, %c0_16] : memref<1x6x72x4xbf16, #tpu.memory_space<vmem>>, vector<1x1x64x4xbf16>
    %14 = vector.shape_cast %13 : vector<1x1x64x4xbf16> to vector<64x4xbf16>
    %c2_17 = arith.constant 2 : index
    %c0_18 = arith.constant 0 : index
    %c0_19 = arith.constant 0 : index
    %15 = vector.load %arg2[%c2_17, %c0_18, %c0_19] : memref<9x4x8xbf16, #tpu.memory_space<vmem>>, vector<1x4x8xbf16>
    %16 = vector.shape_cast %15 : vector<1x4x8xbf16> to vector<4x8xbf16>
    %cst_20 = arith.constant dense<0.000000e+00> : vector<64x8xf32>
    %17 = tpu.matmul %14, %16, %cst_20 {dimension_numbers = #tpu.dot_dimension_numbers<[1], [0], [0], [1], [0, 0, 1, 1], [], []>} : vector<64x4xbf16>, vector<4x8xbf16>, vector<64x8xf32> -> vector<64x8xf32>
    %18 = arith.addf %12, %17 : vector<64x8xf32>
    %c0_21 = arith.constant 0 : index
    %c3 = arith.constant 3 : index
    %c0_22 = arith.constant 0 : index
    %c0_23 = arith.constant 0 : index
    %19 = vector.load %arg1[%c0_21, %c3, %c0_22, %c0_23] : memref<1x6x72x4xbf16, #tpu.memory_space<vmem>>, vector<1x1x64x4xbf16>
    %20 = vector.shape_cast %19 : vector<1x1x64x4xbf16> to vector<64x4xbf16>
    %c3_24 = arith.constant 3 : index
    %c0_25 = arith.constant 0 : index
    %c0_26 = arith.constant 0 : index
    %21 = vector.load %arg2[%c3_24, %c0_25, %c0_26] : memref<9x4x8xbf16, #tpu.memory_space<vmem>>, vector<1x4x8xbf16>
    %22 = vector.shape_cast %21 : vector<1x4x8xbf16> to vector<4x8xbf16>
    %cst_27 = arith.constant dense<0.000000e+00> : vector<64x8xf32>
    %23 = tpu.matmul %20, %22, %cst_27 {dimension_numbers = #tpu.dot_dimension_numbers<[1], [0], [0], [1], [0, 0, 1, 1], [], []>} : vector<64x4xbf16>, vector<4x8xbf16>, vector<64x8xf32> -> vector<64x8xf32>
    %24 = arith.addf %18, %23 : vector<64x8xf32>
    %c0_28 = arith.constant 0 : index
    %c4 = arith.constant 4 : index
    %c0_29 = arith.constant 0 : index
    %c0_30 = arith.constant 0 : index
    %25 = vector.load %arg1[%c0_28, %c4, %c0_29, %c0_30] : memref<1x6x72x4xbf16, #tpu.memory_space<vmem>>, vector<1x1x64x4xbf16>
    %26 = vector.shape_cast %25 : vector<1x1x64x4xbf16> to vector<64x4xbf16>
    %c4_31 = arith.constant 4 : index
    %c0_32 = arith.constant 0 : index
    %c0_33 = arith.constant 0 : index
    %27 = vector.load %arg2[%c4_31, %c0_32, %c0_33] : memref<9x4x8xbf16, #tpu.memory_space<vmem>>, vector<1x4x8xbf16>
    %28 = vector.shape_cast %27 : vector<1x4x8xbf16> to vector<4x8xbf16>
    %cst_34 = arith.constant dense<0.000000e+00> : vector<64x8xf32>
    %29 = tpu.matmul %26, %28, %cst_34 {dimension_numbers = #tpu.dot_dimension_numbers<[1], [0], [0], [1], [0, 0, 1, 1], [], []>} : vector<64x4xbf16>, vector<4x8xbf16>, vector<64x8xf32> -> vector<64x8xf32>
    %30 = arith.addf %24, %29 : vector<64x8xf32>
    %c0_35 = arith.constant 0 : index
    %c5 = arith.constant 5 : index
    %c0_36 = arith.constant 0 : index
    %c0_37 = arith.constant 0 : index
    %31 = vector.load %arg1[%c0_35, %c5, %c0_36, %c0_37] : memref<1x6x72x4xbf16, #tpu.memory_space<vmem>>, vector<1x1x64x4xbf16>
    %32 = vector.shape_cast %31 : vector<1x1x64x4xbf16> to vector<64x4xbf16>
    %c5_38 = arith.constant 5 : index
    %c0_39 = arith.constant 0 : index
    %c0_40 = arith.constant 0 : index
    %33 = vector.load %arg2[%c5_38, %c0_39, %c0_40] : memref<9x4x8xbf16, #tpu.memory_space<vmem>>, vector<1x4x8xbf16>
    %34 = vector.shape_cast %33 : vector<1x4x8xbf16> to vector<4x8xbf16>
    %cst_41 = arith.constant dense<0.000000e+00> : vector<64x8xf32>
    %35 = tpu.matmul %32, %34, %cst_41 {dimension_numbers = #tpu.dot_dimension_numbers<[1], [0], [0], [1], [0, 0, 1, 1], [], []>} : vector<64x4xbf16>, vector<4x8xbf16>, vector<64x8xf32> -> vector<64x8xf32>
    %36 = arith.addf %30, %35 : vector<64x8xf32>
    %c0_42 = arith.constant 0 : index
    %c0_43 = arith.constant 0 : index
    %c8 = arith.constant 8 : index
    %c0_44 = arith.constant 0 : index
    %37 = vector.load %arg1[%c0_42, %c0_43, %c8, %c0_44] : memref<1x6x72x4xbf16, #tpu.memory_space<vmem>>, vector<1x1x64x4xbf16>
    %38 = vector.shape_cast %37 : vector<1x1x64x4xbf16> to vector<64x4xbf16>
    %c6 = arith.constant 6 : index
    %c0_45 = arith.constant 0 : index
    %c0_46 = arith.constant 0 : index
    %39 = vector.load %arg2[%c6, %c0_45, %c0_46] : memref<9x4x8xbf16, #tpu.memory_space<vmem>>, vector<1x4x8xbf16>
    %40 = vector.shape_cast %39 : vector<1x4x8xbf16> to vector<4x8xbf16>
    %cst_47 = arith.constant dense<0.000000e+00> : vector<64x8xf32>
    %41 = tpu.matmul %38, %40, %cst_47 {dimension_numbers = #tpu.dot_dimension_numbers<[1], [0], [0], [1], [0, 0, 1, 1], [], []>} : vector<64x4xbf16>, vector<4x8xbf16>, vector<64x8xf32> -> vector<64x8xf32>
    %42 = arith.addf %36, %41 : vector<64x8xf32>
    %c0_48 = arith.constant 0 : index
    %c1_49 = arith.constant 1 : index
    %c8_50 = arith.constant 8 : index
    %c0_51 = arith.constant 0 : index
    %43 = vector.load %arg1[%c0_48, %c1_49, %c8_50, %c0_51] : memref<1x6x72x4xbf16, #tpu.memory_space<vmem>>, vector<1x1x64x4xbf16>
    %44 = vector.shape_cast %43 : vector<1x1x64x4xbf16> to vector<64x4xbf16>
    %c7 = arith.constant 7 : index
    %c0_52 = arith.constant 0 : index
    %c0_53 = arith.constant 0 : index
    %45 = vector.load %arg2[%c7, %c0_52, %c0_53] : memref<9x4x8xbf16, #tpu.memory_space<vmem>>, vector<1x4x8xbf16>
    %46 = vector.shape_cast %45 : vector<1x4x8xbf16> to vector<4x8xbf16>
    %cst_54 = arith.constant dense<0.000000e+00> : vector<64x8xf32>
    %47 = tpu.matmul %44, %46, %cst_54 {dimension_numbers = #tpu.dot_dimension_numbers<[1], [0], [0], [1], [0, 0, 1, 1], [], []>} : vector<64x4xbf16>, vector<4x8xbf16>, vector<64x8xf32> -> vector<64x8xf32>
    %48 = arith.addf %42, %47 : vector<64x8xf32>
    %c0_55 = arith.constant 0 : index
    %c2_56 = arith.constant 2 : index
    %c8_57 = arith.constant 8 : index
    %c0_58 = arith.constant 0 : index
    %49 = vector.load %arg1[%c0_55, %c2_56, %c8_57, %c0_58] : memref<1x6x72x4xbf16, #tpu.memory_space<vmem>>, vector<1x1x64x4xbf16>
    %50 = vector.shape_cast %49 : vector<1x1x64x4xbf16> to vector<64x4xbf16>
    %c8_59 = arith.constant 8 : index
    %c0_60 = arith.constant 0 : index
    %c0_61 = arith.constant 0 : index
    %51 = vector.load %arg2[%c8_59, %c0_60, %c0_61] : memref<9x4x8xbf16, #tpu.memory_space<vmem>>, vector<1x4x8xbf16>
    %52 = vector.shape_cast %51 : vector<1x4x8xbf16> to vector<4x8xbf16>
    %cst_62 = arith.constant dense<0.000000e+00> : vector<64x8xf32>
    %53 = tpu.matmul %50, %52, %cst_62 {dimension_numbers = #tpu.dot_dimension_numbers<[1], [0], [0], [1], [0, 0, 1, 1], [], []>} : vector<64x4xbf16>, vector<4x8xbf16>, vector<64x8xf32> -> vector<64x8xf32>
    %54 = arith.addf %48, %53 : vector<64x8xf32>
    %c0_63 = arith.constant 0 : index
    %c0_64 = arith.constant 0 : index
    %55 = vector.load %arg3[%c0_63, %c0_64] : memref<1x8xf32, #tpu.memory_space<vmem>>, vector<1x8xf32>
    %56 = vector.broadcast %55 : vector<1x8xf32> to vector<64x8xf32>
    %57 = arith.mulf %54, %56 : vector<64x8xf32>
    %c0_65 = arith.constant 0 : index
    %c0_66 = arith.constant 0 : index
    %58 = vector.load %arg4[%c0_65, %c0_66] : memref<1x8xf32, #tpu.memory_space<vmem>>, vector<1x8xf32>
    %59 = vector.broadcast %58 : vector<1x8xf32> to vector<64x8xf32>
    %60 = arith.addf %57, %59 : vector<64x8xf32>
    %cst_67 = arith.constant 0.00999999977 : f32
    %61 = vector.broadcast %cst_67 : f32 to vector<64x8xf32>
    %62 = arith.mulf %61, %60 : vector<64x8xf32>
    %63 = arith.maximumf %60, %62 : vector<64x8xf32>
    %64 = arith.truncf %63 : vector<64x8xf32> to vector<64x8xbf16>
    %c0_68 = arith.constant 0 : index
    %c0_69 = arith.constant 0 : index
    %c0_70 = arith.constant 0 : index
    %65 = vector.load %arg5[%c0_68, %c0_69, %c0_70] : memref<1x64x8xbf16, #tpu.memory_space<vmem>>, vector<1x64x8xbf16>
    %66 = vector.shape_cast %65 : vector<1x64x8xbf16> to vector<64x8xbf16>
    %67 = vector.shape_cast %64 : vector<64x8xbf16> to vector<1x64x8xbf16>
    tpu.vector_store %arg5[%c0_68, %c0_69, %c0_70], %67 {strides = array<i32>} : memref<1x64x8xbf16, #tpu.memory_space<vmem>>, vector<1x64x8xbf16>,
    return
  }
  func.func @transform_0(%arg0: i32) -> (i32, i32, i32, i32) {
    %c0_i32 = arith.constant 0 : i32
    %c0_i32_0 = arith.constant 0 : i32
    %c0_i32_1 = arith.constant 0 : i32
    %c0_i32_2 = arith.constant 0 : i32
    return %arg0, %c0_i32, %c0_i32_0, %c0_i32_1 : i32, i32, i32, i32
  }
  func.func @transform_1(%arg0: i32) -> (i32, i32, i32) {
    %c0_i32 = arith.constant 0 : i32
    %c0_i32_0 = arith.constant 0 : i32
    %c0_i32_1 = arith.constant 0 : i32
    %c0_i32_2 = arith.constant 0 : i32
    return %c0_i32, %c0_i32_0, %c0_i32_1 : i32, i32, i32
  }
  func.func @transform_2(%arg0: i32) -> (i32, i32) {
    %c0_i32 = arith.constant 0 : i32
    %c0_i32_0 = arith.constant 0 : i32
    %c0_i32_1 = arith.constant 0 : i32
    return %c0_i32, %c0_i32_0 : i32, i32
  }
  func.func @transform_3(%arg0: i32) -> (i32, i32) {
    %c0_i32 = arith.constant 0 : i32
    %c0_i32_0 = arith.constant 0 : i32
    %c0_i32_1 = arith.constant 0 : i32
    return %c0_i32, %c0_i32_0 : i32, i32
  }
  func.func @transform_4(%arg0: i32) -> (i32, i32, i32) {
    %c0_i32 = arith.constant 0 : i32
    %c0_i32_0 = arith.constant 0 : i32
    %c0_i32_1 = arith.constant 0 : i32
    return %arg0, %c0_i32, %c0_i32_0 : i32, i32, i32
  }
}

module attributes {stable_mosaic.version = 11 : i64} {
  func.func @_conv3x3s2_bn_lrelu_kernel(%arg0: i32, %arg1: memref<1x6x20x8xbf16, #tpu.memory_space<vmem>>, %arg2: memref<9x8x16xbf16, #tpu.memory_space<vmem>>, %arg3: memref<1x16xf32, #tpu.memory_space<vmem>>, %arg4: memref<1x16xf32, #tpu.memory_space<vmem>>, %arg5: memref<1x16x16xbf16, #tpu.memory_space<vmem>>) attributes {dimension_semantics = [#tpu.dimension_semantics<parallel>], iteration_bounds = array<i64: 2>, scalar_prefetch = 0 : i64, scratch_operands = 0 : i64, tpu.core_type = #tpu.core_type<tc>, window_params = [{transform_indices = @transform_0, window_bounds = array<i64: 1, 6, 20, 8>}, {pipeline_mode = #tpu.pipeline_mode<synchronous>, transform_indices = @transform_1, window_bounds = array<i64: 9, 8, 16>}, {pipeline_mode = #tpu.pipeline_mode<synchronous>, transform_indices = @transform_2, window_bounds = array<i64: 1, 16>}, {pipeline_mode = #tpu.pipeline_mode<synchronous>, transform_indices = @transform_3, window_bounds = array<i64: 1, 16>}, {transform_indices = @transform_4, window_bounds = array<i64: 1, 16, 16>}]} {
    %cst = arith.constant 0.000000e+00 : f32
    %0 = vector.broadcast %cst : f32 to vector<16x16xf32>
    %c0 = arith.constant 0 : index
    %c0_0 = arith.constant 0 : index
    %c0_1 = arith.constant 0 : index
    %c0_2 = arith.constant 0 : index
    %1 = vector.load %arg1[%c0, %c0_0, %c0_1, %c0_2] : memref<1x6x20x8xbf16, #tpu.memory_space<vmem>>, vector<1x1x16x8xbf16>
    %2 = vector.shape_cast %1 : vector<1x1x16x8xbf16> to vector<16x8xbf16>
    %c0_3 = arith.constant 0 : index
    %c0_4 = arith.constant 0 : index
    %c0_5 = arith.constant 0 : index
    %3 = vector.load %arg2[%c0_3, %c0_4, %c0_5] : memref<9x8x16xbf16, #tpu.memory_space<vmem>>, vector<1x8x16xbf16>
    %4 = vector.shape_cast %3 : vector<1x8x16xbf16> to vector<8x16xbf16>
    %cst_6 = arith.constant dense<0.000000e+00> : vector<16x16xf32>
    %5 = tpu.matmul %2, %4, %cst_6 {dimension_numbers = #tpu.dot_dimension_numbers<[1], [0], [0], [1], [0, 0, 1, 1], [], []>} : vector<16x8xbf16>, vector<8x16xbf16>, vector<16x16xf32> -> vector<16x16xf32>
    %6 = arith.addf %0, %5 : vector<16x16xf32>
    %c0_7 = arith.constant 0 : index
    %c1 = arith.constant 1 : index
    %c0_8 = arith.constant 0 : index
    %c0_9 = arith.constant 0 : index
    %7 = vector.load %arg1[%c0_7, %c1, %c0_8, %c0_9] : memref<1x6x20x8xbf16, #tpu.memory_space<vmem>>, vector<1x1x16x8xbf16>
    %8 = vector.shape_cast %7 : vector<1x1x16x8xbf16> to vector<16x8xbf16>
    %c1_10 = arith.constant 1 : index
    %c0_11 = arith.constant 0 : index
    %c0_12 = arith.constant 0 : index
    %9 = vector.load %arg2[%c1_10, %c0_11, %c0_12] : memref<9x8x16xbf16, #tpu.memory_space<vmem>>, vector<1x8x16xbf16>
    %10 = vector.shape_cast %9 : vector<1x8x16xbf16> to vector<8x16xbf16>
    %cst_13 = arith.constant dense<0.000000e+00> : vector<16x16xf32>
    %11 = tpu.matmul %8, %10, %cst_13 {dimension_numbers = #tpu.dot_dimension_numbers<[1], [0], [0], [1], [0, 0, 1, 1], [], []>} : vector<16x8xbf16>, vector<8x16xbf16>, vector<16x16xf32> -> vector<16x16xf32>
    %12 = arith.addf %6, %11 : vector<16x16xf32>
    %c0_14 = arith.constant 0 : index
    %c2 = arith.constant 2 : index
    %c0_15 = arith.constant 0 : index
    %c0_16 = arith.constant 0 : index
    %13 = vector.load %arg1[%c0_14, %c2, %c0_15, %c0_16] : memref<1x6x20x8xbf16, #tpu.memory_space<vmem>>, vector<1x1x16x8xbf16>
    %14 = vector.shape_cast %13 : vector<1x1x16x8xbf16> to vector<16x8xbf16>
    %c2_17 = arith.constant 2 : index
    %c0_18 = arith.constant 0 : index
    %c0_19 = arith.constant 0 : index
    %15 = vector.load %arg2[%c2_17, %c0_18, %c0_19] : memref<9x8x16xbf16, #tpu.memory_space<vmem>>, vector<1x8x16xbf16>
    %16 = vector.shape_cast %15 : vector<1x8x16xbf16> to vector<8x16xbf16>
    %cst_20 = arith.constant dense<0.000000e+00> : vector<16x16xf32>
    %17 = tpu.matmul %14, %16, %cst_20 {dimension_numbers = #tpu.dot_dimension_numbers<[1], [0], [0], [1], [0, 0, 1, 1], [], []>} : vector<16x8xbf16>, vector<8x16xbf16>, vector<16x16xf32> -> vector<16x16xf32>
    %18 = arith.addf %12, %17 : vector<16x16xf32>
    %c0_21 = arith.constant 0 : index
    %c3 = arith.constant 3 : index
    %c0_22 = arith.constant 0 : index
    %c0_23 = arith.constant 0 : index
    %19 = vector.load %arg1[%c0_21, %c3, %c0_22, %c0_23] : memref<1x6x20x8xbf16, #tpu.memory_space<vmem>>, vector<1x1x16x8xbf16>
    %20 = vector.shape_cast %19 : vector<1x1x16x8xbf16> to vector<16x8xbf16>
    %c3_24 = arith.constant 3 : index
    %c0_25 = arith.constant 0 : index
    %c0_26 = arith.constant 0 : index
    %21 = vector.load %arg2[%c3_24, %c0_25, %c0_26] : memref<9x8x16xbf16, #tpu.memory_space<vmem>>, vector<1x8x16xbf16>
    %22 = vector.shape_cast %21 : vector<1x8x16xbf16> to vector<8x16xbf16>
    %cst_27 = arith.constant dense<0.000000e+00> : vector<16x16xf32>
    %23 = tpu.matmul %20, %22, %cst_27 {dimension_numbers = #tpu.dot_dimension_numbers<[1], [0], [0], [1], [0, 0, 1, 1], [], []>} : vector<16x8xbf16>, vector<8x16xbf16>, vector<16x16xf32> -> vector<16x16xf32>
    %24 = arith.addf %18, %23 : vector<16x16xf32>
    %c0_28 = arith.constant 0 : index
    %c4 = arith.constant 4 : index
    %c0_29 = arith.constant 0 : index
    %c0_30 = arith.constant 0 : index
    %25 = vector.load %arg1[%c0_28, %c4, %c0_29, %c0_30] : memref<1x6x20x8xbf16, #tpu.memory_space<vmem>>, vector<1x1x16x8xbf16>
    %26 = vector.shape_cast %25 : vector<1x1x16x8xbf16> to vector<16x8xbf16>
    %c4_31 = arith.constant 4 : index
    %c0_32 = arith.constant 0 : index
    %c0_33 = arith.constant 0 : index
    %27 = vector.load %arg2[%c4_31, %c0_32, %c0_33] : memref<9x8x16xbf16, #tpu.memory_space<vmem>>, vector<1x8x16xbf16>
    %28 = vector.shape_cast %27 : vector<1x8x16xbf16> to vector<8x16xbf16>
    %cst_34 = arith.constant dense<0.000000e+00> : vector<16x16xf32>
    %29 = tpu.matmul %26, %28, %cst_34 {dimension_numbers = #tpu.dot_dimension_numbers<[1], [0], [0], [1], [0, 0, 1, 1], [], []>} : vector<16x8xbf16>, vector<8x16xbf16>, vector<16x16xf32> -> vector<16x16xf32>
    %30 = arith.addf %24, %29 : vector<16x16xf32>
    %c0_35 = arith.constant 0 : index
    %c5 = arith.constant 5 : index
    %c0_36 = arith.constant 0 : index
    %c0_37 = arith.constant 0 : index
    %31 = vector.load %arg1[%c0_35, %c5, %c0_36, %c0_37] : memref<1x6x20x8xbf16, #tpu.memory_space<vmem>>, vector<1x1x16x8xbf16>
    %32 = vector.shape_cast %31 : vector<1x1x16x8xbf16> to vector<16x8xbf16>
    %c5_38 = arith.constant 5 : index
    %c0_39 = arith.constant 0 : index
    %c0_40 = arith.constant 0 : index
    %33 = vector.load %arg2[%c5_38, %c0_39, %c0_40] : memref<9x8x16xbf16, #tpu.memory_space<vmem>>, vector<1x8x16xbf16>
    %34 = vector.shape_cast %33 : vector<1x8x16xbf16> to vector<8x16xbf16>
    %cst_41 = arith.constant dense<0.000000e+00> : vector<16x16xf32>
    %35 = tpu.matmul %32, %34, %cst_41 {dimension_numbers = #tpu.dot_dimension_numbers<[1], [0], [0], [1], [0, 0, 1, 1], [], []>} : vector<16x8xbf16>, vector<8x16xbf16>, vector<16x16xf32> -> vector<16x16xf32>
    %36 = arith.addf %30, %35 : vector<16x16xf32>
    %c0_42 = arith.constant 0 : index
    %c0_43 = arith.constant 0 : index
    %c4_44 = arith.constant 4 : index
    %c0_45 = arith.constant 0 : index
    %37 = vector.load %arg1[%c0_42, %c0_43, %c4_44, %c0_45] : memref<1x6x20x8xbf16, #tpu.memory_space<vmem>>, vector<1x1x16x8xbf16>
    %38 = vector.shape_cast %37 : vector<1x1x16x8xbf16> to vector<16x8xbf16>
    %c6 = arith.constant 6 : index
    %c0_46 = arith.constant 0 : index
    %c0_47 = arith.constant 0 : index
    %39 = vector.load %arg2[%c6, %c0_46, %c0_47] : memref<9x8x16xbf16, #tpu.memory_space<vmem>>, vector<1x8x16xbf16>
    %40 = vector.shape_cast %39 : vector<1x8x16xbf16> to vector<8x16xbf16>
    %cst_48 = arith.constant dense<0.000000e+00> : vector<16x16xf32>
    %41 = tpu.matmul %38, %40, %cst_48 {dimension_numbers = #tpu.dot_dimension_numbers<[1], [0], [0], [1], [0, 0, 1, 1], [], []>} : vector<16x8xbf16>, vector<8x16xbf16>, vector<16x16xf32> -> vector<16x16xf32>
    %42 = arith.addf %36, %41 : vector<16x16xf32>
    %c0_49 = arith.constant 0 : index
    %c1_50 = arith.constant 1 : index
    %c4_51 = arith.constant 4 : index
    %c0_52 = arith.constant 0 : index
    %43 = vector.load %arg1[%c0_49, %c1_50, %c4_51, %c0_52] : memref<1x6x20x8xbf16, #tpu.memory_space<vmem>>, vector<1x1x16x8xbf16>
    %44 = vector.shape_cast %43 : vector<1x1x16x8xbf16> to vector<16x8xbf16>
    %c7 = arith.constant 7 : index
    %c0_53 = arith.constant 0 : index
    %c0_54 = arith.constant 0 : index
    %45 = vector.load %arg2[%c7, %c0_53, %c0_54] : memref<9x8x16xbf16, #tpu.memory_space<vmem>>, vector<1x8x16xbf16>
    %46 = vector.shape_cast %45 : vector<1x8x16xbf16> to vector<8x16xbf16>
    %cst_55 = arith.constant dense<0.000000e+00> : vector<16x16xf32>
    %47 = tpu.matmul %44, %46, %cst_55 {dimension_numbers = #tpu.dot_dimension_numbers<[1], [0], [0], [1], [0, 0, 1, 1], [], []>} : vector<16x8xbf16>, vector<8x16xbf16>, vector<16x16xf32> -> vector<16x16xf32>
    %48 = arith.addf %42, %47 : vector<16x16xf32>
    %c0_56 = arith.constant 0 : index
    %c2_57 = arith.constant 2 : index
    %c4_58 = arith.constant 4 : index
    %c0_59 = arith.constant 0 : index
    %49 = vector.load %arg1[%c0_56, %c2_57, %c4_58, %c0_59] : memref<1x6x20x8xbf16, #tpu.memory_space<vmem>>, vector<1x1x16x8xbf16>
    %50 = vector.shape_cast %49 : vector<1x1x16x8xbf16> to vector<16x8xbf16>
    %c8 = arith.constant 8 : index
    %c0_60 = arith.constant 0 : index
    %c0_61 = arith.constant 0 : index
    %51 = vector.load %arg2[%c8, %c0_60, %c0_61] : memref<9x8x16xbf16, #tpu.memory_space<vmem>>, vector<1x8x16xbf16>
    %52 = vector.shape_cast %51 : vector<1x8x16xbf16> to vector<8x16xbf16>
    %cst_62 = arith.constant dense<0.000000e+00> : vector<16x16xf32>
    %53 = tpu.matmul %50, %52, %cst_62 {dimension_numbers = #tpu.dot_dimension_numbers<[1], [0], [0], [1], [0, 0, 1, 1], [], []>} : vector<16x8xbf16>, vector<8x16xbf16>, vector<16x16xf32> -> vector<16x16xf32>
    %54 = arith.addf %48, %53 : vector<16x16xf32>
    %c0_63 = arith.constant 0 : index
    %c0_64 = arith.constant 0 : index
    %55 = vector.load %arg3[%c0_63, %c0_64] : memref<1x16xf32, #tpu.memory_space<vmem>>, vector<1x16xf32>
    %56 = vector.broadcast %55 : vector<1x16xf32> to vector<16x16xf32>
    %57 = arith.mulf %54, %56 : vector<16x16xf32>
    %c0_65 = arith.constant 0 : index
    %c0_66 = arith.constant 0 : index
    %58 = vector.load %arg4[%c0_65, %c0_66] : memref<1x16xf32, #tpu.memory_space<vmem>>, vector<1x16xf32>
    %59 = vector.broadcast %58 : vector<1x16xf32> to vector<16x16xf32>
    %60 = arith.addf %57, %59 : vector<16x16xf32>
    %cst_67 = arith.constant 0.00999999977 : f32
    %61 = vector.broadcast %cst_67 : f32 to vector<16x16xf32>
    %62 = arith.mulf %61, %60 : vector<16x16xf32>
    %63 = arith.maximumf %60, %62 : vector<16x16xf32>
    %64 = arith.truncf %63 : vector<16x16xf32> to vector<16x16xbf16>
    %c0_68 = arith.constant 0 : index
    %c0_69 = arith.constant 0 : index
    %c0_70 = arith.constant 0 : index
    %65 = vector.load %arg5[%c0_68, %c0_69, %c0_70] : memref<1x16x16xbf16, #tpu.memory_space<vmem>>, vector<1x16x16xbf16>
    %66 = vector.shape_cast %65 : vector<1x16x16xbf16> to vector<16x16xbf16>
    %67 = vector.shape_cast %64 : vector<16x16xbf16> to vector<1x16x16xbf16>
    tpu.vector_store %arg5[%c0_68, %c0_69, %c0_70], %67 {strides = array<i32>} : memref<1x16x16xbf16, #tpu.memory_space<vmem>>, vector<1x16x16xbf16>,
    return
  }
  func.func @transform_0(%arg0: i32) -> (i32, i32, i32, i32) {
    %c0_i32 = arith.constant 0 : i32
    %c0_i32_0 = arith.constant 0 : i32
    %c0_i32_1 = arith.constant 0 : i32
    %c0_i32_2 = arith.constant 0 : i32
    return %arg0, %c0_i32, %c0_i32_0, %c0_i32_1 : i32, i32, i32, i32
  }
  func.func @transform_1(%arg0: i32) -> (i32, i32, i32) {
    %c0_i32 = arith.constant 0 : i32
    %c0_i32_0 = arith.constant 0 : i32
    %c0_i32_1 = arith.constant 0 : i32
    %c0_i32_2 = arith.constant 0 : i32
    return %c0_i32, %c0_i32_0, %c0_i32_1 : i32, i32, i32
  }
  func.func @transform_2(%arg0: i32) -> (i32, i32) {
    %c0_i32 = arith.constant 0 : i32
    %c0_i32_0 = arith.constant 0 : i32
    %c0_i32_1 = arith.constant 0 : i32
    return %c0_i32, %c0_i32_0 : i32, i32
  }
  func.func @transform_3(%arg0: i32) -> (i32, i32) {
    %c0_i32 = arith.constant 0 : i32
    %c0_i32_0 = arith.constant 0 : i32
    %c0_i32_1 = arith.constant 0 : i32
    return %c0_i32, %c0_i32_0 : i32, i32
  }
  func.func @transform_4(%arg0: i32) -> (i32, i32, i32) {
    %c0_i32 = arith.constant 0 : i32
    %c0_i32_0 = arith.constant 0 : i32
    %c0_i32_1 = arith.constant 0 : i32
    return %arg0, %c0_i32, %c0_i32_0 : i32, i32, i32
  }
}

module attributes {stable_mosaic.version = 11 : i64} {
  func.func @_conv3x3s2_bn_lrelu_kernel(%arg0: i32, %arg1: memref<1x6x6x16xbf16, #tpu.memory_space<vmem>>, %arg2: memref<9x16x32xbf16, #tpu.memory_space<vmem>>, %arg3: memref<1x32xf32, #tpu.memory_space<vmem>>, %arg4: memref<1x32xf32, #tpu.memory_space<vmem>>, %arg5: memref<1x4x32xbf16, #tpu.memory_space<vmem>>) attributes {dimension_semantics = [#tpu.dimension_semantics<parallel>], iteration_bounds = array<i64: 2>, scalar_prefetch = 0 : i64, scratch_operands = 0 : i64, tpu.core_type = #tpu.core_type<tc>, window_params = [{transform_indices = @transform_0, window_bounds = array<i64: 1, 6, 6, 16>}, {pipeline_mode = #tpu.pipeline_mode<synchronous>, transform_indices = @transform_1, window_bounds = array<i64: 9, 16, 32>}, {pipeline_mode = #tpu.pipeline_mode<synchronous>, transform_indices = @transform_2, window_bounds = array<i64: 1, 32>}, {pipeline_mode = #tpu.pipeline_mode<synchronous>, transform_indices = @transform_3, window_bounds = array<i64: 1, 32>}, {transform_indices = @transform_4, window_bounds = array<i64: 1, 4, 32>}]} {
    %cst = arith.constant 0.000000e+00 : f32
    %0 = vector.broadcast %cst : f32 to vector<4x32xf32>
    %c0 = arith.constant 0 : index
    %c0_0 = arith.constant 0 : index
    %c0_1 = arith.constant 0 : index
    %c0_2 = arith.constant 0 : index
    %1 = vector.load %arg1[%c0, %c0_0, %c0_1, %c0_2] : memref<1x6x6x16xbf16, #tpu.memory_space<vmem>>, vector<1x1x4x16xbf16>
    %2 = vector.shape_cast %1 : vector<1x1x4x16xbf16> to vector<4x16xbf16>
    %c0_3 = arith.constant 0 : index
    %c0_4 = arith.constant 0 : index
    %c0_5 = arith.constant 0 : index
    %3 = vector.load %arg2[%c0_3, %c0_4, %c0_5] : memref<9x16x32xbf16, #tpu.memory_space<vmem>>, vector<1x16x32xbf16>
    %4 = vector.shape_cast %3 : vector<1x16x32xbf16> to vector<16x32xbf16>
    %cst_6 = arith.constant dense<0.000000e+00> : vector<4x32xf32>
    %5 = tpu.matmul %2, %4, %cst_6 {dimension_numbers = #tpu.dot_dimension_numbers<[1], [0], [0], [1], [0, 0, 1, 1], [], []>} : vector<4x16xbf16>, vector<16x32xbf16>, vector<4x32xf32> -> vector<4x32xf32>
    %6 = arith.addf %0, %5 : vector<4x32xf32>
    %c0_7 = arith.constant 0 : index
    %c1 = arith.constant 1 : index
    %c0_8 = arith.constant 0 : index
    %c0_9 = arith.constant 0 : index
    %7 = vector.load %arg1[%c0_7, %c1, %c0_8, %c0_9] : memref<1x6x6x16xbf16, #tpu.memory_space<vmem>>, vector<1x1x4x16xbf16>
    %8 = vector.shape_cast %7 : vector<1x1x4x16xbf16> to vector<4x16xbf16>
    %c1_10 = arith.constant 1 : index
    %c0_11 = arith.constant 0 : index
    %c0_12 = arith.constant 0 : index
    %9 = vector.load %arg2[%c1_10, %c0_11, %c0_12] : memref<9x16x32xbf16, #tpu.memory_space<vmem>>, vector<1x16x32xbf16>
    %10 = vector.shape_cast %9 : vector<1x16x32xbf16> to vector<16x32xbf16>
    %cst_13 = arith.constant dense<0.000000e+00> : vector<4x32xf32>
    %11 = tpu.matmul %8, %10, %cst_13 {dimension_numbers = #tpu.dot_dimension_numbers<[1], [0], [0], [1], [0, 0, 1, 1], [], []>} : vector<4x16xbf16>, vector<16x32xbf16>, vector<4x32xf32> -> vector<4x32xf32>
    %12 = arith.addf %6, %11 : vector<4x32xf32>
    %c0_14 = arith.constant 0 : index
    %c2 = arith.constant 2 : index
    %c0_15 = arith.constant 0 : index
    %c0_16 = arith.constant 0 : index
    %13 = vector.load %arg1[%c0_14, %c2, %c0_15, %c0_16] : memref<1x6x6x16xbf16, #tpu.memory_space<vmem>>, vector<1x1x4x16xbf16>
    %14 = vector.shape_cast %13 : vector<1x1x4x16xbf16> to vector<4x16xbf16>
    %c2_17 = arith.constant 2 : index
    %c0_18 = arith.constant 0 : index
    %c0_19 = arith.constant 0 : index
    %15 = vector.load %arg2[%c2_17, %c0_18, %c0_19] : memref<9x16x32xbf16, #tpu.memory_space<vmem>>, vector<1x16x32xbf16>
    %16 = vector.shape_cast %15 : vector<1x16x32xbf16> to vector<16x32xbf16>
    %cst_20 = arith.constant dense<0.000000e+00> : vector<4x32xf32>
    %17 = tpu.matmul %14, %16, %cst_20 {dimension_numbers = #tpu.dot_dimension_numbers<[1], [0], [0], [1], [0, 0, 1, 1], [], []>} : vector<4x16xbf16>, vector<16x32xbf16>, vector<4x32xf32> -> vector<4x32xf32>
    %18 = arith.addf %12, %17 : vector<4x32xf32>
    %c0_21 = arith.constant 0 : index
    %c3 = arith.constant 3 : index
    %c0_22 = arith.constant 0 : index
    %c0_23 = arith.constant 0 : index
    %19 = vector.load %arg1[%c0_21, %c3, %c0_22, %c0_23] : memref<1x6x6x16xbf16, #tpu.memory_space<vmem>>, vector<1x1x4x16xbf16>
    %20 = vector.shape_cast %19 : vector<1x1x4x16xbf16> to vector<4x16xbf16>
    %c3_24 = arith.constant 3 : index
    %c0_25 = arith.constant 0 : index
    %c0_26 = arith.constant 0 : index
    %21 = vector.load %arg2[%c3_24, %c0_25, %c0_26] : memref<9x16x32xbf16, #tpu.memory_space<vmem>>, vector<1x16x32xbf16>
    %22 = vector.shape_cast %21 : vector<1x16x32xbf16> to vector<16x32xbf16>
    %cst_27 = arith.constant dense<0.000000e+00> : vector<4x32xf32>
    %23 = tpu.matmul %20, %22, %cst_27 {dimension_numbers = #tpu.dot_dimension_numbers<[1], [0], [0], [1], [0, 0, 1, 1], [], []>} : vector<4x16xbf16>, vector<16x32xbf16>, vector<4x32xf32> -> vector<4x32xf32>
    %24 = arith.addf %18, %23 : vector<4x32xf32>
    %c0_28 = arith.constant 0 : index
    %c4 = arith.constant 4 : index
    %c0_29 = arith.constant 0 : index
    %c0_30 = arith.constant 0 : index
    %25 = vector.load %arg1[%c0_28, %c4, %c0_29, %c0_30] : memref<1x6x6x16xbf16, #tpu.memory_space<vmem>>, vector<1x1x4x16xbf16>
    %26 = vector.shape_cast %25 : vector<1x1x4x16xbf16> to vector<4x16xbf16>
    %c4_31 = arith.constant 4 : index
    %c0_32 = arith.constant 0 : index
    %c0_33 = arith.constant 0 : index
    %27 = vector.load %arg2[%c4_31, %c0_32, %c0_33] : memref<9x16x32xbf16, #tpu.memory_space<vmem>>, vector<1x16x32xbf16>
    %28 = vector.shape_cast %27 : vector<1x16x32xbf16> to vector<16x32xbf16>
    %cst_34 = arith.constant dense<0.000000e+00> : vector<4x32xf32>
    %29 = tpu.matmul %26, %28, %cst_34 {dimension_numbers = #tpu.dot_dimension_numbers<[1], [0], [0], [1], [0, 0, 1, 1], [], []>} : vector<4x16xbf16>, vector<16x32xbf16>, vector<4x32xf32> -> vector<4x32xf32>
    %30 = arith.addf %24, %29 : vector<4x32xf32>
    %c0_35 = arith.constant 0 : index
    %c5 = arith.constant 5 : index
    %c0_36 = arith.constant 0 : index
    %c0_37 = arith.constant 0 : index
    %31 = vector.load %arg1[%c0_35, %c5, %c0_36, %c0_37] : memref<1x6x6x16xbf16, #tpu.memory_space<vmem>>, vector<1x1x4x16xbf16>
    %32 = vector.shape_cast %31 : vector<1x1x4x16xbf16> to vector<4x16xbf16>
    %c5_38 = arith.constant 5 : index
    %c0_39 = arith.constant 0 : index
    %c0_40 = arith.constant 0 : index
    %33 = vector.load %arg2[%c5_38, %c0_39, %c0_40] : memref<9x16x32xbf16, #tpu.memory_space<vmem>>, vector<1x16x32xbf16>
    %34 = vector.shape_cast %33 : vector<1x16x32xbf16> to vector<16x32xbf16>
    %cst_41 = arith.constant dense<0.000000e+00> : vector<4x32xf32>
    %35 = tpu.matmul %32, %34, %cst_41 {dimension_numbers = #tpu.dot_dimension_numbers<[1], [0], [0], [1], [0, 0, 1, 1], [], []>} : vector<4x16xbf16>, vector<16x32xbf16>, vector<4x32xf32> -> vector<4x32xf32>
    %36 = arith.addf %30, %35 : vector<4x32xf32>
    %c0_42 = arith.constant 0 : index
    %c0_43 = arith.constant 0 : index
    %c2_44 = arith.constant 2 : index
    %c0_45 = arith.constant 0 : index
    %37 = vector.load %arg1[%c0_42, %c0_43, %c2_44, %c0_45] : memref<1x6x6x16xbf16, #tpu.memory_space<vmem>>, vector<1x1x4x16xbf16>
    %38 = vector.shape_cast %37 : vector<1x1x4x16xbf16> to vector<4x16xbf16>
    %c6 = arith.constant 6 : index
    %c0_46 = arith.constant 0 : index
    %c0_47 = arith.constant 0 : index
    %39 = vector.load %arg2[%c6, %c0_46, %c0_47] : memref<9x16x32xbf16, #tpu.memory_space<vmem>>, vector<1x16x32xbf16>
    %40 = vector.shape_cast %39 : vector<1x16x32xbf16> to vector<16x32xbf16>
    %cst_48 = arith.constant dense<0.000000e+00> : vector<4x32xf32>
    %41 = tpu.matmul %38, %40, %cst_48 {dimension_numbers = #tpu.dot_dimension_numbers<[1], [0], [0], [1], [0, 0, 1, 1], [], []>} : vector<4x16xbf16>, vector<16x32xbf16>, vector<4x32xf32> -> vector<4x32xf32>
    %42 = arith.addf %36, %41 : vector<4x32xf32>
    %c0_49 = arith.constant 0 : index
    %c1_50 = arith.constant 1 : index
    %c2_51 = arith.constant 2 : index
    %c0_52 = arith.constant 0 : index
    %43 = vector.load %arg1[%c0_49, %c1_50, %c2_51, %c0_52] : memref<1x6x6x16xbf16, #tpu.memory_space<vmem>>, vector<1x1x4x16xbf16>
    %44 = vector.shape_cast %43 : vector<1x1x4x16xbf16> to vector<4x16xbf16>
    %c7 = arith.constant 7 : index
    %c0_53 = arith.constant 0 : index
    %c0_54 = arith.constant 0 : index
    %45 = vector.load %arg2[%c7, %c0_53, %c0_54] : memref<9x16x32xbf16, #tpu.memory_space<vmem>>, vector<1x16x32xbf16>
    %46 = vector.shape_cast %45 : vector<1x16x32xbf16> to vector<16x32xbf16>
    %cst_55 = arith.constant dense<0.000000e+00> : vector<4x32xf32>
    %47 = tpu.matmul %44, %46, %cst_55 {dimension_numbers = #tpu.dot_dimension_numbers<[1], [0], [0], [1], [0, 0, 1, 1], [], []>} : vector<4x16xbf16>, vector<16x32xbf16>, vector<4x32xf32> -> vector<4x32xf32>
    %48 = arith.addf %42, %47 : vector<4x32xf32>
    %c0_56 = arith.constant 0 : index
    %c2_57 = arith.constant 2 : index
    %c2_58 = arith.constant 2 : index
    %c0_59 = arith.constant 0 : index
    %49 = vector.load %arg1[%c0_56, %c2_57, %c2_58, %c0_59] : memref<1x6x6x16xbf16, #tpu.memory_space<vmem>>, vector<1x1x4x16xbf16>
    %50 = vector.shape_cast %49 : vector<1x1x4x16xbf16> to vector<4x16xbf16>
    %c8 = arith.constant 8 : index
    %c0_60 = arith.constant 0 : index
    %c0_61 = arith.constant 0 : index
    %51 = vector.load %arg2[%c8, %c0_60, %c0_61] : memref<9x16x32xbf16, #tpu.memory_space<vmem>>, vector<1x16x32xbf16>
    %52 = vector.shape_cast %51 : vector<1x16x32xbf16> to vector<16x32xbf16>
    %cst_62 = arith.constant dense<0.000000e+00> : vector<4x32xf32>
    %53 = tpu.matmul %50, %52, %cst_62 {dimension_numbers = #tpu.dot_dimension_numbers<[1], [0], [0], [1], [0, 0, 1, 1], [], []>} : vector<4x16xbf16>, vector<16x32xbf16>, vector<4x32xf32> -> vector<4x32xf32>
    %54 = arith.addf %48, %53 : vector<4x32xf32>
    %c0_63 = arith.constant 0 : index
    %c0_64 = arith.constant 0 : index
    %55 = vector.load %arg3[%c0_63, %c0_64] : memref<1x32xf32, #tpu.memory_space<vmem>>, vector<1x32xf32>
    %56 = vector.broadcast %55 : vector<1x32xf32> to vector<4x32xf32>
    %57 = arith.mulf %54, %56 : vector<4x32xf32>
    %c0_65 = arith.constant 0 : index
    %c0_66 = arith.constant 0 : index
    %58 = vector.load %arg4[%c0_65, %c0_66] : memref<1x32xf32, #tpu.memory_space<vmem>>, vector<1x32xf32>
    %59 = vector.broadcast %58 : vector<1x32xf32> to vector<4x32xf32>
    %60 = arith.addf %57, %59 : vector<4x32xf32>
    %cst_67 = arith.constant 0.00999999977 : f32
    %61 = vector.broadcast %cst_67 : f32 to vector<4x32xf32>
    %62 = arith.mulf %61, %60 : vector<4x32xf32>
    %63 = arith.maximumf %60, %62 : vector<4x32xf32>
    %64 = arith.truncf %63 : vector<4x32xf32> to vector<4x32xbf16>
    %c0_68 = arith.constant 0 : index
    %c0_69 = arith.constant 0 : index
    %c0_70 = arith.constant 0 : index
    %65 = vector.load %arg5[%c0_68, %c0_69, %c0_70] : memref<1x4x32xbf16, #tpu.memory_space<vmem>>, vector<1x4x32xbf16>
    %66 = vector.shape_cast %65 : vector<1x4x32xbf16> to vector<4x32xbf16>
    %67 = vector.shape_cast %64 : vector<4x32xbf16> to vector<1x4x32xbf16>
    tpu.vector_store %arg5[%c0_68, %c0_69, %c0_70], %67 {strides = array<i32>} : memref<1x4x32xbf16, #tpu.memory_space<vmem>>, vector<1x4x32xbf16>,
    return
  }
  func.func @transform_0(%arg0: i32) -> (i32, i32, i32, i32) {
    %c0_i32 = arith.constant 0 : i32
    %c0_i32_0 = arith.constant 0 : i32
    %c0_i32_1 = arith.constant 0 : i32
    %c0_i32_2 = arith.constant 0 : i32
    return %arg0, %c0_i32, %c0_i32_0, %c0_i32_1 : i32, i32, i32, i32
  }
  func.func @transform_1(%arg0: i32) -> (i32, i32, i32) {
    %c0_i32 = arith.constant 0 : i32
    %c0_i32_0 = arith.constant 0 : i32
    %c0_i32_1 = arith.constant 0 : i32
    %c0_i32_2 = arith.constant 0 : i32
    return %c0_i32, %c0_i32_0, %c0_i32_1 : i32, i32, i32
  }
  func.func @transform_2(%arg0: i32) -> (i32, i32) {
    %c0_i32 = arith.constant 0 : i32
    %c0_i32_0 = arith.constant 0 : i32
    %c0_i32_1 = arith.constant 0 : i32
    return %c0_i32, %c0_i32_0 : i32, i32
  }
  func.func @transform_3(%arg0: i32) -> (i32, i32) {
    %c0_i32 = arith.constant 0 : i32
    %c0_i32_0 = arith.constant 0 : i32
    %c0_i32_1 = arith.constant 0 : i32
    return %c0_i32, %c0_i32_0 : i32, i32
  }
  func.func @transform_4(%arg0: i32) -> (i32, i32, i32) {
    %c0_i32 = arith.constant 0 : i32
    %c0_i32_0 = arith.constant 0 : i32
    %c0_i32_1 = arith.constant 0 : i32
    return %arg0, %c0_i32, %c0_i32_0 : i32, i32, i32
  }
}

module attributes {stable_mosaic.version = 11 : i64} {
  func.func @_conv3x3s2_bn_lrelu_kernel(%arg0: i32, %arg1: memref<1x6x2x32xbf16, #tpu.memory_space<vmem>>, %arg2: memref<9x32x64xbf16, #tpu.memory_space<vmem>>, %arg3: memref<1x64xf32, #tpu.memory_space<vmem>>, %arg4: memref<1x64xf32, #tpu.memory_space<vmem>>, %arg5: memref<1x1x64xf32, #tpu.memory_space<vmem>>) attributes {dimension_semantics = [#tpu.dimension_semantics<parallel>], iteration_bounds = array<i64: 2>, scalar_prefetch = 0 : i64, scratch_operands = 0 : i64, tpu.core_type = #tpu.core_type<tc>, window_params = [{transform_indices = @transform_0, window_bounds = array<i64: 1, 6, 2, 32>}, {pipeline_mode = #tpu.pipeline_mode<synchronous>, transform_indices = @transform_1, window_bounds = array<i64: 9, 32, 64>}, {pipeline_mode = #tpu.pipeline_mode<synchronous>, transform_indices = @transform_2, window_bounds = array<i64: 1, 64>}, {pipeline_mode = #tpu.pipeline_mode<synchronous>, transform_indices = @transform_3, window_bounds = array<i64: 1, 64>}, {transform_indices = @transform_4, window_bounds = array<i64: 1, 1, 64>}]} {
    %cst = arith.constant 0.000000e+00 : f32
    %0 = vector.broadcast %cst : f32 to vector<1x64xf32>
    %c0 = arith.constant 0 : index
    %c0_0 = arith.constant 0 : index
    %c0_1 = arith.constant 0 : index
    %c0_2 = arith.constant 0 : index
    %1 = vector.load %arg1[%c0, %c0_0, %c0_1, %c0_2] : memref<1x6x2x32xbf16, #tpu.memory_space<vmem>>, vector<1x1x1x32xbf16>
    %2 = vector.shape_cast %1 : vector<1x1x1x32xbf16> to vector<1x32xbf16>
    %c0_3 = arith.constant 0 : index
    %c0_4 = arith.constant 0 : index
    %c0_5 = arith.constant 0 : index
    %3 = vector.load %arg2[%c0_3, %c0_4, %c0_5] : memref<9x32x64xbf16, #tpu.memory_space<vmem>>, vector<1x32x64xbf16>
    %4 = vector.shape_cast %3 : vector<1x32x64xbf16> to vector<32x64xbf16>
    %cst_6 = arith.constant dense<0.000000e+00> : vector<1x64xf32>
    %5 = tpu.matmul %2, %4, %cst_6 {dimension_numbers = #tpu.dot_dimension_numbers<[1], [0], [0], [1], [0, 0, 1, 1], [], []>} : vector<1x32xbf16>, vector<32x64xbf16>, vector<1x64xf32> -> vector<1x64xf32>
    %6 = arith.addf %0, %5 : vector<1x64xf32>
    %c0_7 = arith.constant 0 : index
    %c1 = arith.constant 1 : index
    %c0_8 = arith.constant 0 : index
    %c0_9 = arith.constant 0 : index
    %7 = vector.load %arg1[%c0_7, %c1, %c0_8, %c0_9] : memref<1x6x2x32xbf16, #tpu.memory_space<vmem>>, vector<1x1x1x32xbf16>
    %8 = vector.shape_cast %7 : vector<1x1x1x32xbf16> to vector<1x32xbf16>
    %c1_10 = arith.constant 1 : index
    %c0_11 = arith.constant 0 : index
    %c0_12 = arith.constant 0 : index
    %9 = vector.load %arg2[%c1_10, %c0_11, %c0_12] : memref<9x32x64xbf16, #tpu.memory_space<vmem>>, vector<1x32x64xbf16>
    %10 = vector.shape_cast %9 : vector<1x32x64xbf16> to vector<32x64xbf16>
    %cst_13 = arith.constant dense<0.000000e+00> : vector<1x64xf32>
    %11 = tpu.matmul %8, %10, %cst_13 {dimension_numbers = #tpu.dot_dimension_numbers<[1], [0], [0], [1], [0, 0, 1, 1], [], []>} : vector<1x32xbf16>, vector<32x64xbf16>, vector<1x64xf32> -> vector<1x64xf32>
    %12 = arith.addf %6, %11 : vector<1x64xf32>
    %c0_14 = arith.constant 0 : index
    %c2 = arith.constant 2 : index
    %c0_15 = arith.constant 0 : index
    %c0_16 = arith.constant 0 : index
    %13 = vector.load %arg1[%c0_14, %c2, %c0_15, %c0_16] : memref<1x6x2x32xbf16, #tpu.memory_space<vmem>>, vector<1x1x1x32xbf16>
    %14 = vector.shape_cast %13 : vector<1x1x1x32xbf16> to vector<1x32xbf16>
    %c2_17 = arith.constant 2 : index
    %c0_18 = arith.constant 0 : index
    %c0_19 = arith.constant 0 : index
    %15 = vector.load %arg2[%c2_17, %c0_18, %c0_19] : memref<9x32x64xbf16, #tpu.memory_space<vmem>>, vector<1x32x64xbf16>
    %16 = vector.shape_cast %15 : vector<1x32x64xbf16> to vector<32x64xbf16>
    %cst_20 = arith.constant dense<0.000000e+00> : vector<1x64xf32>
    %17 = tpu.matmul %14, %16, %cst_20 {dimension_numbers = #tpu.dot_dimension_numbers<[1], [0], [0], [1], [0, 0, 1, 1], [], []>} : vector<1x32xbf16>, vector<32x64xbf16>, vector<1x64xf32> -> vector<1x64xf32>
    %18 = arith.addf %12, %17 : vector<1x64xf32>
    %c0_21 = arith.constant 0 : index
    %c3 = arith.constant 3 : index
    %c0_22 = arith.constant 0 : index
    %c0_23 = arith.constant 0 : index
    %19 = vector.load %arg1[%c0_21, %c3, %c0_22, %c0_23] : memref<1x6x2x32xbf16, #tpu.memory_space<vmem>>, vector<1x1x1x32xbf16>
    %20 = vector.shape_cast %19 : vector<1x1x1x32xbf16> to vector<1x32xbf16>
    %c3_24 = arith.constant 3 : index
    %c0_25 = arith.constant 0 : index
    %c0_26 = arith.constant 0 : index
    %21 = vector.load %arg2[%c3_24, %c0_25, %c0_26] : memref<9x32x64xbf16, #tpu.memory_space<vmem>>, vector<1x32x64xbf16>
    %22 = vector.shape_cast %21 : vector<1x32x64xbf16> to vector<32x64xbf16>
    %cst_27 = arith.constant dense<0.000000e+00> : vector<1x64xf32>
    %23 = tpu.matmul %20, %22, %cst_27 {dimension_numbers = #tpu.dot_dimension_numbers<[1], [0], [0], [1], [0, 0, 1, 1], [], []>} : vector<1x32xbf16>, vector<32x64xbf16>, vector<1x64xf32> -> vector<1x64xf32>
    %24 = arith.addf %18, %23 : vector<1x64xf32>
    %c0_28 = arith.constant 0 : index
    %c4 = arith.constant 4 : index
    %c0_29 = arith.constant 0 : index
    %c0_30 = arith.constant 0 : index
    %25 = vector.load %arg1[%c0_28, %c4, %c0_29, %c0_30] : memref<1x6x2x32xbf16, #tpu.memory_space<vmem>>, vector<1x1x1x32xbf16>
    %26 = vector.shape_cast %25 : vector<1x1x1x32xbf16> to vector<1x32xbf16>
    %c4_31 = arith.constant 4 : index
    %c0_32 = arith.constant 0 : index
    %c0_33 = arith.constant 0 : index
    %27 = vector.load %arg2[%c4_31, %c0_32, %c0_33] : memref<9x32x64xbf16, #tpu.memory_space<vmem>>, vector<1x32x64xbf16>
    %28 = vector.shape_cast %27 : vector<1x32x64xbf16> to vector<32x64xbf16>
    %cst_34 = arith.constant dense<0.000000e+00> : vector<1x64xf32>
    %29 = tpu.matmul %26, %28, %cst_34 {dimension_numbers = #tpu.dot_dimension_numbers<[1], [0], [0], [1], [0, 0, 1, 1], [], []>} : vector<1x32xbf16>, vector<32x64xbf16>, vector<1x64xf32> -> vector<1x64xf32>
    %30 = arith.addf %24, %29 : vector<1x64xf32>
    %c0_35 = arith.constant 0 : index
    %c5 = arith.constant 5 : index
    %c0_36 = arith.constant 0 : index
    %c0_37 = arith.constant 0 : index
    %31 = vector.load %arg1[%c0_35, %c5, %c0_36, %c0_37] : memref<1x6x2x32xbf16, #tpu.memory_space<vmem>>, vector<1x1x1x32xbf16>
    %32 = vector.shape_cast %31 : vector<1x1x1x32xbf16> to vector<1x32xbf16>
    %c5_38 = arith.constant 5 : index
    %c0_39 = arith.constant 0 : index
    %c0_40 = arith.constant 0 : index
    %33 = vector.load %arg2[%c5_38, %c0_39, %c0_40] : memref<9x32x64xbf16, #tpu.memory_space<vmem>>, vector<1x32x64xbf16>
    %34 = vector.shape_cast %33 : vector<1x32x64xbf16> to vector<32x64xbf16>
    %cst_41 = arith.constant dense<0.000000e+00> : vector<1x64xf32>
    %35 = tpu.matmul %32, %34, %cst_41 {dimension_numbers = #tpu.dot_dimension_numbers<[1], [0], [0], [1], [0, 0, 1, 1], [], []>} : vector<1x32xbf16>, vector<32x64xbf16>, vector<1x64xf32> -> vector<1x64xf32>
    %36 = arith.addf %30, %35 : vector<1x64xf32>
    %c0_42 = arith.constant 0 : index
    %c0_43 = arith.constant 0 : index
    %c1_44 = arith.constant 1 : index
    %c0_45 = arith.constant 0 : index
    %37 = vector.load %arg1[%c0_42, %c0_43, %c1_44, %c0_45] : memref<1x6x2x32xbf16, #tpu.memory_space<vmem>>, vector<1x1x1x32xbf16>
    %38 = vector.shape_cast %37 : vector<1x1x1x32xbf16> to vector<1x32xbf16>
    %c6 = arith.constant 6 : index
    %c0_46 = arith.constant 0 : index
    %c0_47 = arith.constant 0 : index
    %39 = vector.load %arg2[%c6, %c0_46, %c0_47] : memref<9x32x64xbf16, #tpu.memory_space<vmem>>, vector<1x32x64xbf16>
    %40 = vector.shape_cast %39 : vector<1x32x64xbf16> to vector<32x64xbf16>
    %cst_48 = arith.constant dense<0.000000e+00> : vector<1x64xf32>
    %41 = tpu.matmul %38, %40, %cst_48 {dimension_numbers = #tpu.dot_dimension_numbers<[1], [0], [0], [1], [0, 0, 1, 1], [], []>} : vector<1x32xbf16>, vector<32x64xbf16>, vector<1x64xf32> -> vector<1x64xf32>
    %42 = arith.addf %36, %41 : vector<1x64xf32>
    %c0_49 = arith.constant 0 : index
    %c1_50 = arith.constant 1 : index
    %c1_51 = arith.constant 1 : index
    %c0_52 = arith.constant 0 : index
    %43 = vector.load %arg1[%c0_49, %c1_50, %c1_51, %c0_52] : memref<1x6x2x32xbf16, #tpu.memory_space<vmem>>, vector<1x1x1x32xbf16>
    %44 = vector.shape_cast %43 : vector<1x1x1x32xbf16> to vector<1x32xbf16>
    %c7 = arith.constant 7 : index
    %c0_53 = arith.constant 0 : index
    %c0_54 = arith.constant 0 : index
    %45 = vector.load %arg2[%c7, %c0_53, %c0_54] : memref<9x32x64xbf16, #tpu.memory_space<vmem>>, vector<1x32x64xbf16>
    %46 = vector.shape_cast %45 : vector<1x32x64xbf16> to vector<32x64xbf16>
    %cst_55 = arith.constant dense<0.000000e+00> : vector<1x64xf32>
    %47 = tpu.matmul %44, %46, %cst_55 {dimension_numbers = #tpu.dot_dimension_numbers<[1], [0], [0], [1], [0, 0, 1, 1], [], []>} : vector<1x32xbf16>, vector<32x64xbf16>, vector<1x64xf32> -> vector<1x64xf32>
    %48 = arith.addf %42, %47 : vector<1x64xf32>
    %c0_56 = arith.constant 0 : index
    %c2_57 = arith.constant 2 : index
    %c1_58 = arith.constant 1 : index
    %c0_59 = arith.constant 0 : index
    %49 = vector.load %arg1[%c0_56, %c2_57, %c1_58, %c0_59] : memref<1x6x2x32xbf16, #tpu.memory_space<vmem>>, vector<1x1x1x32xbf16>
    %50 = vector.shape_cast %49 : vector<1x1x1x32xbf16> to vector<1x32xbf16>
    %c8 = arith.constant 8 : index
    %c0_60 = arith.constant 0 : index
    %c0_61 = arith.constant 0 : index
    %51 = vector.load %arg2[%c8, %c0_60, %c0_61] : memref<9x32x64xbf16, #tpu.memory_space<vmem>>, vector<1x32x64xbf16>
    %52 = vector.shape_cast %51 : vector<1x32x64xbf16> to vector<32x64xbf16>
    %cst_62 = arith.constant dense<0.000000e+00> : vector<1x64xf32>
    %53 = tpu.matmul %50, %52, %cst_62 {dimension_numbers = #tpu.dot_dimension_numbers<[1], [0], [0], [1], [0, 0, 1, 1], [], []>} : vector<1x32xbf16>, vector<32x64xbf16>, vector<1x64xf32> -> vector<1x64xf32>
    %54 = arith.addf %48, %53 : vector<1x64xf32>
    %c0_63 = arith.constant 0 : index
    %c0_64 = arith.constant 0 : index
    %55 = vector.load %arg3[%c0_63, %c0_64] : memref<1x64xf32, #tpu.memory_space<vmem>>, vector<1x64xf32>
    %56 = arith.mulf %54, %55 : vector<1x64xf32>
    %c0_65 = arith.constant 0 : index
    %c0_66 = arith.constant 0 : index
    %57 = vector.load %arg4[%c0_65, %c0_66] : memref<1x64xf32, #tpu.memory_space<vmem>>, vector<1x64xf32>
    %58 = arith.addf %56, %57 : vector<1x64xf32>
    %cst_67 = arith.constant 0.00999999977 : f32
    %59 = vector.broadcast %cst_67 : f32 to vector<1x64xf32>
    %60 = arith.mulf %59, %58 : vector<1x64xf32>
    %61 = arith.maximumf %58, %60 : vector<1x64xf32>
    %c0_68 = arith.constant 0 : index
    %c0_69 = arith.constant 0 : index
    %c0_70 = arith.constant 0 : index
    %62 = vector.load %arg5[%c0_68, %c0_69, %c0_70] : memref<1x1x64xf32, #tpu.memory_space<vmem>>, vector<1x1x64xf32>
    %63 = vector.shape_cast %62 : vector<1x1x64xf32> to vector<1x64xf32>
    %64 = vector.shape_cast %61 : vector<1x64xf32> to vector<1x1x64xf32>
    tpu.vector_store %arg5[%c0_68, %c0_69, %c0_70], %64 {strides = array<i32>} : memref<1x1x64xf32, #tpu.memory_space<vmem>>, vector<1x1x64xf32>,
    return
  }
  func.func @transform_0(%arg0: i32) -> (i32, i32, i32, i32) {
    %c0_i32 = arith.constant 0 : i32
    %c0_i32_0 = arith.constant 0 : i32
    %c0_i32_1 = arith.constant 0 : i32
    %c0_i32_2 = arith.constant 0 : i32
    return %arg0, %c0_i32, %c0_i32_0, %c0_i32_1 : i32, i32, i32, i32
  }
  func.func @transform_1(%arg0: i32) -> (i32, i32, i32) {
    %c0_i32 = arith.constant 0 : i32
    %c0_i32_0 = arith.constant 0 : i32
    %c0_i32_1 = arith.constant 0 : i32
    %c0_i32_2 = arith.constant 0 : i32
    return %c0_i32, %c0_i32_0, %c0_i32_1 : i32, i32, i32
  }
  func.func @transform_2(%arg0: i32) -> (i32, i32) {
    %c0_i32 = arith.constant 0 : i32
    %c0_i32_0 = arith.constant 0 : i32
    %c0_i32_1 = arith.constant 0 : i32
    return %c0_i32, %c0_i32_0 : i32, i32
  }
  func.func @transform_3(%arg0: i32) -> (i32, i32) {
    %c0_i32 = arith.constant 0 : i32
    %c0_i32_0 = arith.constant 0 : i32
    %c0_i32_1 = arith.constant 0 : i32
    return %c0_i32, %c0_i32_0 : i32, i32
  }
  func.func @transform_4(%arg0: i32) -> (i32, i32, i32) {
    %c0_i32 = arith.constant 0 : i32
    %c0_i32_0 = arith.constant 0 : i32
    %c0_i32_1 = arith.constant 0 : i32
    return %arg0, %c0_i32, %c0_i32_0 : i32, i32, i32
  }
}

</mosaic_0001>

<llo_original>
// kernel: forward.4
$region0: #{forward.4}
  #allocation0 [shape = 'u32[]', space=smem, size = 0x4, offset = 0x4, fixed_abs, tag = 'smem constant byte address 0x4 - core index']
  #allocation1 [shape = 'u32[144,128]{1,0:T(1,128)}', space=vmem, size = 0x12000, scoped, tag = 'internal scratch']
  %s0 = inlined_call_operand.vmem [shape: bf16[2,6,72,4], index: 0, kind: input, shape index: {}]
  %s1 = inlined_call_operand.vmem [shape: bf16[9,4,8], index: 1, kind: input, shape index: {}]
  %s2 = inlined_call_operand.vmem [shape: f32[1,8], index: 2, kind: input, shape index: {}]
  %s3 = inlined_call_operand.vmem [shape: f32[1,8], index: 3, kind: input, shape index: {}]
  %s4 = inlined_call_operand.vmem [shape: bf16[2,64,8], index: 4, kind: output, shape index: {}]
  %s5 = sld [smem:[#allocation0]]
  $region49: #{forward.4} parent=0
    _
  %s7 = ssub.s32 1, %s5
  %s8 = scalar_select 0, %s7, %s5
  loop: start=0, step=1, limit=4
  $region2: #{forward.4} parent=0 // loop_pre_header
    _
  $region3: #{forward.4} parent=0 // loop_header
    %s10 = sphi 0, %s14
    %p11 = scmp.ge.s32.totalorder %s10, 4
    %s20 = sphi 0, %s22
    %s23 = sphi 0, %s20
    %s24 = sphi 0, %s23
    %s40 = sphi 0, %s24
    %s44 = sphi 0, %s44
    %s46 = sphi 0, %s44
    %s47 = sphi 0, %s46
    %s61 = sphi 0, %s47
    %s65 = sphi 0, %s65
    %s67 = sphi 0, %s65
    %s68 = sphi 0, %s67
    %s82 = sphi 0, %s68
    %s86 = sphi 0, %s86
    %s88 = sphi 0, %s86
    %s89 = sphi 0, %s88
    %s103 = sphi 0, %s89
    %s109 = sphi 0, %s111
    %s112 = sphi 0, %s109
    %s113 = sphi 0, %s112
    %s129 = sphi 0, %s113
  $region4: #{forward.4} parent=0 // loop_header_branch
    %13 = sbr.rel (%p11) target = $region8
  $region5: #{forward.4} parent=0 // loop_body
    %s15 = ssub.s32 %s10, 1
    %s16 = ssub.s32 %s10, 2
    %s17 = sadd.s32 %s10, 1
    %s18 = ssub.s32 %s10, %s17
    %p19 = scmp.eq.s32.totalorder %s18, 0
    %s21 = sadd.s32 %s20, 1
    %s22 = scalar_select %p19, %s20, %s21
    %p25 = pneg %p19
    %p26 = scmp.eq.s32.totalorder %s10, 1
    %p27 = por %p25, %p26
    %p28 = scmp.ne.s32.totalorder %s20, %s23
    %p29 = scmp.eq.s32.totalorder %s10, 0
    %p30 = por %p28, %p29
    %p31 = scmp.ne.s32.totalorder %s20, %s23
    %p32 = scmp.eq.s32.totalorder %s15, 1
    %p33 = por %p31, %p32
    %p34 = scmp.ne.s32.totalorder %s23, %s24
    %p35 = scmp.eq.s32.totalorder %s15, 0
    %p36 = por %p34, %p35
    %p37 = scmp.ne.s32.totalorder %s23, %s24
    %p38 = scmp.eq.s32.totalorder %s16, 1
    %p39 = por %p37, %p38
    %p41 = scmp.ne.s32.totalorder %s24, %s40
    %p42 = scmp.eq.s32.totalorder %s16, 0
    %p43 = por %p41, %p42
    %s45 = sadd.s32 %s44, 1
    %p48 = scmp.eq.s32.totalorder %s10, 1
    %p49 = scmp.ne.s32.totalorder %s44, %s46
    %p50 = scmp.eq.s32.totalorder %s10, 0
    %p51 = por %p49, %p50
    %p52 = scmp.ne.s32.totalorder %s44, %s46
    %p53 = scmp.eq.s32.totalorder %s15, 1
    %p54 = por %p52, %p53
    %p55 = scmp.ne.s32.totalorder %s46, %s47
    %p56 = scmp.eq.s32.totalorder %s15, 0
    %p57 = por %p55, %p56
    %p58 = scmp.ne.s32.totalorder %s46, %s47
    %p59 = scmp.eq.s32.totalorder %s16, 1
    %p60 = por %p58, %p59
    %p62 = scmp.ne.s32.totalorder %s47, %s61
    %p63 = scmp.eq.s32.totalorder %s16, 0
    %p64 = por %p62, %p63
    %s66 = sadd.s32 %s65, 1
    %p69 = scmp.eq.s32.totalorder %s10, 1
    %p70 = scmp.ne.s32.totalorder %s65, %s67
    %p71 = scmp.eq.s32.totalorder %s10, 0
    %p72 = por %p70, %p71
    %p73 = scmp.ne.s32.totalorder %s65, %s67
    %p74 = scmp.eq.s32.totalorder %s15, 1
    %p75 = por %p73, %p74
    %p76 = scmp.ne.s32.totalorder %s67, %s68
    %p77 = scmp.eq.s32.totalorder %s15, 0
    %p78 = por %p76, %p77
    %p79 = scmp.ne.s32.totalorder %s67, %s68
    %p80 = scmp.eq.s32.totalorder %s16, 1
    %p81 = por %p79, %p80
    %p83 = scmp.ne.s32.totalorder %s68, %s82
    %p84 = scmp.eq.s32.totalorder %s16, 0
    %p85 = por %p83, %p84
    %s87 = sadd.s32 %s86, 1
    %p90 = scmp.eq.s32.totalorder %s10, 1
    %p91 = scmp.ne.s32.totalorder %s86, %s88
    %p92 = scmp.eq.s32.totalorder %s10, 0
    %p93 = por %p91, %p92
    %p94 = scmp.ne.s32.totalorder %s86, %s88
    %p95 = scmp.eq.s32.totalorder %s15, 1
    %p96 = por %p94, %p95
    %p97 = scmp.ne.s32.totalorder %s88, %s89
    %p98 = scmp.eq.s32.totalorder %s15, 0
    %p99 = por %p97, %p98
    %p100 = scmp.ne.s32.totalorder %s88, %s89
    %p101 = scmp.eq.s32.totalorder %s16, 1
    %p102 = por %p100, %p101
    %p104 = scmp.ne.s32.totalorder %s89, %s103
    %p105 = scmp.eq.s32.totalorder %s16, 0
    %p106 = por %p104, %p105
    %s107 = ssub.s32 %s10, %s17
    %p108 = scmp.eq.s32.totalorder %s107, 0
    %s110 = sadd.s32 %s109, 1
    %s111 = scalar_select %p108, %s109, %s110
    %p114 = pneg %p108
    %p115 = scmp.eq.s32.totalorder %s10, 1
    %p116 = por %p114, %p115
    %p117 = scmp.ne.s32.totalorder %s109, %s112
    %p118 = scmp.eq.s32.totalorder %s10, 0
    %p119 = por %p117, %p118
    %p120 = scmp.ne.s32.totalorder %s109, %s112
    %p121 = scmp.eq.s32.totalorder %s15, 1
    %p122 = por %p120, %p121
    %p123 = scmp.ne.s32.totalorder %s112, %s113
    %p124 = scmp.eq.s32.totalorder %s15, 0
    %p125 = por %p123, %p124
    %p126 = scmp.ne.s32.totalorder %s112, %s113
    %p127 = scmp.eq.s32.totalorder %s16, 1
    %p128 = por %p126, %p127
    %p130 = scmp.ne.s32.totalorder %s113, %s129
    %p131 = scmp.eq.s32.totalorder %s16, 0
    %p132 = por %p130, %p131
    %p133 = scmp.le.s32.totalorder 1, %s10
    %p134 = scmp.lt.s32.totalorder %s10, 3
    %p135 = pnand %p133, %p134
    %p136 = pneg %p135
    // Predicated region
    $region9: #{forward.4} parent=5 // pred_check
      _
    $region10: #{forward.4} parent=5 // pred_check_branch
      %138 = sbr.rel (%p135) target = $region12
    $region11: #{forward.4} parent=5 // pred_region
      %s139 = ssub.s32 %s10, 1
      // Predicated region
      $region13: #{forward.4} parent=11 // pred_check
        %p140 = pneg %p57
      $region14: #{forward.4} parent=11 // pred_check_branch
        %142 = sbr.rel (%p140) target = $region16
      $region15: #{forward.4} parent=11 // pred_region
        _
      $region16: #{forward.4} parent=11 // pred_fallthru
        _
      // Predicated region
      $region17: #{forward.4} parent=11 // pred_check
        %p143 = pneg %p78
      $region18: #{forward.4} parent=11 // pred_check_branch
        %145 = sbr.rel (%p143) target = $region20
      $region19: #{forward.4} parent=11 // pred_region
        _
      $region20: #{forward.4} parent=11 // pred_fallthru
        _
      // Predicated region
      $region21: #{forward.4} parent=11 // pred_check
        %p146 = pneg %p99
      $region22: #{forward.4} parent=11 // pred_check_branch
        %148 = sbr.rel (%p146) target = $region24
      $region23: #{forward.4} parent=11 // pred_region
        _
      $region24: #{forward.4} parent=11 // pred_fallthru
        _
    $region12: #{forward.4} parent=5 // pred_fallthru
      _
    %p149 = scmp.lt.s32.totalorder %s10, 2
    // Predicated region
    $region25: #{forward.4} parent=5 // pred_check
      %p150 = pneg %p149
    $region26: #{forward.4} parent=5 // pred_check_branch
      %152 = sbr.rel (%p150) target = $region28
    $region27: #{forward.4} parent=5 // pred_region
      // Predicated region
      $region29: #{forward.4} parent=27 // pred_check
        %p153 = pneg %p30
      $region30: #{forward.4} parent=27 // pred_check_branch
        %155 = sbr.rel (%p153) target = $region32
      $region31: #{forward.4} parent=27 // pred_region
        %p156 = scmp.lt.s32.totalorder %s10, 1
        %s157 = scalar_select %p156, %s10, 1
        %s158 = smul.addr %s157, 54
        %s159 = smul.addr %s158, 4
        %s160 = scalar_lea.vmem %s0, %s159
      $region32: #{forward.4} parent=27 // pred_fallthru
        _
    $region28: #{forward.4} parent=5 // pred_fallthru
      _
    %p161 = scmp.le.s32.totalorder 1, %s10
    %p162 = scmp.lt.s32.totalorder %s10, 3
    %p163 = pnand %p161, %p162
    %p164 = pneg %p163
    // Predicated region
    $region33: #{forward.4} parent=5 // pred_check
      _
    $region34: #{forward.4} parent=5 // pred_check_branch
      %166 = sbr.rel (%p163) target = $region36
    $region35: #{forward.4} parent=5 // pred_region
      %s167 = ssub.s32 %s10, 1
      %p168 = scmp.lt.s32.totalorder %s15, 1
      %s169 = scalar_select %p168, %s15, 1
      %s170 = smul.addr %s169, 54
      %s171 = smul.addr %s170, 4
      %s172 = scalar_lea.vmem %s0, %s171
      %p173 = pneg %p36
      %p174 = pneg %p33
      %p175 = pneg %p57
      %p176 = pneg %p54
      %p177 = pneg %p78
      %p178 = pneg %p75
      %p179 = pneg %p99
      %p180 = pneg %p96
      %p181 = pneg %p125
      %p182 = pneg %p122
      %p183 = scmp.lt.s32.totalorder %s15, 1
      %s184 = scalar_select %p183, %s15, 1
      %s185 = smul.addr %s184, 8
      %s186 = smul.addr %s185, 4
      %s187 = scalar_lea.vmem %s4, %s186
      %p188 = scmp.lt.s32.totalorder %s15, 1
      %s189 = scalar_select %p188, %s15, 1
      %s190 = smul.addr %s189, 54
      %s191 = smul.addr %s190, 4
      %s192 = scalar_lea.vmem %s0, %s191
      %p193 = scmp.lt.s32.totalorder %s15, 1
      %s194 = scalar_select %p193, %s15, 1
      %s195 = smul.addr %s194, 8
      %s196 = smul.addr %s195, 4
      %s197 = scalar_lea.vmem %s4, %s196
      %v199 = vld [vmem:[%s192] sm:$0xf]
      %v200 = vld [vmem:[%s192 + $0x4] sm:$0xf]
      %v201 = vld [vmem:[%s192 + $0x8] sm:$0xf]
      %v202 = vld [vmem:[%s192 + $0xc] sm:$0xf]
      %v203 = vld [vmem:[%s192 + $0x10] sm:$0xf]
      %v204 = vld [vmem:[%s192 + $0x14] sm:$0xf]
      %v205 = vld [vmem:[%s192 + $0x18] sm:$0xf]
      %v206 = vld [vmem:[%s192 + $0x1c] sm:$0xf]
      %v207 = vld [vmem:[%s1] sm:$0x3]
      %s208 = scalar_lea.vmem %s192, 36
      %v209 = vld [vmem:[%s208] sm:$0xf]
      %v210 = vld [vmem:[%s208 + $0x4] sm:$0xf]
      %v211 = vld [vmem:[%s208 + $0x8] sm:$0xf]
      %v212 = vld [vmem:[%s208 + $0xc] sm:$0xf]
      %v213 = vld [vmem:[%s208 + $0x10] sm:$0xf]
      %v214 = vld [vmem:[%s208 + $0x14] sm:$0xf]
      %v215 = vld [vmem:[%s208 + $0x18] sm:$0xf]
      %v216 = vld [vmem:[%s208 + $0x1c] sm:$0xf]
      %s217 = scalar_lea.vmem %s1, 2
      %v218 = vld [vmem:[%s217] sm:$0x3]
      %v227 = vunpack.c.l.b16 %v209
      %v228 = vunpack.c.l.b16 %v210
      %v229 = vunpack.c.l.b16 %v211
      %v230 = vunpack.c.l.b16 %v212
      %v231 = vunpack.c.l.b16 %v213
      %v232 = vunpack.c.l.b16 %v214
      %v233 = vunpack.c.l.b16 %v215
      %v234 = vunpack.c.l.b16 %v216
      %v235 = vpack.c.b16 %v228, %v227
      %v236 = vpack.c.b16 %v230, %v229
      %v237 = vpack.c.b16 %v232, %v231
      %v238 = vpack.c.b16 %v234, %v233
      %vm239 = vcmask 31744
      %v241 = vsel %vm239, %v235, 0
      %v244 = vsel %vm239, %v236, 0
      %v247 = vsel %vm239, %v237, 0
      %v250 = vsel %vm239, %v238, 0
      %vm252 = vcmask 1041408
      %v254 = vsel %vm252, %v218, 0
      %256 = vmatprep.subr.bf16.mxu0 0
      %257 = vmatpush1.bf16.msra.mxu0 0
      %258 = vmatprep.subr.bf16.mxu0 0
      %259 = vmatpush1.bf16.msra.mxu0 0
      %260 = vmatprep.subr.bf16.mxu0 0
      %261 = vmatpush1.bf16.msra.mxu0 0
      %262 = vmatprep.subr.bf16.mxu0 0
      %263 = vmatpush1.bf16.msra.mxu0 0
      %264 = vmatprep.subr.bf16.mxu0 0
      %265 = vmatpush1.bf16.msra.mxu0 0
      %266 = vmatprep.subr.bf16.mxu0 0
      %267 = vmatpush1.bf16.msra.mxu0 0
      %268 = vmatprep.subr.bf16.mxu0 0
      %269 = vmatpush1.bf16.msra.mxu0 0
      %270 = vmatprep.subr.bf16.mxu0 0
      %271 = vmatpush1.bf16.msra.mxu0 %v254
      %272 = vmatprep.subr.bf16.mxu0 0
      %273 = vmatpush2.bf16.msra.mxu0 0
      %274 = vmatprep.subr.bf16.mxu0 0
      %275 = vmatpush2.bf16.msra.mxu0 0
      %276 = vmatprep.subr.bf16.mxu0 0
      %277 = vmatpush2.bf16.msra.mxu0 0
      %278 = vmatprep.subr.bf16.mxu0 0
      %279 = vmatpush2.bf16.msra.mxu0 0
      %280 = vmatprep.subr.bf16.mxu0 0
      %281 = vmatpush2.bf16.msra.mxu0 0
      %282 = vmatprep.subr.bf16.mxu0 0
      %283 = vmatpush2.bf16.msra.mxu0 0
      %284 = vmatprep.subr.bf16.mxu0 0
      %285 = vmatpush2.bf16.msra.mxu0 0
      %286 = vmatprep.subr.bf16.mxu0 0
      %287 = vmatpush2.bf16.msra.mxu0 0
      %288 = vmatprep.mubr.bf16.mxu0 0
      %289 = vmatmul.mubr.bf16.gmra.mxu0 %v241
      %v290 = vpop.f32.mrf.mxu0
      %v291 = vadd.f32 0.0, %v290
      %v292 = vpop.f32.mrf.mxu0
      %v293 = vpop.f32.mrf.mxu0
      %v294 = vadd.f32 0.0, %v293
      %v295 = vpop.f32.mrf.mxu0
      %296 = vmatprep.mubr.bf16.mxu0 0
      %297 = vmatmul.mubr.bf16.gmra.mxu0 %v244
      %v298 = vpop.f32.mrf.mxu0
      %v299 = vadd.f32 0.0, %v298
      %v300 = vpop.f32.mrf.mxu0
      %v301 = vpop.f32.mrf.mxu0
      %v302 = vadd.f32 0.0, %v301
      %v303 = vpop.f32.mrf.mxu0
      %304 = vmatprep.mubr.bf16.mxu0 0
      %305 = vmatmul.mubr.bf16.gmra.mxu0 %v247
      %v306 = vpop.f32.mrf.mxu0
      %v307 = vadd.f32 0.0, %v306
      %v308 = vpop.f32.mrf.mxu0
      %v309 = vpop.f32.mrf.mxu0
      %v310 = vadd.f32 0.0, %v309
      %v311 = vpop.f32.mrf.mxu0
      %312 = vmatprep.mubr.bf16.mxu0 0
      %313 = vmatmul.mubr.bf16.gmra.mxu0 %v250
      %v314 = vpop.f32.mrf.mxu0
      %v315 = vadd.f32 0.0, %v314
      %v316 = vpop.f32.mrf.mxu0
      %v317 = vpop.f32.mrf.mxu0
      %v318 = vadd.f32 0.0, %v317
      %v319 = vpop.f32.mrf.mxu0
      %320 = vdwg.mxu0
      %v329 = vunpack.c.l.b16 %v199
      %v330 = vunpack.c.l.b16 %v200
      %v331 = vunpack.c.l.b16 %v201
      %v332 = vunpack.c.l.b16 %v202
      %v333 = vunpack.c.l.b16 %v203
      %v334 = vunpack.c.l.b16 %v204
      %v335 = vunpack.c.l.b16 %v205
      %v336 = vunpack.c.l.b16 %v206
      %v337 = vpack.c.b16 %v330, %v329
      %v338 = vpack.c.b16 %v332, %v331
      %v339 = vpack.c.b16 %v334, %v333
      %v340 = vpack.c.b16 %v336, %v335
      %v342 = vsel %vm239, %v337, 0
      %v345 = vsel %vm239, %v338, 0
      %v348 = vsel %vm239, %v339, 0
      %v351 = vsel %vm239, %v340, 0
      %v354 = vsel %vm252, %v207, 0
      %356 = vmatprep.subr.bf16.mxu0 0
      %357 = vmatpush1.bf16.msra.mxu0 0
      %358 = vmatprep.subr.bf16.mxu0 0
      %359 = vmatpush1.bf16.msra.mxu0 0
      %360 = vmatprep.subr.bf16.mxu0 0
      %361 = vmatpush1.bf16.msra.mxu0 0
      %362 = vmatprep.subr.bf16.mxu0 0
      %363 = vmatpush1.bf16.msra.mxu0 0
      %364 = vmatprep.subr.bf16.mxu0 0
      %365 = vmatpush1.bf16.msra.mxu0 0
      %366 = vmatprep.subr.bf16.mxu0 0
      %367 = vmatpush1.bf16.msra.mxu0 0
      %368 = vmatprep.subr.bf16.mxu0 0
      %369 = vmatpush1.bf16.msra.mxu0 0
      %370 = vmatprep.subr.bf16.mxu0 0
      %371 = vmatpush1.bf16.msra.mxu0 %v354
      %372 = vmatprep.subr.bf16.mxu0 0
      %373 = vmatpush2.bf16.msra.mxu0 0
      %374 = vmatprep.subr.bf16.mxu0 0
      %375 = vmatpush2.bf16.msra.mxu0 0
      %376 = vmatprep.subr.bf16.mxu0 0
      %377 = vmatpush2.bf16.msra.mxu0 0
      %378 = vmatprep.subr.bf16.mxu0 0
      %379 = vmatpush2.bf16.msra.mxu0 0
      %380 = vmatprep.subr.bf16.mxu0 0
      %381 = vmatpush2.bf16.msra.mxu0 0
      %382 = vmatprep.subr.bf16.mxu0 0
      %383 = vmatpush2.bf16.msra.mxu0 0
      %384 = vmatprep.subr.bf16.mxu0 0
      %385 = vmatpush2.bf16.msra.mxu0 0
      %386 = vmatprep.subr.bf16.mxu0 0
      %387 = vmatpush2.bf16.msra.mxu0 0
      %388 = vmatprep.mubr.bf16.mxu0 0
      %389 = vmatmul.mubr.bf16.gmra.mxu0 %v342
      %v390 = vpop.f32.mrf.mxu0
      %v391 = vadd.f32 %v291, %v390
      %v392 = vpop.f32.mrf.mxu0
      %v393 = vpop.f32.mrf.mxu0
      %v394 = vadd.f32 %v294, %v393
      %v395 = vpop.f32.mrf.mxu0
      %396 = vmatprep.mubr.bf16.mxu0 0
      %397 = vmatmul.mubr.bf16.gmra.mxu0 %v345
      %v398 = vpop.f32.mrf.mxu0
      %v399 = vadd.f32 %v299, %v398
      %v400 = vpop.f32.mrf.mxu0
      %v401 = vpop.f32.mrf.mxu0
      %v402 = vadd.f32 %v302, %v401
      %v403 = vpop.f32.mrf.mxu0
      %404 = vmatprep.mubr.bf16.mxu0 0
      %405 = vmatmul.mubr.bf16.gmra.mxu0 %v348
      %v406 = vpop.f32.mrf.mxu0
      %v407 = vadd.f32 %v307, %v406
      %v408 = vpop.f32.mrf.mxu0
      %v409 = vpop.f32.mrf.mxu0
      %v410 = vadd.f32 %v310, %v409
      %v411 = vpop.f32.mrf.mxu0
      %412 = vmatprep.mubr.bf16.mxu0 0
      %413 = vmatmul.mubr.bf16.gmra.mxu0 %v351
      %v414 = vpop.f32.mrf.mxu0
      %v415 = vadd.f32 %v315, %v414
      %v416 = vpop.f32.mrf.mxu0
      %v417 = vpop.f32.mrf.mxu0
      %v418 = vadd.f32 %v318, %v417
      %v419 = vpop.f32.mrf.mxu0
      %420 = vdwg.mxu0
      %s421 = scalar_lea.vmem %s192, 72
      %v422 = vld [vmem:[%s421] sm:$0xf]
      %v423 = vld [vmem:[%s421 + $0x4] sm:$0xf]
      %v424 = vld [vmem:[%s421 + $0x8] sm:$0xf]
      %v425 = vld [vmem:[%s421 + $0xc] sm:$0xf]
      %v426 = vld [vmem:[%s421 + $0x10] sm:$0xf]
      %v427 = vld [vmem:[%s421 + $0x14] sm:$0xf]
      %v428 = vld [vmem:[%s421 + $0x18] sm:$0xf]
      %v429 = vld [vmem:[%s421 + $0x1c] sm:$0xf]
      %s430 = scalar_lea.vmem %s1, 4
      %v431 = vld [vmem:[%s430] sm:$0x3]
      %v440 = vunpack.c.l.b16 %v422
      %v441 = vunpack.c.l.b16 %v423
      %v442 = vunpack.c.l.b16 %v424
      %v443 = vunpack.c.l.b16 %v425
      %v444 = vunpack.c.l.b16 %v426
      %v445 = vunpack.c.l.b16 %v427
      %v446 = vunpack.c.l.b16 %v428
      %v447 = vunpack.c.l.b16 %v429
      %v448 = vpack.c.b16 %v441, %v440
      %v449 = vpack.c.b16 %v443, %v442
      %v450 = vpack.c.b16 %v445, %v444
      %v451 = vpack.c.b16 %v447, %v446
      %v453 = vsel %vm239, %v448, 0
      %v456 = vsel %vm239, %v449, 0
      %v459 = vsel %vm239, %v450, 0
      %v462 = vsel %vm239, %v451, 0
      %v465 = vsel %vm252, %v431, 0
      %467 = vmatprep.subr.bf16.mxu0 0
      %468 = vmatpush1.bf16.msra.mxu0 0
      %469 = vmatprep.subr.bf16.mxu0 0
      %470 = vmatpush1.bf16.msra.mxu0 0
      %471 = vmatprep.subr.bf16.mxu0 0
      %472 = vmatpush1.bf16.msra.mxu0 0
      %473 = vmatprep.subr.bf16.mxu0 0
      %474 = vmatpush1.bf16.msra.mxu0 0
      %475 = vmatprep.subr.bf16.mxu0 0
      %476 = vmatpush1.bf16.msra.mxu0 0
      %477 = vmatprep.subr.bf16.mxu0 0
      %478 = vmatpush1.bf16.msra.mxu0 0
      %479 = vmatprep.subr.bf16.mxu0 0
      %480 = vmatpush1.bf16.msra.mxu0 0
      %481 = vmatprep.subr.bf16.mxu0 0
      %482 = vmatpush1.bf16.msra.mxu0 %v465
      %483 = vmatprep.subr.bf16.mxu0 0
      %484 = vmatpush2.bf16.msra.mxu0 0
      %485 = vmatprep.subr.bf16.mxu0 0
      %486 = vmatpush2.bf16.msra.mxu0 0
      %487 = vmatprep.subr.bf16.mxu0 0
      %488 = vmatpush2.bf16.msra.mxu0 0
      %489 = vmatprep.subr.bf16.mxu0 0
      %490 = vmatpush2.bf16.msra.mxu0 0
      %491 = vmatprep.subr.bf16.mxu0 0
      %492 = vmatpush2.bf16.msra.mxu0 0
      %493 = vmatprep.subr.bf16.mxu0 0
      %494 = vmatpush2.bf16.msra.mxu0 0
      %495 = vmatprep.subr.bf16.mxu0 0
      %496 = vmatpush2.bf16.msra.mxu0 0
      %497 = vmatprep.subr.bf16.mxu0 0
      %498 = vmatpush2.bf16.msra.mxu0 0
      %499 = vmatprep.mubr.bf16.mxu0 0
      %500 = vmatmul.mubr.bf16.gmra.mxu0 %v453
      %v501 = vpop.f32.mrf.mxu0
      %v502 = vadd.f32 0.0, %v501
      %v503 = vpop.f32.mrf.mxu0
      %v504 = vpop.f32.mrf.mxu0
      %v505 = vadd.f32 0.0, %v504
      %v506 = vpop.f32.mrf.mxu0
      %507 = vmatprep.mubr.bf16.mxu0 0
      %508 = vmatmul.mubr.bf16.gmra.mxu0 %v456
      %v509 = vpop.f32.mrf.mxu0
      %v510 = vadd.f32 0.0, %v509
      %v511 = vpop.f32.mrf.mxu0
      %v512 = vpop.f32.mrf.mxu0
      %v513 = vadd.f32 0.0, %v512
      %v514 = vpop.f32.mrf.mxu0
      %515 = vmatprep.mubr.bf16.mxu0 0
      %516 = vmatmul.mubr.bf16.gmra.mxu0 %v459
      %v517 = vpop.f32.mrf.mxu0
      %v518 = vadd.f32 0.0, %v517
      %v519 = vpop.f32.mrf.mxu0
      %v520 = vpop.f32.mrf.mxu0
      %v521 = vadd.f32 0.0, %v520
      %v522 = vpop.f32.mrf.mxu0
      %523 = vmatprep.mubr.bf16.mxu0 0
      %524 = vmatmul.mubr.bf16.gmra.mxu0 %v462
      %v525 = vpop.f32.mrf.mxu0
      %v526 = vadd.f32 0.0, %v525
      %v527 = vpop.f32.mrf.mxu0
      %v528 = vpop.f32.mrf.mxu0
      %v529 = vadd.f32 0.0, %v528
      %v530 = vpop.f32.mrf.mxu0
      %531 = vdwg.mxu0
      %v532 = vadd.f32 %v391, %v502
      %v533 = vadd.f32 %v394, %v505
      %v534 = vadd.f32 %v399, %v510
      %v535 = vadd.f32 %v402, %v513
      %v536 = vadd.f32 %v407, %v518
      %v537 = vadd.f32 %v410, %v521
      %v538 = vadd.f32 %v415, %v526
      %v539 = vadd.f32 %v418, %v529
      %s540 = scalar_lea.vmem %s192, 108
      %v541 = vld [vmem:[%s540] sm:$0xf]
      %v542 = vld [vmem:[%s540 + $0x4] sm:$0xf]
      %v543 = vld [vmem:[%s540 + $0x8] sm:$0xf]
      %v544 = vld [vmem:[%s540 + $0xc] sm:$0xf]
      %v545 = vld [vmem:[%s540 + $0x10] sm:$0xf]
      %v546 = vld [vmem:[%s540 + $0x14] sm:$0xf]
      %v547 = vld [vmem:[%s540 + $0x18] sm:$0xf]
      %v548 = vld [vmem:[%s540 + $0x1c] sm:$0xf]
      %s549 = scalar_lea.vmem %s1, 6
      %v550 = vld [vmem:[%s549] sm:$0x3]
      %v559 = vunpack.c.l.b16 %v541
      %v560 = vunpack.c.l.b16 %v542
      %v561 = vunpack.c.l.b16 %v543
      %v562 = vunpack.c.l.b16 %v544
      %v563 = vunpack.c.l.b16 %v545
      %v564 = vunpack.c.l.b16 %v546
      %v565 = vunpack.c.l.b16 %v547
      %v566 = vunpack.c.l.b16 %v548
      %v567 = vpack.c.b16 %v560, %v559
      %v568 = vpack.c.b16 %v562, %v561
      %v569 = vpack.c.b16 %v564, %v563
      %v570 = vpack.c.b16 %v566, %v565
      %v572 = vsel %vm239, %v567, 0
      %v575 = vsel %vm239, %v568, 0
      %v578 = vsel %vm239, %v569, 0
      %v581 = vsel %vm239, %v570, 0
      %v584 = vsel %vm252, %v550, 0
      %586 = vmatprep.subr.bf16.mxu0 0
      %587 = vmatpush1.bf16.msra.mxu0 0
      %588 = vmatprep.subr.bf16.mxu0 0
      %589 = vmatpush1.bf16.msra.mxu0 0
      %590 = vmatprep.subr.bf16.mxu0 0
      %591 = vmatpush1.bf16.msra.mxu0 0
      %592 = vmatprep.subr.bf16.mxu0 0
      %593 = vmatpush1.bf16.msra.mxu0 0
      %594 = vmatprep.subr.bf16.mxu0 0
      %595 = vmatpush1.bf16.msra.mxu0 0
      %596 = vmatprep.subr.bf16.mxu0 0
      %597 = vmatpush1.bf16.msra.mxu0 0
      %598 = vmatprep.subr.bf16.mxu0 0
      %599 = vmatpush1.bf16.msra.mxu0 0
      %600 = vmatprep.subr.bf16.mxu0 0
      %601 = vmatpush1.bf16.msra.mxu0 %v584
      %602 = vmatprep.subr.bf16.mxu0 0
      %603 = vmatpush2.bf16.msra.mxu0 0
      %604 = vmatprep.subr.bf16.mxu0 0
      %605 = vmatpush2.bf16.msra.mxu0 0
      %606 = vmatprep.subr.bf16.mxu0 0
      %607 = vmatpush2.bf16.msra.mxu0 0
      %608 = vmatprep.subr.bf16.mxu0 0
      %609 = vmatpush2.bf16.msra.mxu0 0
      %610 = vmatprep.subr.bf16.mxu0 0
      %611 = vmatpush2.bf16.msra.mxu0 0
      %612 = vmatprep.subr.bf16.mxu0 0
      %613 = vmatpush2.bf16.msra.mxu0 0
      %614 = vmatprep.subr.bf16.mxu0 0
      %615 = vmatpush2.bf16.msra.mxu0 0
      %616 = vmatprep.subr.bf16.mxu0 0
      %617 = vmatpush2.bf16.msra.mxu0 0
      %618 = vmatprep.mubr.bf16.mxu0 0
      %619 = vmatmul.mubr.bf16.gmra.mxu0 %v572
      %v620 = vpop.f32.mrf.mxu0
      %v621 = vadd.f32 0.0, %v620
      %v622 = vpop.f32.mrf.mxu0
      %v623 = vpop.f32.mrf.mxu0
      %v624 = vadd.f32 0.0, %v623
      %v625 = vpop.f32.mrf.mxu0
      %626 = vmatprep.mubr.bf16.mxu0 0
      %627 = vmatmul.mubr.bf16.gmra.mxu0 %v575
      %v628 = vpop.f32.mrf.mxu0
      %v629 = vadd.f32 0.0, %v628
      %v630 = vpop.f32.mrf.mxu0
      %v631 = vpop.f32.mrf.mxu0
      %v632 = vadd.f32 0.0, %v631
      %v633 = vpop.f32.mrf.mxu0
      %634 = vmatprep.mubr.bf16.mxu0 0
      %635 = vmatmul.mubr.bf16.gmra.mxu0 %v578
      %v636 = vpop.f32.mrf.mxu0
      %v637 = vadd.f32 0.0, %v636
      %v638 = vpop.f32.mrf.mxu0
      %v639 = vpop.f32.mrf.mxu0
      %v640 = vadd.f32 0.0, %v639
      %v641 = vpop.f32.mrf.mxu0
      %642 = vmatprep.mubr.bf16.mxu0 0
      %643 = vmatmul.mubr.bf16.gmra.mxu0 %v581
      %v644 = vpop.f32.mrf.mxu0
      %v645 = vadd.f32 0.0, %v644
      %v646 = vpop.f32.mrf.mxu0
      %v647 = vpop.f32.mrf.mxu0
      %v648 = vadd.f32 0.0, %v647
      %v649 = vpop.f32.mrf.mxu0
      %650 = vdwg.mxu0
      %v651 = vadd.f32 %v532, %v621
      %v652 = vadd.f32 %v533, %v624
      %v653 = vadd.f32 %v534, %v629
      %v654 = vadd.f32 %v535, %v632
      %v655 = vadd.f32 %v536, %v637
      %v656 = vadd.f32 %v537, %v640
      %v657 = vadd.f32 %v538, %v645
      %v658 = vadd.f32 %v539, %v648
      %s659 = scalar_lea.vmem %s192, 144
      %v660 = vld [vmem:[%s659] sm:$0xf]
      %v661 = vld [vmem:[%s659 + $0x4] sm:$0xf]
      %v662 = vld [vmem:[%s659 + $0x8] sm:$0xf]
      %v663 = vld [vmem:[%s659 + $0xc] sm:$0xf]
      %v664 = vld [vmem:[%s659 + $0x10] sm:$0xf]
      %v665 = vld [vmem:[%s659 + $0x14] sm:$0xf]
      %v666 = vld [vmem:[%s659 + $0x18] sm:$0xf]
      %v667 = vld [vmem:[%s659 + $0x1c] sm:$0xf]
      %s668 = scalar_lea.vmem %s1, 8
      %v669 = vld [vmem:[%s668] sm:$0x3]
      %v678 = vunpack.c.l.b16 %v660
      %v679 = vunpack.c.l.b16 %v661
      %v680 = vunpack.c.l.b16 %v662
      %v681 = vunpack.c.l.b16 %v663
      %v682 = vunpack.c.l.b16 %v664
      %v683 = vunpack.c.l.b16 %v665
      %v684 = vunpack.c.l.b16 %v666
      %v685 = vunpack.c.l.b16 %v667
      %v686 = vpack.c.b16 %v679, %v678
      %v687 = vpack.c.b16 %v681, %v680
      %v688 = vpack.c.b16 %v683, %v682
      %v689 = vpack.c.b16 %v685, %v684
      %v691 = vsel %vm239, %v686, 0
      %v694 = vsel %vm239, %v687, 0
      %v697 = vsel %vm239, %v688, 0
      %v700 = vsel %vm239, %v689, 0
      %v703 = vsel %vm252, %v669, 0
      %705 = vmatprep.subr.bf16.mxu0 0
      %706 = vmatpush1.bf16.msra.mxu0 0
      %707 = vmatprep.subr.bf16.mxu0 0
      %708 = vmatpush1.bf16.msra.mxu0 0
      %709 = vmatprep.subr.bf16.mxu0 0
      %710 = vmatpush1.bf16.msra.mxu0 0
      %711 = vmatprep.subr.bf16.mxu0 0
      %712 = vmatpush1.bf16.msra.mxu0 0
      %713 = vmatprep.subr.bf16.mxu0 0
      %714 = vmatpush1.bf16.msra.mxu0 0
      %715 = vmatprep.subr.bf16.mxu0 0
      %716 = vmatpush1.bf16.msra.mxu0 0
      %717 = vmatprep.subr.bf16.mxu0 0
      %718 = vmatpush1.bf16.msra.mxu0 0
      %719 = vmatprep.subr.bf16.mxu0 0
      %720 = vmatpush1.bf16.msra.mxu0 %v703
      %721 = vmatprep.subr.bf16.mxu0 0
      %722 = vmatpush2.bf16.msra.mxu0 0
      %723 = vmatprep.subr.bf16.mxu0 0
      %724 = vmatpush2.bf16.msra.mxu0 0
      %725 = vmatprep.subr.bf16.mxu0 0
      %726 = vmatpush2.bf16.msra.mxu0 0
      %727 = vmatprep.subr.bf16.mxu0 0
      %728 = vmatpush2.bf16.msra.mxu0 0
      %729 = vmatprep.subr.bf16.mxu0 0
      %730 = vmatpush2.bf16.msra.mxu0 0
      %731 = vmatprep.subr.bf16.mxu0 0
      %732 = vmatpush2.bf16.msra.mxu0 0
      %733 = vmatprep.subr.bf16.mxu0 0
      %734 = vmatpush2.bf16.msra.mxu0 0
      %735 = vmatprep.subr.bf16.mxu0 0
      %736 = vmatpush2.bf16.msra.mxu0 0
      %737 = vmatprep.mubr.bf16.mxu0 0
      %738 = vmatmul.mubr.bf16.gmra.mxu0 %v691
      %v739 = vpop.f32.mrf.mxu0
      %v740 = vadd.f32 0.0, %v739
      %v741 = vpop.f32.mrf.mxu0
      %v742 = vpop.f32.mrf.mxu0
      %v743 = vadd.f32 0.0, %v742
      %v744 = vpop.f32.mrf.mxu0
      %745 = vmatprep.mubr.bf16.mxu0 0
      %746 = vmatmul.mubr.bf16.gmra.mxu0 %v694
      %v747 = vpop.f32.mrf.mxu0
      %v748 = vadd.f32 0.0, %v747
      %v749 = vpop.f32.mrf.mxu0
      %v750 = vpop.f32.mrf.mxu0
      %v751 = vadd.f32 0.0, %v750
      %v752 = vpop.f32.mrf.mxu0
      %753 = vmatprep.mubr.bf16.mxu0 0
      %754 = vmatmul.mubr.bf16.gmra.mxu0 %v697
      %v755 = vpop.f32.mrf.mxu0
      %v756 = vadd.f32 0.0, %v755
      %v757 = vpop.f32.mrf.mxu0
      %v758 = vpop.f32.mrf.mxu0
      %v759 = vadd.f32 0.0, %v758
      %v760 = vpop.f32.mrf.mxu0
      %761 = vmatprep.mubr.bf16.mxu0 0
      %762 = vmatmul.mubr.bf16.gmra.mxu0 %v700
      %v763 = vpop.f32.mrf.mxu0
      %v764 = vadd.f32 0.0, %v763
      %v765 = vpop.f32.mrf.mxu0
      %v766 = vpop.f32.mrf.mxu0
      %v767 = vadd.f32 0.0, %v766
      %v768 = vpop.f32.mrf.mxu0
      %769 = vdwg.mxu0
      %v770 = vadd.f32 %v651, %v740
      %v771 = vadd.f32 %v652, %v743
      %v772 = vadd.f32 %v653, %v748
      %v773 = vadd.f32 %v654, %v751
      %v774 = vadd.f32 %v655, %v756
      %v775 = vadd.f32 %v656, %v759
      %v776 = vadd.f32 %v657, %v764
      %v777 = vadd.f32 %v658, %v767
      %s778 = scalar_lea.vmem %s192, 180
      %v779 = vld [vmem:[%s778] sm:$0xf]
      %v780 = vld [vmem:[%s778 + $0x4] sm:$0xf]
      %v781 = vld [vmem:[%s778 + $0x8] sm:$0xf]
      %v782 = vld [vmem:[%s778 + $0xc] sm:$0xf]
      %v783 = vld [vmem:[%s778 + $0x10] sm:$0xf]
      %v784 = vld [vmem:[%s778 + $0x14] sm:$0xf]
      %v785 = vld [vmem:[%s778 + $0x18] sm:$0xf]
      %v786 = vld [vmem:[%s778 + $0x1c] sm:$0xf]
      %s787 = scalar_lea.vmem %s1, 10
      %v788 = vld [vmem:[%s787] sm:$0x3]
      %v797 = vunpack.c.l.b16 %v779
      %v798 = vunpack.c.l.b16 %v780
      %v799 = vunpack.c.l.b16 %v781
      %v800 = vunpack.c.l.b16 %v782
      %v801 = vunpack.c.l.b16 %v783
      %v802 = vunpack.c.l.b16 %v784
      %v803 = vunpack.c.l.b16 %v785
      %v804 = vunpack.c.l.b16 %v786
      %v805 = vpack.c.b16 %v798, %v797
      %v806 = vpack.c.b16 %v800, %v799
      %v807 = vpack.c.b16 %v802, %v801
      %v808 = vpack.c.b16 %v804, %v803
      %v810 = vsel %vm239, %v805, 0
      %v813 = vsel %vm239, %v806, 0
      %v816 = vsel %vm239, %v807, 0
      %v819 = vsel %vm239, %v808, 0
      %v822 = vsel %vm252, %v788, 0
      %824 = vmatprep.subr.bf16.mxu0 0
      %825 = vmatpush1.bf16.msra.mxu0 0
      %826 = vmatprep.subr.bf16.mxu0 0
      %827 = vmatpush1.bf16.msra.mxu0 0
      %828 = vmatprep.subr.bf16.mxu0 0
      %829 = vmatpush1.bf16.msra.mxu0 0
      %830 = vmatprep.subr.bf16.mxu0 0
      %831 = vmatpush1.bf16.msra.mxu0 0
      %832 = vmatprep.subr.bf16.mxu0 0
      %833 = vmatpush1.bf16.msra.mxu0 0
      %834 = vmatprep.subr.bf16.mxu0 0
      %835 = vmatpush1.bf16.msra.mxu0 0
      %836 = vmatprep.subr.bf16.mxu0 0
      %837 = vmatpush1.bf16.msra.mxu0 0
      %838 = vmatprep.subr.bf16.mxu0 0
      %839 = vmatpush1.bf16.msra.mxu0 %v822
      %840 = vmatprep.subr.bf16.mxu0 0
      %841 = vmatpush2.bf16.msra.mxu0 0
      %842 = vmatprep.subr.bf16.mxu0 0
      %843 = vmatpush2.bf16.msra.mxu0 0
      %844 = vmatprep.subr.bf16.mxu0 0
      %845 = vmatpush2.bf16.msra.mxu0 0
      %846 = vmatprep.subr.bf16.mxu0 0
      %847 = vmatpush2.bf16.msra.mxu0 0
      %848 = vmatprep.subr.bf16.mxu0 0
      %849 = vmatpush2.bf16.msra.mxu0 0
      %850 = vmatprep.subr.bf16.mxu0 0
      %851 = vmatpush2.bf16.msra.mxu0 0
      %852 = vmatprep.subr.bf16.mxu0 0
      %853 = vmatpush2.bf16.msra.mxu0 0
      %854 = vmatprep.subr.bf16.mxu0 0
      %855 = vmatpush2.bf16.msra.mxu0 0
      %856 = vmatprep.mubr.bf16.mxu0 0
      %857 = vmatmul.mubr.bf16.gmra.mxu0 %v810
      %v858 = vpop.f32.mrf.mxu0
      %v859 = vadd.f32 0.0, %v858
      %v860 = vpop.f32.mrf.mxu0
      %v861 = vpop.f32.mrf.mxu0
      %v862 = vadd.f32 0.0, %v861
      %v863 = vpop.f32.mrf.mxu0
      %864 = vmatprep.mubr.bf16.mxu0 0
      %865 = vmatmul.mubr.bf16.gmra.mxu0 %v813
      %v866 = vpop.f32.mrf.mxu0
      %v867 = vadd.f32 0.0, %v866
      %v868 = vpop.f32.mrf.mxu0
      %v869 = vpop.f32.mrf.mxu0
      %v870 = vadd.f32 0.0, %v869
      %v871 = vpop.f32.mrf.mxu0
      %872 = vmatprep.mubr.bf16.mxu0 0
      %873 = vmatmul.mubr.bf16.gmra.mxu0 %v816
      %v874 = vpop.f32.mrf.mxu0
      %v875 = vadd.f32 0.0, %v874
      %v876 = vpop.f32.mrf.mxu0
      %v877 = vpop.f32.mrf.mxu0
      %v878 = vadd.f32 0.0, %v877
      %v879 = vpop.f32.mrf.mxu0
      %880 = vmatprep.mubr.bf16.mxu0 0
      %881 = vmatmul.mubr.bf16.gmra.mxu0 %v819
      %v882 = vpop.f32.mrf.mxu0
      %v883 = vadd.f32 0.0, %v882
      %v884 = vpop.f32.mrf.mxu0
      %v885 = vpop.f32.mrf.mxu0
      %v886 = vadd.f32 0.0, %v885
      %v887 = vpop.f32.mrf.mxu0
      %888 = vdwg.mxu0
      %v889 = vadd.f32 %v770, %v859
      %v890 = vadd.f32 %v771, %v862
      %v891 = vadd.f32 %v772, %v867
      %v892 = vadd.f32 %v773, %v870
      %v893 = vadd.f32 %v774, %v875
      %v894 = vadd.f32 %v775, %v878
      %v895 = vadd.f32 %v776, %v883
      %v896 = vadd.f32 %v777, %v886
      %v897 = vld [vmem:[%s192 + $0x4] sm:$0xf]
      %v898 = vld [vmem:[%s192 + $0x8] sm:$0xf]
      %v899 = vld [vmem:[%s192 + $0xc] sm:$0xf]
      %v900 = vld [vmem:[%s192 + $0x10] sm:$0xf]
      %v901 = vld [vmem:[%s192 + $0x14] sm:$0xf]
      %v902 = vld [vmem:[%s192 + $0x18] sm:$0xf]
      %v903 = vld [vmem:[%s192 + $0x1c] sm:$0xf]
      %v904 = vld [vmem:[%s192 + $0x20] sm:$0xf]
      %s905 = scalar_lea.vmem %s1, 12
      %v906 = vld [vmem:[%s905] sm:$0x3]
      %v915 = vunpack.c.l.b16 %v897
      %v916 = vunpack.c.l.b16 %v898
      %v917 = vunpack.c.l.b16 %v899
      %v918 = vunpack.c.l.b16 %v900
      %v919 = vunpack.c.l.b16 %v901
      %v920 = vunpack.c.l.b16 %v902
      %v921 = vunpack.c.l.b16 %v903
      %v922 = vunpack.c.l.b16 %v904
      %v923 = vpack.c.b16 %v916, %v915
      %v924 = vpack.c.b16 %v918, %v917
      %v925 = vpack.c.b16 %v920, %v919
      %v926 = vpack.c.b16 %v922, %v921
      %v928 = vsel %vm239, %v923, 0
      %v931 = vsel %vm239, %v924, 0
      %v934 = vsel %vm239, %v925, 0
      %v937 = vsel %vm239, %v926, 0
      %v940 = vsel %vm252, %v906, 0
      %942 = vmatprep.subr.bf16.mxu0 0
      %943 = vmatpush1.bf16.msra.mxu0 0
      %944 = vmatprep.subr.bf16.mxu0 0
      %945 = vmatpush1.bf16.msra.mxu0 0
      %946 = vmatprep.subr.bf16.mxu0 0
      %947 = vmatpush1.bf16.msra.mxu0 0
      %948 = vmatprep.subr.bf16.mxu0 0
      %949 = vmatpush1.bf16.msra.mxu0 0
      %950 = vmatprep.subr.bf16.mxu0 0
      %951 = vmatpush1.bf16.msra.mxu0 0
      %952 = vmatprep.subr.bf16.mxu0 0
      %953 = vmatpush1.bf16.msra.mxu0 0
      %954 = vmatprep.subr.bf16.mxu0 0
      %955 = vmatpush1.bf16.msra.mxu0 0
      %956 = vmatprep.subr.bf16.mxu0 0
      %957 = vmatpush1.bf16.msra.mxu0 %v940
      %958 = vmatprep.subr.bf16.mxu0 0
      %959 = vmatpush2.bf16.msra.mxu0 0
      %960 = vmatprep.subr.bf16.mxu0 0
      %961 = vmatpush2.bf16.msra.mxu0 0
      %962 = vmatprep.subr.bf16.mxu0 0
      %963 = vmatpush2.bf16.msra.mxu0 0
      %964 = vmatprep.subr.bf16.mxu0 0
      %965 = vmatpush2.bf16.msra.mxu0 0
      %966 = vmatprep.subr.bf16.mxu0 0
      %967 = vmatpush2.bf16.msra.mxu0 0
      %968 = vmatprep.subr.bf16.mxu0 0
      %969 = vmatpush2.bf16.msra.mxu0 0
      %970 = vmatprep.subr.bf16.mxu0 0
      %971 = vmatpush2.bf16.msra.mxu0 0
      %972 = vmatprep.subr.bf16.mxu0 0
      %973 = vmatpush2.bf16.msra.mxu0 0
      %974 = vmatprep.mubr.bf16.mxu0 0
      %975 = vmatmul.mubr.bf16.gmra.mxu0 %v928
      %v976 = vpop.f32.mrf.mxu0
      %v977 = vadd.f32 0.0, %v976
      %v978 = vpop.f32.mrf.mxu0
      %v979 = vpop.f32.mrf.mxu0
      %v980 = vadd.f32 0.0, %v979
      %v981 = vpop.f32.mrf.mxu0
      %982 = vmatprep.mubr.bf16.mxu0 0
      %983 = vmatmul.mubr.bf16.gmra.mxu0 %v931
      %v984 = vpop.f32.mrf.mxu0
      %v985 = vadd.f32 0.0, %v984
      %v986 = vpop.f32.mrf.mxu0
      %v987 = vpop.f32.mrf.mxu0
      %v988 = vadd.f32 0.0, %v987
      %v989 = vpop.f32.mrf.mxu0
      %990 = vmatprep.mubr.bf16.mxu0 0
      %991 = vmatmul.mubr.bf16.gmra.mxu0 %v934
      %v992 = vpop.f32.mrf.mxu0
      %v993 = vadd.f32 0.0, %v992
      %v994 = vpop.f32.mrf.mxu0
      %v995 = vpop.f32.mrf.mxu0
      %v996 = vadd.f32 0.0, %v995
      %v997 = vpop.f32.mrf.mxu0
      %998 = vmatprep.mubr.bf16.mxu0 0
      %999 = vmatmul.mubr.bf16.gmra.mxu0 %v937
      %v1000 = vpop.f32.mrf.mxu0
      %v1001 = vadd.f32 0.0, %v1000
      %v1002 = vpop.f32.mrf.mxu0
      %v1003 = vpop.f32.mrf.mxu0
      %v1004 = vadd.f32 0.0, %v1003
      %v1005 = vpop.f32.mrf.mxu0
      %1006 = vdwg.mxu0
      %v1007 = vadd.f32 %v889, %v977
      %v1008 = vadd.f32 %v890, %v980
      %v1009 = vadd.f32 %v891, %v985
      %v1010 = vadd.f32 %v892, %v988
      %v1011 = vadd.f32 %v893, %v993
      %v1012 = vadd.f32 %v894, %v996
      %v1013 = vadd.f32 %v895, %v1001
      %v1014 = vadd.f32 %v896, %v1004
      %v1015 = vld [vmem:[%s208 + $0x4] sm:$0xf]
      %v1016 = vld [vmem:[%s208 + $0x8] sm:$0xf]
      %v1017 = vld [vmem:[%s208 + $0xc] sm:$0xf]
      %v1018 = vld [vmem:[%s208 + $0x10] sm:$0xf]
      %v1019 = vld [vmem:[%s208 + $0x14] sm:$0xf]
      %v1020 = vld [vmem:[%s208 + $0x18] sm:$0xf]
      %v1021 = vld [vmem:[%s208 + $0x1c] sm:$0xf]
      %v1022 = vld [vmem:[%s208 + $0x20] sm:$0xf]
      %s1023 = scalar_lea.vmem %s1, 14
      %v1024 = vld [vmem:[%s1023] sm:$0x3]
      %v1033 = vunpack.c.l.b16 %v1015
      %v1034 = vunpack.c.l.b16 %v1016
      %v1035 = vunpack.c.l.b16 %v1017
      %v1036 = vunpack.c.l.b16 %v1018
      %v1037 = vunpack.c.l.b16 %v1019
      %v1038 = vunpack.c.l.b16 %v1020
      %v1039 = vunpack.c.l.b16 %v1021
      %v1040 = vunpack.c.l.b16 %v1022
      %v1041 = vpack.c.b16 %v1034, %v1033
      %v1042 = vpack.c.b16 %v1036, %v1035
      %v1043 = vpack.c.b16 %v1038, %v1037
      %v1044 = vpack.c.b16 %v1040, %v1039
      %v1046 = vsel %vm239, %v1041, 0
      %v1049 = vsel %vm239, %v1042, 0
      %v1052 = vsel %vm239, %v1043, 0
      %v1055 = vsel %vm239, %v1044, 0
      %v1058 = vsel %vm252, %v1024, 0
      %1060 = vmatprep.subr.bf16.mxu0 0
      %1061 = vmatpush1.bf16.msra.mxu0 0
      %1062 = vmatprep.subr.bf16.mxu0 0
      %1063 = vmatpush1.bf16.msra.mxu0 0
      %1064 = vmatprep.subr.bf16.mxu0 0
      %1065 = vmatpush1.bf16.msra.mxu0 0
      %1066 = vmatprep.subr.bf16.mxu0 0
      %1067 = vmatpush1.bf16.msra.mxu0 0
      %1068 = vmatprep.subr.bf16.mxu0 0
      %1069 = vmatpush1.bf16.msra.mxu0 0
      %1070 = vmatprep.subr.bf16.mxu0 0
      %1071 = vmatpush1.bf16.msra.mxu0 0
      %1072 = vmatprep.subr.bf16.mxu0 0
      %1073 = vmatpush1.bf16.msra.mxu0 0
      %1074 = vmatprep.subr.bf16.mxu0 0
      %1075 = vmatpush1.bf16.msra.mxu0 %v1058
      %1076 = vmatprep.subr.bf16.mxu0 0
      %1077 = vmatpush2.bf16.msra.mxu0 0
      %1078 = vmatprep.subr.bf16.mxu0 0
      %1079 = vmatpush2.bf16.msra.mxu0 0
      %1080 = vmatprep.subr.bf16.mxu0 0
      %1081 = vmatpush2.bf16.msra.mxu0 0
      %1082 = vmatprep.subr.bf16.mxu0 0
      %1083 = vmatpush2.bf16.msra.mxu0 0
      %1084 = vmatprep.subr.bf16.mxu0 0
      %1085 = vmatpush2.bf16.msra.mxu0 0
      %1086 = vmatprep.subr.bf16.mxu0 0
      %1087 = vmatpush2.bf16.msra.mxu0 0
      %1088 = vmatprep.subr.bf16.mxu0 0
      %1089 = vmatpush2.bf16.msra.mxu0 0
      %1090 = vmatprep.subr.bf16.mxu0 0
      %1091 = vmatpush2.bf16.msra.mxu0 0
      %1092 = vmatprep.mubr.bf16.mxu0 0
      %1093 = vmatmul.mubr.bf16.gmra.mxu0 %v1046
      %v1094 = vpop.f32.mrf.mxu0
      %v1095 = vadd.f32 0.0, %v1094
      %v1096 = vpop.f32.mrf.mxu0
      %v1097 = vpop.f32.mrf.mxu0
      %v1098 = vadd.f32 0.0, %v1097
      %v1099 = vpop.f32.mrf.mxu0
      %1100 = vmatprep.mubr.bf16.mxu0 0
      %1101 = vmatmul.mubr.bf16.gmra.mxu0 %v1049
      %v1102 = vpop.f32.mrf.mxu0
      %v1103 = vadd.f32 0.0, %v1102
      %v1104 = vpop.f32.mrf.mxu0
      %v1105 = vpop.f32.mrf.mxu0
      %v1106 = vadd.f32 0.0, %v1105
      %v1107 = vpop.f32.mrf.mxu0
      %1108 = vmatprep.mubr.bf16.mxu0 0
      %1109 = vmatmul.mubr.bf16.gmra.mxu0 %v1052
      %v1110 = vpop.f32.mrf.mxu0
      %v1111 = vadd.f32 0.0, %v1110
      %v1112 = vpop.f32.mrf.mxu0
      %v1113 = vpop.f32.mrf.mxu0
      %v1114 = vadd.f32 0.0, %v1113
      %v1115 = vpop.f32.mrf.mxu0
      %1116 = vmatprep.mubr.bf16.mxu0 0
      %1117 = vmatmul.mubr.bf16.gmra.mxu0 %v1055
      %v1118 = vpop.f32.mrf.mxu0
      %v1119 = vadd.f32 0.0, %v1118
      %v1120 = vpop.f32.mrf.mxu0
      %v1121 = vpop.f32.mrf.mxu0
      %v1122 = vadd.f32 0.0, %v1121
      %v1123 = vpop.f32.mrf.mxu0
      %1124 = vdwg.mxu0
      %v1125 = vadd.f32 %v1007, %v1095
      %v1126 = vadd.f32 %v1008, %v1098
      %v1127 = vadd.f32 %v1009, %v1103
      %v1128 = vadd.f32 %v1010, %v1106
      %v1129 = vadd.f32 %v1011, %v1111
      %v1130 = vadd.f32 %v1012, %v1114
      %v1131 = vadd.f32 %v1013, %v1119
      %v1132 = vadd.f32 %v1014, %v1122
      %v1133 = vld [vmem:[%s421 + $0x4] sm:$0xf]
      %v1134 = vld [vmem:[%s421 + $0x8] sm:$0xf]
      %v1135 = vld [vmem:[%s421 + $0xc] sm:$0xf]
      %v1136 = vld [vmem:[%s421 + $0x10] sm:$0xf]
      %v1137 = vld [vmem:[%s421 + $0x14] sm:$0xf]
      %v1138 = vld [vmem:[%s421 + $0x18] sm:$0xf]
      %v1139 = vld [vmem:[%s421 + $0x1c] sm:$0xf]
      %v1140 = vld [vmem:[%s421 + $0x20] sm:$0xf]
      %s1141 = scalar_lea.vmem %s1, 16
      %v1142 = vld [vmem:[%s1141] sm:$0x3]
      %v1151 = vunpack.c.l.b16 %v1133
      %v1152 = vunpack.c.l.b16 %v1134
      %v1153 = vunpack.c.l.b16 %v1135
      %v1154 = vunpack.c.l.b16 %v1136
      %v1155 = vunpack.c.l.b16 %v1137
      %v1156 = vunpack.c.l.b16 %v1138
      %v1157 = vunpack.c.l.b16 %v1139
      %v1158 = vunpack.c.l.b16 %v1140
      %v1159 = vpack.c.b16 %v1152, %v1151
      %v1160 = vpack.c.b16 %v1154, %v1153
      %v1161 = vpack.c.b16 %v1156, %v1155
      %v1162 = vpack.c.b16 %v1158, %v1157
      %v1164 = vsel %vm239, %v1159, 0
      %v1167 = vsel %vm239, %v1160, 0
      %v1170 = vsel %vm239, %v1161, 0
      %v1173 = vsel %vm239, %v1162, 0
      %v1176 = vsel %vm252, %v1142, 0
      %1178 = vmatprep.subr.bf16.mxu0 0
      %1179 = vmatpush1.bf16.msra.mxu0 0
      %1180 = vmatprep.subr.bf16.mxu0 0
      %1181 = vmatpush1.bf16.msra.mxu0 0
      %1182 = vmatprep.subr.bf16.mxu0 0
      %1183 = vmatpush1.bf16.msra.mxu0 0
      %1184 = vmatprep.subr.bf16.mxu0 0
      %1185 = vmatpush1.bf16.msra.mxu0 0
      %1186 = vmatprep.subr.bf16.mxu0 0
      %1187 = vmatpush1.bf16.msra.mxu0 0
      %1188 = vmatprep.subr.bf16.mxu0 0
      %1189 = vmatpush1.bf16.msra.mxu0 0
      %1190 = vmatprep.subr.bf16.mxu0 0
      %1191 = vmatpush1.bf16.msra.mxu0 0
      %1192 = vmatprep.subr.bf16.mxu0 0
      %1193 = vmatpush1.bf16.msra.mxu0 %v1176
      %1194 = vmatprep.subr.bf16.mxu0 0
      %1195 = vmatpush2.bf16.msra.mxu0 0
      %1196 = vmatprep.subr.bf16.mxu0 0
      %1197 = vmatpush2.bf16.msra.mxu0 0
      %1198 = vmatprep.subr.bf16.mxu0 0
      %1199 = vmatpush2.bf16.msra.mxu0 0
      %1200 = vmatprep.subr.bf16.mxu0 0
      %1201 = vmatpush2.bf16.msra.mxu0 0
      %1202 = vmatprep.subr.bf16.mxu0 0
      %1203 = vmatpush2.bf16.msra.mxu0 0
      %1204 = vmatprep.subr.bf16.mxu0 0
      %1205 = vmatpush2.bf16.msra.mxu0 0
      %1206 = vmatprep.subr.bf16.mxu0 0
      %1207 = vmatpush2.bf16.msra.mxu0 0
      %1208 = vmatprep.subr.bf16.mxu0 0
      %1209 = vmatpush2.bf16.msra.mxu0 0
      %1210 = vmatprep.mubr.bf16.mxu0 0
      %1211 = vmatmul.mubr.bf16.gmra.mxu0 %v1164
      %v1212 = vpop.f32.mrf.mxu0
      %v1213 = vadd.f32 0.0, %v1212
      %v1214 = vpop.f32.mrf.mxu0
      %v1215 = vpop.f32.mrf.mxu0
      %v1216 = vadd.f32 0.0, %v1215
      %v1217 = vpop.f32.mrf.mxu0
      %1218 = vmatprep.mubr.bf16.mxu0 0
      %1219 = vmatmul.mubr.bf16.gmra.mxu0 %v1167
      %v1220 = vpop.f32.mrf.mxu0
      %v1221 = vadd.f32 0.0, %v1220
      %v1222 = vpop.f32.mrf.mxu0
      %v1223 = vpop.f32.mrf.mxu0
      %v1224 = vadd.f32 0.0, %v1223
      %v1225 = vpop.f32.mrf.mxu0
      %1226 = vmatprep.mubr.bf16.mxu0 0
      %1227 = vmatmul.mubr.bf16.gmra.mxu0 %v1170
      %v1228 = vpop.f32.mrf.mxu0
      %v1229 = vadd.f32 0.0, %v1228
      %v1230 = vpop.f32.mrf.mxu0
      %v1231 = vpop.f32.mrf.mxu0
      %v1232 = vadd.f32 0.0, %v1231
      %v1233 = vpop.f32.mrf.mxu0
      %1234 = vmatprep.mubr.bf16.mxu0 0
      %1235 = vmatmul.mubr.bf16.gmra.mxu0 %v1173
      %v1236 = vpop.f32.mrf.mxu0
      %v1237 = vadd.f32 0.0, %v1236
      %v1238 = vpop.f32.mrf.mxu0
      %v1239 = vpop.f32.mrf.mxu0
      %v1240 = vadd.f32 0.0, %v1239
      %v1241 = vpop.f32.mrf.mxu0
      %1242 = vdwg.mxu0
      %v1243 = vadd.f32 %v1125, %v1213
      %v1244 = vadd.f32 %v1126, %v1216
      %v1245 = vadd.f32 %v1127, %v1221
      %v1246 = vadd.f32 %v1128, %v1224
      %v1247 = vadd.f32 %v1129, %v1229
      %v1248 = vadd.f32 %v1130, %v1232
      %v1249 = vadd.f32 %v1131, %v1237
      %v1250 = vadd.f32 %v1132, %v1240
      %v1251 = vld [vmem:[%s2] sm:$0x1]
      %v1253 = vlaneseq
      %v1254 = vshrl.u32 %v1253, 7
      %v1255 = vsub.s32 0, %v1254
      %v1256 = vrot.slane %v1251, %v1255
      %v1258 = vmul.f32 %v1243, %v1256
      %v1259 = vmul.f32 %v1244, %v1256
      %v1260 = vmul.f32 %v1245, %v1256
      %v1261 = vmul.f32 %v1246, %v1256
      %v1262 = vmul.f32 %v1247, %v1256
      %v1263 = vmul.f32 %v1248, %v1256
      %v1264 = vmul.f32 %v1249, %v1256
      %v1265 = vmul.f32 %v1250, %v1256
      %v1266 = vld [vmem:[%s3] sm:$0x1]
      %v1268 = vlaneseq
      %v1269 = vshrl.u32 %v1268, 7
      %v1270 = vsub.s32 0, %v1269
      %v1271 = vrot.slane %v1266, %v1270
      %v1273 = vadd.f32 %v1258, %v1271
      %v1274 = vadd.f32 %v1259, %v1271
      %v1275 = vadd.f32 %v1260, %v1271
      %v1276 = vadd.f32 %v1261, %v1271
      %v1277 = vadd.f32 %v1262, %v1271
      %v1278 = vadd.f32 %v1263, %v1271
      %v1279 = vadd.f32 %v1264, %v1271
      %v1280 = vadd.f32 %v1265, %v1271
      %v1281 = vmul.f32 %v1273, 0.01
      %v1282 = vmul.f32 %v1274, 0.01
      %v1283 = vmul.f32 %v1275, 0.01
      %v1284 = vmul.f32 %v1276, 0.01
      %v1285 = vmul.f32 %v1277, 0.01
      %v1286 = vmul.f32 %v1278, 0.01
      %v1287 = vmul.f32 %v1279, 0.01
      %v1288 = vmul.f32 %v1280, 0.01
      %v1289 = vmax.f32 %v1273, %v1281
      %v1290 = vmax.f32 %v1274, %v1282
      %v1291 = vmax.f32 %v1275, %v1283
      %v1292 = vmax.f32 %v1276, %v1284
      %v1293 = vmax.f32 %v1277, %v1285
      %v1294 = vmax.f32 %v1278, %v1286
      %v1295 = vmax.f32 %v1279, %v1287
      %v1296 = vmax.f32 %v1280, %v1288
      %v1297 = vpack.c.bf16 %v1290, %v1289
      %v1298 = vpack.c.bf16 %v1292, %v1291
      %v1299 = vpack.c.bf16 %v1294, %v1293
      %v1300 = vpack.c.bf16 %v1296, %v1295
      %v1305 = vunpack.c.l.b16 %v1297
      %v1306 = vunpack.c.h.b16 %v1297
      %v1307 = vunpack.c.l.b16 %v1298
      %v1308 = vunpack.c.h.b16 %v1298
      %v1309 = vunpack.c.l.b16 %v1299
      %v1310 = vunpack.c.h.b16 %v1299
      %v1311 = vunpack.c.l.b16 %v1300
      %v1312 = vunpack.c.h.b16 %v1300
      %v1313 = vpack.c.b16 %v1305, %v1305
      %v1314 = vpack.c.b16 %v1306, %v1306
      %v1315 = vpack.c.b16 %v1307, %v1307
      %v1316 = vpack.c.b16 %v1308, %v1308
      %v1317 = vpack.c.b16 %v1309, %v1309
      %v1318 = vpack.c.b16 %v1310, %v1310
      %v1319 = vpack.c.b16 %v1311, %v1311
      %v1320 = vpack.c.b16 %v1312, %v1312
      %vm1329 = vcmask 60416
      %1330 = vst.msk [vmem:[%s197] sm:$0xf] %vm1329, %v1313
      %1331 = vst.msk [vmem:[%s197 + $0x4] sm:$0xf] %vm1329, %v1314
      %1332 = vst.msk [vmem:[%s197 + $0x8] sm:$0xf] %vm1329, %v1315
      %1333 = vst.msk [vmem:[%s197 + $0xc] sm:$0xf] %vm1329, %v1316
      %1334 = vst.msk [vmem:[%s197 + $0x10] sm:$0xf] %vm1329, %v1317
      %1335 = vst.msk [vmem:[%s197 + $0x14] sm:$0xf] %vm1329, %v1318
      %1336 = vst.msk [vmem:[%s197 + $0x18] sm:$0xf] %vm1329, %v1319
      %1337 = vst.msk [vmem:[%s197 + $0x1c] sm:$0xf] %vm1329, %v1320
      %p1338 = scmp.lt.s32.totalorder %s15, 1
      %s1339 = scalar_select %p1338, %s15, 1
      %s1340 = smul.addr %s1339, 8
      %s1341 = smul.addr %s1340, 4
      %s1342 = scalar_lea.vmem %s4, %s1341
      // Predicated region
      $region37: #{forward.4} parent=35 // pred_check
        %p1343 = pneg %p122
      $region38: #{forward.4} parent=35 // pred_check_branch
        %1345 = sbr.rel (%p1343) target = $region40
      $region39: #{forward.4} parent=35 // pred_region
        _
      $region40: #{forward.4} parent=35 // pred_fallthru
        _
    $region36: #{forward.4} parent=5 // pred_fallthru
      _
    %p1346 = scmp.le.s32.totalorder 2, %s10
    // Predicated region
    $region41: #{forward.4} parent=5 // pred_check
      %p1347 = pneg %p1346
    $region42: #{forward.4} parent=5 // pred_check_branch
      %1349 = sbr.rel (%p1347) target = $region44
    $region43: #{forward.4} parent=5 // pred_region
      %s1350 = ssub.s32 %s10, 2
      // Predicated region
      $region45: #{forward.4} parent=43 // pred_check
        %p1351 = pneg %p128
      $region46: #{forward.4} parent=43 // pred_check_branch
        %1353 = sbr.rel (%p1351) target = $region48
      $region47: #{forward.4} parent=43 // pred_region
        %p1354 = scmp.lt.s32.totalorder %s16, 1
        %s1355 = scalar_select %p1354, %s16, 1
        %s1356 = smul.addr %s1355, 8
        %s1357 = smul.addr %s1356, 4
        %s1358 = scalar_lea.vmem %s4, %s1357
      $region48: #{forward.4} parent=43 // pred_fallthru
        _
    $region44: #{forward.4} parent=5 // pred_fallthru
      _
  $region6: #{forward.4} parent=0 // loop_footer
    %s14 = sadd.s32 1, %s10
  $region7: #{forward.4} parent=0 // loop_footer_branch
    %9 = sbr.rel target = $region3
  $region8: #{forward.4} parent=0 // loop_exit
    _

// kernel: forward.6
$region0: #{forward.6}
  #allocation0 [shape = 'u32[]', space=smem, size = 0x4, offset = 0x4, fixed_abs, tag = 'smem constant byte address 0x4 - core index']
  #allocation1 [shape = 'u32[144,128]{1,0:T(1,128)}', space=vmem, size = 0x12000, scoped, tag = 'internal scratch']
  %s0 = inlined_call_operand.vmem [shape: bf16[2,6,6,16], index: 0, kind: input, shape index: {}]
  %s1 = inlined_call_operand.vmem [shape: bf16[9,16,32], index: 1, kind: input, shape index: {}]
  %s2 = inlined_call_operand.vmem [shape: f32[1,32], index: 2, kind: input, shape index: {}]
  %s3 = inlined_call_operand.vmem [shape: f32[1,32], index: 3, kind: input, shape index: {}]
  %s4 = inlined_call_operand.vmem [shape: bf16[2,4,32], index: 4, kind: output, shape index: {}]
  %s5 = sld [smem:[#allocation0]]
  $region49: #{forward.6} parent=0
    _
  %s7 = ssub.s32 1, %s5
  %s8 = scalar_select 0, %s7, %s5
  loop: start=0, step=1, limit=4
  $region2: #{forward.6} parent=0 // loop_pre_header
    _
  $region3: #{forward.6} parent=0 // loop_header
    %s10 = sphi 0, %s14
    %p11 = scmp.ge.s32.totalorder %s10, 4
    %s20 = sphi 0, %s22
    %s23 = sphi 0, %s20
    %s24 = sphi 0, %s23
    %s40 = sphi 0, %s24
    %s44 = sphi 0, %s44
    %s46 = sphi 0, %s44
    %s47 = sphi 0, %s46
    %s61 = sphi 0, %s47
    %s65 = sphi 0, %s65
    %s67 = sphi 0, %s65
    %s68 = sphi 0, %s67
    %s82 = sphi 0, %s68
    %s86 = sphi 0, %s86
    %s88 = sphi 0, %s86
    %s89 = sphi 0, %s88
    %s103 = sphi 0, %s89
    %s109 = sphi 0, %s111
    %s112 = sphi 0, %s109
    %s113 = sphi 0, %s112
    %s129 = sphi 0, %s113
  $region4: #{forward.6} parent=0 // loop_header_branch
    %13 = sbr.rel (%p11) target = $region8
  $region5: #{forward.6} parent=0 // loop_body
    %s15 = ssub.s32 %s10, 1
    %s16 = ssub.s32 %s10, 2
    %s17 = sadd.s32 %s10, 1
    %s18 = ssub.s32 %s10, %s17
    %p19 = scmp.eq.s32.totalorder %s18, 0
    %s21 = sadd.s32 %s20, 1
    %s22 = scalar_select %p19, %s20, %s21
    %p25 = pneg %p19
    %p26 = scmp.eq.s32.totalorder %s10, 1
    %p27 = por %p25, %p26
    %p28 = scmp.ne.s32.totalorder %s20, %s23
    %p29 = scmp.eq.s32.totalorder %s10, 0
    %p30 = por %p28, %p29
    %p31 = scmp.ne.s32.totalorder %s20, %s23
    %p32 = scmp.eq.s32.totalorder %s15, 1
    %p33 = por %p31, %p32
    %p34 = scmp.ne.s32.totalorder %s23, %s24
    %p35 = scmp.eq.s32.totalorder %s15, 0
    %p36 = por %p34, %p35
    %p37 = scmp.ne.s32.totalorder %s23, %s24
    %p38 = scmp.eq.s32.totalorder %s16, 1
    %p39 = por %p37, %p38
    %p41 = scmp.ne.s32.totalorder %s24, %s40
    %p42 = scmp.eq.s32.totalorder %s16, 0
    %p43 = por %p41, %p42
    %s45 = sadd.s32 %s44, 1
    %p48 = scmp.eq.s32.totalorder %s10, 1
    %p49 = scmp.ne.s32.totalorder %s44, %s46
    %p50 = scmp.eq.s32.totalorder %s10, 0
    %p51 = por %p49, %p50
    %p52 = scmp.ne.s32.totalorder %s44, %s46
    %p53 = scmp.eq.s32.totalorder %s15, 1
    %p54 = por %p52, %p53
    %p55 = scmp.ne.s32.totalorder %s46, %s47
    %p56 = scmp.eq.s32.totalorder %s15, 0
    %p57 = por %p55, %p56
    %p58 = scmp.ne.s32.totalorder %s46, %s47
    %p59 = scmp.eq.s32.totalorder %s16, 1
    %p60 = por %p58, %p59
    %p62 = scmp.ne.s32.totalorder %s47, %s61
    %p63 = scmp.eq.s32.totalorder %s16, 0
    %p64 = por %p62, %p63
    %s66 = sadd.s32 %s65, 1
    %p69 = scmp.eq.s32.totalorder %s10, 1
    %p70 = scmp.ne.s32.totalorder %s65, %s67
    %p71 = scmp.eq.s32.totalorder %s10, 0
    %p72 = por %p70, %p71
    %p73 = scmp.ne.s32.totalorder %s65, %s67
    %p74 = scmp.eq.s32.totalorder %s15, 1
    %p75 = por %p73, %p74
    %p76 = scmp.ne.s32.totalorder %s67, %s68
    %p77 = scmp.eq.s32.totalorder %s15, 0
    %p78 = por %p76, %p77
    %p79 = scmp.ne.s32.totalorder %s67, %s68
    %p80 = scmp.eq.s32.totalorder %s16, 1
    %p81 = por %p79, %p80
    %p83 = scmp.ne.s32.totalorder %s68, %s82
    %p84 = scmp.eq.s32.totalorder %s16, 0
    %p85 = por %p83, %p84
    %s87 = sadd.s32 %s86, 1
    %p90 = scmp.eq.s32.totalorder %s10, 1
    %p91 = scmp.ne.s32.totalorder %s86, %s88
    %p92 = scmp.eq.s32.totalorder %s10, 0
    %p93 = por %p91, %p92
    %p94 = scmp.ne.s32.totalorder %s86, %s88
    %p95 = scmp.eq.s32.totalorder %s15, 1
    %p96 = por %p94, %p95
    %p97 = scmp.ne.s32.totalorder %s88, %s89
    %p98 = scmp.eq.s32.totalorder %s15, 0
    %p99 = por %p97, %p98
    %p100 = scmp.ne.s32.totalorder %s88, %s89
    %p101 = scmp.eq.s32.totalorder %s16, 1
    %p102 = por %p100, %p101
    %p104 = scmp.ne.s32.totalorder %s89, %s103
    %p105 = scmp.eq.s32.totalorder %s16, 0
    %p106 = por %p104, %p105
    %s107 = ssub.s32 %s10, %s17
    %p108 = scmp.eq.s32.totalorder %s107, 0
    %s110 = sadd.s32 %s109, 1
    %s111 = scalar_select %p108, %s109, %s110
    %p114 = pneg %p108
    %p115 = scmp.eq.s32.totalorder %s10, 1
    %p116 = por %p114, %p115
    %p117 = scmp.ne.s32.totalorder %s109, %s112
    %p118 = scmp.eq.s32.totalorder %s10, 0
    %p119 = por %p117, %p118
    %p120 = scmp.ne.s32.totalorder %s109, %s112
    %p121 = scmp.eq.s32.totalorder %s15, 1
    %p122 = por %p120, %p121
    %p123 = scmp.ne.s32.totalorder %s112, %s113
    %p124 = scmp.eq.s32.totalorder %s15, 0
    %p125 = por %p123, %p124
    %p126 = scmp.ne.s32.totalorder %s112, %s113
    %p127 = scmp.eq.s32.totalorder %s16, 1
    %p128 = por %p126, %p127
    %p130 = scmp.ne.s32.totalorder %s113, %s129
    %p131 = scmp.eq.s32.totalorder %s16, 0
    %p132 = por %p130, %p131
    %p133 = scmp.le.s32.totalorder 1, %s10
    %p134 = scmp.lt.s32.totalorder %s10, 3
    %p135 = pnand %p133, %p134
    %p136 = pneg %p135
    // Predicated region
    $region9: #{forward.6} parent=5 // pred_check
      _
    $region10: #{forward.6} parent=5 // pred_check_branch
      %138 = sbr.rel (%p135) target = $region12
    $region11: #{forward.6} parent=5 // pred_region
      %s139 = ssub.s32 %s10, 1
      // Predicated region
      $region13: #{forward.6} parent=11 // pred_check
        %p140 = pneg %p57
      $region14: #{forward.6} parent=11 // pred_check_branch
        %142 = sbr.rel (%p140) target = $region16
      $region15: #{forward.6} parent=11 // pred_region
        _
      $region16: #{forward.6} parent=11 // pred_fallthru
        _
      // Predicated region
      $region17: #{forward.6} parent=11 // pred_check
        %p143 = pneg %p78
      $region18: #{forward.6} parent=11 // pred_check_branch
        %145 = sbr.rel (%p143) target = $region20
      $region19: #{forward.6} parent=11 // pred_region
        _
      $region20: #{forward.6} parent=11 // pred_fallthru
        _
      // Predicated region
      $region21: #{forward.6} parent=11 // pred_check
        %p146 = pneg %p99
      $region22: #{forward.6} parent=11 // pred_check_branch
        %148 = sbr.rel (%p146) target = $region24
      $region23: #{forward.6} parent=11 // pred_region
        _
      $region24: #{forward.6} parent=11 // pred_fallthru
        _
    $region12: #{forward.6} parent=5 // pred_fallthru
      _
    %p149 = scmp.lt.s32.totalorder %s10, 2
    // Predicated region
    $region25: #{forward.6} parent=5 // pred_check
      %p150 = pneg %p149
    $region26: #{forward.6} parent=5 // pred_check_branch
      %152 = sbr.rel (%p150) target = $region28
    $region27: #{forward.6} parent=5 // pred_region
      // Predicated region
      $region29: #{forward.6} parent=27 // pred_check
        %p153 = pneg %p30
      $region30: #{forward.6} parent=27 // pred_check_branch
        %155 = sbr.rel (%p153) target = $region32
      $region31: #{forward.6} parent=27 // pred_region
        %p156 = scmp.lt.s32.totalorder %s10, 1
        %s157 = scalar_select %p156, %s10, 1
        %s158 = smul.addr %s157, 6
        %s159 = smul.addr %s158, 4
        %s160 = scalar_lea.vmem %s0, %s159
      $region32: #{forward.6} parent=27 // pred_fallthru
        _
    $region28: #{forward.6} parent=5 // pred_fallthru
      _
    %p161 = scmp.le.s32.totalorder 1, %s10
    %p162 = scmp.lt.s32.totalorder %s10, 3
    %p163 = pnand %p161, %p162
    %p164 = pneg %p163
    // Predicated region
    $region33: #{forward.6} parent=5 // pred_check
      _
    $region34: #{forward.6} parent=5 // pred_check_branch
      %166 = sbr.rel (%p163) target = $region36
    $region35: #{forward.6} parent=5 // pred_region
      %s167 = ssub.s32 %s10, 1
      %p168 = scmp.lt.s32.totalorder %s15, 1
      %s169 = scalar_select %p168, %s15, 1
      %s170 = smul.addr %s169, 6
      %s171 = smul.addr %s170, 4
      %s172 = scalar_lea.vmem %s0, %s171
      %p173 = pneg %p36
      %p174 = pneg %p33
      %p175 = pneg %p57
      %p176 = pneg %p54
      %p177 = pneg %p78
      %p178 = pneg %p75
      %p179 = pneg %p99
      %p180 = pneg %p96
      %p181 = pneg %p125
      %p182 = pneg %p122
      %p183 = scmp.lt.s32.totalorder %s15, 1
      %s184 = scalar_select %p183, %s15, 1
      %s185 = smul.addr %s184, 2
      %s186 = scalar_lea.vmem %s4, %s185
      %p187 = scmp.lt.s32.totalorder %s15, 1
      %s188 = scalar_select %p187, %s15, 1
      %s189 = smul.addr %s188, 6
      %s190 = smul.addr %s189, 4
      %s191 = scalar_lea.vmem %s0, %s190
      %p192 = scmp.lt.s32.totalorder %s15, 1
      %s193 = scalar_select %p192, %s15, 1
      %s194 = smul.addr %s193, 2
      %s195 = scalar_lea.vmem %s4, %s194
      %v197 = vld [vmem:[%s191] sm:$0x3]
      %v198 = vld [vmem:[%s1] sm:$0xf]
      %v199 = vld [vmem:[%s1 + $0x4] sm:$0xf]
      %s200 = scalar_lea.vmem %s191, 4
      %v201 = vld [vmem:[%s200] sm:$0x3]
      %s202 = scalar_lea.vmem %s1, 8
      %v203 = vld [vmem:[%s202] sm:$0xf]
      %v204 = vld [vmem:[%s202 + $0x4] sm:$0xf]
      %v207 = vunpack.c.l.b16 %v203
      %v208 = vunpack.c.l.b16 %v204
      %v209 = vpack.c.b16 %v208, %v207
      %vm211 = vcmask 130048
      %v213 = vsel %vm211, %v201, 0
      %215 = vmatprep.subr.bf16.mxu0 0
      %216 = vmatpush1.bf16.msra.mxu0 0
      %217 = vmatprep.subr.bf16.mxu0 0
      %218 = vmatpush1.bf16.msra.mxu0 0
      %219 = vmatprep.subr.bf16.mxu0 0
      %220 = vmatpush1.bf16.msra.mxu0 0
      %221 = vmatprep.subr.bf16.mxu0 0
      %222 = vmatpush1.bf16.msra.mxu0 0
      %223 = vmatprep.subr.bf16.mxu0 0
      %224 = vmatpush1.bf16.msra.mxu0 0
      %225 = vmatprep.subr.bf16.mxu0 0
      %226 = vmatpush1.bf16.msra.mxu0 0
      %227 = vmatprep.subr.bf16.mxu0 0
      %228 = vmatpush1.bf16.msra.mxu0 0
      %229 = vmatprep.subr.bf16.mxu0 0
      %230 = vmatpush1.bf16.msra.mxu0 %v209
      %231 = vmatprep.subr.bf16.mxu0 0
      %232 = vmatpush2.bf16.msra.mxu0 0
      %233 = vmatprep.subr.bf16.mxu0 0
      %234 = vmatpush2.bf16.msra.mxu0 0
      %235 = vmatprep.subr.bf16.mxu0 0
      %236 = vmatpush2.bf16.msra.mxu0 0
      %237 = vmatprep.subr.bf16.mxu0 0
      %238 = vmatpush2.bf16.msra.mxu0 0
      %239 = vmatprep.subr.bf16.mxu0 0
      %240 = vmatpush2.bf16.msra.mxu0 0
      %241 = vmatprep.subr.bf16.mxu0 0
      %242 = vmatpush2.bf16.msra.mxu0 0
      %243 = vmatprep.subr.bf16.mxu0 0
      %244 = vmatpush2.bf16.msra.mxu0 0
      %245 = vmatprep.subr.bf16.mxu0 0
      %246 = vmatpush2.bf16.msra.mxu0 0
      %247 = vmatprep.mubr.bf16.mxu0 0
      %248 = vmatmul.mubr.bf16.gmra.mxu0 %v213
      %v249 = vpop.f32.mrf.mxu0
      %v250 = vadd.f32 0.0, %v249
      %v251 = vpop.f32.mrf.mxu0
      %v252 = vpop.f32.mrf.mxu0
      %v253 = vpop.f32.mrf.mxu0
      %254 = vdwg.mxu0
      %v257 = vunpack.c.l.b16 %v198
      %v258 = vunpack.c.l.b16 %v199
      %v259 = vpack.c.b16 %v258, %v257
      %v262 = vsel %vm211, %v197, 0
      %264 = vmatprep.subr.bf16.mxu0 0
      %265 = vmatpush1.bf16.msra.mxu0 0
      %266 = vmatprep.subr.bf16.mxu0 0
      %267 = vmatpush1.bf16.msra.mxu0 0
      %268 = vmatprep.subr.bf16.mxu0 0
      %269 = vmatpush1.bf16.msra.mxu0 0
      %270 = vmatprep.subr.bf16.mxu0 0
      %271 = vmatpush1.bf16.msra.mxu0 0
      %272 = vmatprep.subr.bf16.mxu0 0
      %273 = vmatpush1.bf16.msra.mxu0 0
      %274 = vmatprep.subr.bf16.mxu0 0
      %275 = vmatpush1.bf16.msra.mxu0 0
      %276 = vmatprep.subr.bf16.mxu0 0
      %277 = vmatpush1.bf16.msra.mxu0 0
      %278 = vmatprep.subr.bf16.mxu0 0
      %279 = vmatpush1.bf16.msra.mxu0 %v259
      %280 = vmatprep.subr.bf16.mxu0 0
      %281 = vmatpush2.bf16.msra.mxu0 0
      %282 = vmatprep.subr.bf16.mxu0 0
      %283 = vmatpush2.bf16.msra.mxu0 0
      %284 = vmatprep.subr.bf16.mxu0 0
      %285 = vmatpush2.bf16.msra.mxu0 0
      %286 = vmatprep.subr.bf16.mxu0 0
      %287 = vmatpush2.bf16.msra.mxu0 0
      %288 = vmatprep.subr.bf16.mxu0 0
      %289 = vmatpush2.bf16.msra.mxu0 0
      %290 = vmatprep.subr.bf16.mxu0 0
      %291 = vmatpush2.bf16.msra.mxu0 0
      %292 = vmatprep.subr.bf16.mxu0 0
      %293 = vmatpush2.bf16.msra.mxu0 0
      %294 = vmatprep.subr.bf16.mxu0 0
      %295 = vmatpush2.bf16.msra.mxu0 0
      %296 = vmatprep.mubr.bf16.mxu0 0
      %297 = vmatmul.mubr.bf16.gmra.mxu0 %v262
      %v298 = vpop.f32.mrf.mxu0
      %v299 = vadd.f32 %v250, %v298
      %v300 = vpop.f32.mrf.mxu0
      %v301 = vpop.f32.mrf.mxu0
      %v302 = vpop.f32.mrf.mxu0
      %303 = vdwg.mxu0
      %s304 = scalar_lea.vmem %s191, 8
      %v305 = vld [vmem:[%s304] sm:$0x3]
      %s306 = scalar_lea.vmem %s1, 16
      %v307 = vld [vmem:[%s306] sm:$0xf]
      %v308 = vld [vmem:[%s306 + $0x4] sm:$0xf]
      %v311 = vunpack.c.l.b16 %v307
      %v312 = vunpack.c.l.b16 %v308
      %v313 = vpack.c.b16 %v312, %v311
      %v316 = vsel %vm211, %v305, 0
      %318 = vmatprep.subr.bf16.mxu0 0
      %319 = vmatpush1.bf16.msra.mxu0 0
      %320 = vmatprep.subr.bf16.mxu0 0
      %321 = vmatpush1.bf16.msra.mxu0 0
      %322 = vmatprep.subr.bf16.mxu0 0
      %323 = vmatpush1.bf16.msra.mxu0 0
      %324 = vmatprep.subr.bf16.mxu0 0
      %325 = vmatpush1.bf16.msra.mxu0 0
      %326 = vmatprep.subr.bf16.mxu0 0
      %327 = vmatpush1.bf16.msra.mxu0 0
      %328 = vmatprep.subr.bf16.mxu0 0
      %329 = vmatpush1.bf16.msra.mxu0 0
      %330 = vmatprep.subr.bf16.mxu0 0
      %331 = vmatpush1.bf16.msra.mxu0 0
      %332 = vmatprep.subr.bf16.mxu0 0
      %333 = vmatpush1.bf16.msra.mxu0 %v313
      %334 = vmatprep.subr.bf16.mxu0 0
      %335 = vmatpush2.bf16.msra.mxu0 0
      %336 = vmatprep.subr.bf16.mxu0 0
      %337 = vmatpush2.bf16.msra.mxu0 0
      %338 = vmatprep.subr.bf16.mxu0 0
      %339 = vmatpush2.bf16.msra.mxu0 0
      %340 = vmatprep.subr.bf16.mxu0 0
      %341 = vmatpush2.bf16.msra.mxu0 0
      %342 = vmatprep.subr.bf16.mxu0 0
      %343 = vmatpush2.bf16.msra.mxu0 0
      %344 = vmatprep.subr.bf16.mxu0 0
      %345 = vmatpush2.bf16.msra.mxu0 0
      %346 = vmatprep.subr.bf16.mxu0 0
      %347 = vmatpush2.bf16.msra.mxu0 0
      %348 = vmatprep.subr.bf16.mxu0 0
      %349 = vmatpush2.bf16.msra.mxu0 0
      %350 = vmatprep.mubr.bf16.mxu0 0
      %351 = vmatmul.mubr.bf16.gmra.mxu0 %v316
      %v352 = vpop.f32.mrf.mxu0
      %v353 = vadd.f32 0.0, %v352
      %v354 = vpop.f32.mrf.mxu0
      %v355 = vpop.f32.mrf.mxu0
      %v356 = vpop.f32.mrf.mxu0
      %357 = vdwg.mxu0
      %v358 = vadd.f32 %v299, %v353
      %s359 = scalar_lea.vmem %s191, 12
      %v360 = vld [vmem:[%s359] sm:$0x3]
      %s361 = scalar_lea.vmem %s1, 24
      %v362 = vld [vmem:[%s361] sm:$0xf]
      %v363 = vld [vmem:[%s361 + $0x4] sm:$0xf]
      %v366 = vunpack.c.l.b16 %v362
      %v367 = vunpack.c.l.b16 %v363
      %v368 = vpack.c.b16 %v367, %v366
      %v371 = vsel %vm211, %v360, 0
      %373 = vmatprep.subr.bf16.mxu0 0
      %374 = vmatpush1.bf16.msra.mxu0 0
      %375 = vmatprep.subr.bf16.mxu0 0
      %376 = vmatpush1.bf16.msra.mxu0 0
      %377 = vmatprep.subr.bf16.mxu0 0
      %378 = vmatpush1.bf16.msra.mxu0 0
      %379 = vmatprep.subr.bf16.mxu0 0
      %380 = vmatpush1.bf16.msra.mxu0 0
      %381 = vmatprep.subr.bf16.mxu0 0
      %382 = vmatpush1.bf16.msra.mxu0 0
      %383 = vmatprep.subr.bf16.mxu0 0
      %384 = vmatpush1.bf16.msra.mxu0 0
      %385 = vmatprep.subr.bf16.mxu0 0
      %386 = vmatpush1.bf16.msra.mxu0 0
      %387 = vmatprep.subr.bf16.mxu0 0
      %388 = vmatpush1.bf16.msra.mxu0 %v368
      %389 = vmatprep.subr.bf16.mxu0 0
      %390 = vmatpush2.bf16.msra.mxu0 0
      %391 = vmatprep.subr.bf16.mxu0 0
      %392 = vmatpush2.bf16.msra.mxu0 0
      %393 = vmatprep.subr.bf16.mxu0 0
      %394 = vmatpush2.bf16.msra.mxu0 0
      %395 = vmatprep.subr.bf16.mxu0 0
      %396 = vmatpush2.bf16.msra.mxu0 0
      %397 = vmatprep.subr.bf16.mxu0 0
      %398 = vmatpush2.bf16.msra.mxu0 0
      %399 = vmatprep.subr.bf16.mxu0 0
      %400 = vmatpush2.bf16.msra.mxu0 0
      %401 = vmatprep.subr.bf16.mxu0 0
      %402 = vmatpush2.bf16.msra.mxu0 0
      %403 = vmatprep.subr.bf16.mxu0 0
      %404 = vmatpush2.bf16.msra.mxu0 0
      %405 = vmatprep.mubr.bf16.mxu0 0
      %406 = vmatmul.mubr.bf16.gmra.mxu0 %v371
      %v407 = vpop.f32.mrf.mxu0
      %v408 = vadd.f32 0.0, %v407
      %v409 = vpop.f32.mrf.mxu0
      %v410 = vpop.f32.mrf.mxu0
      %v411 = vpop.f32.mrf.mxu0
      %412 = vdwg.mxu0
      %v413 = vadd.f32 %v358, %v408
      %s414 = scalar_lea.vmem %s191, 16
      %v415 = vld [vmem:[%s414] sm:$0x3]
      %s416 = scalar_lea.vmem %s1, 32
      %v417 = vld [vmem:[%s416] sm:$0xf]
      %v418 = vld [vmem:[%s416 + $0x4] sm:$0xf]
      %v421 = vunpack.c.l.b16 %v417
      %v422 = vunpack.c.l.b16 %v418
      %v423 = vpack.c.b16 %v422, %v421
      %v426 = vsel %vm211, %v415, 0
      %428 = vmatprep.subr.bf16.mxu0 0
      %429 = vmatpush1.bf16.msra.mxu0 0
      %430 = vmatprep.subr.bf16.mxu0 0
      %431 = vmatpush1.bf16.msra.mxu0 0
      %432 = vmatprep.subr.bf16.mxu0 0
      %433 = vmatpush1.bf16.msra.mxu0 0
      %434 = vmatprep.subr.bf16.mxu0 0
      %435 = vmatpush1.bf16.msra.mxu0 0
      %436 = vmatprep.subr.bf16.mxu0 0
      %437 = vmatpush1.bf16.msra.mxu0 0
      %438 = vmatprep.subr.bf16.mxu0 0
      %439 = vmatpush1.bf16.msra.mxu0 0
      %440 = vmatprep.subr.bf16.mxu0 0
      %441 = vmatpush1.bf16.msra.mxu0 0
      %442 = vmatprep.subr.bf16.mxu0 0
      %443 = vmatpush1.bf16.msra.mxu0 %v423
      %444 = vmatprep.subr.bf16.mxu0 0
      %445 = vmatpush2.bf16.msra.mxu0 0
      %446 = vmatprep.subr.bf16.mxu0 0
      %447 = vmatpush2.bf16.msra.mxu0 0
      %448 = vmatprep.subr.bf16.mxu0 0
      %449 = vmatpush2.bf16.msra.mxu0 0
      %450 = vmatprep.subr.bf16.mxu0 0
      %451 = vmatpush2.bf16.msra.mxu0 0
      %452 = vmatprep.subr.bf16.mxu0 0
      %453 = vmatpush2.bf16.msra.mxu0 0
      %454 = vmatprep.subr.bf16.mxu0 0
      %455 = vmatpush2.bf16.msra.mxu0 0
      %456 = vmatprep.subr.bf16.mxu0 0
      %457 = vmatpush2.bf16.msra.mxu0 0
      %458 = vmatprep.subr.bf16.mxu0 0
      %459 = vmatpush2.bf16.msra.mxu0 0
      %460 = vmatprep.mubr.bf16.mxu0 0
      %461 = vmatmul.mubr.bf16.gmra.mxu0 %v426
      %v462 = vpop.f32.mrf.mxu0
      %v463 = vadd.f32 0.0, %v462
      %v464 = vpop.f32.mrf.mxu0
      %v465 = vpop.f32.mrf.mxu0
      %v466 = vpop.f32.mrf.mxu0
      %467 = vdwg.mxu0
      %v468 = vadd.f32 %v413, %v463
      %s469 = scalar_lea.vmem %s191, 20
      %v470 = vld [vmem:[%s469] sm:$0x3]
      %s471 = scalar_lea.vmem %s1, 40
      %v472 = vld [vmem:[%s471] sm:$0xf]
      %v473 = vld [vmem:[%s471 + $0x4] sm:$0xf]
      %v476 = vunpack.c.l.b16 %v472
      %v477 = vunpack.c.l.b16 %v473
      %v478 = vpack.c.b16 %v477, %v476
      %v481 = vsel %vm211, %v470, 0
      %483 = vmatprep.subr.bf16.mxu0 0
      %484 = vmatpush1.bf16.msra.mxu0 0
      %485 = vmatprep.subr.bf16.mxu0 0
      %486 = vmatpush1.bf16.msra.mxu0 0
      %487 = vmatprep.subr.bf16.mxu0 0
      %488 = vmatpush1.bf16.msra.mxu0 0
      %489 = vmatprep.subr.bf16.mxu0 0
      %490 = vmatpush1.bf16.msra.mxu0 0
      %491 = vmatprep.subr.bf16.mxu0 0
      %492 = vmatpush1.bf16.msra.mxu0 0
      %493 = vmatprep.subr.bf16.mxu0 0
      %494 = vmatpush1.bf16.msra.mxu0 0
      %495 = vmatprep.subr.bf16.mxu0 0
      %496 = vmatpush1.bf16.msra.mxu0 0
      %497 = vmatprep.subr.bf16.mxu0 0
      %498 = vmatpush1.bf16.msra.mxu0 %v478
      %499 = vmatprep.subr.bf16.mxu0 0
      %500 = vmatpush2.bf16.msra.mxu0 0
      %501 = vmatprep.subr.bf16.mxu0 0
      %502 = vmatpush2.bf16.msra.mxu0 0
      %503 = vmatprep.subr.bf16.mxu0 0
      %504 = vmatpush2.bf16.msra.mxu0 0
      %505 = vmatprep.subr.bf16.mxu0 0
      %506 = vmatpush2.bf16.msra.mxu0 0
      %507 = vmatprep.subr.bf16.mxu0 0
      %508 = vmatpush2.bf16.msra.mxu0 0
      %509 = vmatprep.subr.bf16.mxu0 0
      %510 = vmatpush2.bf16.msra.mxu0 0
      %511 = vmatprep.subr.bf16.mxu0 0
      %512 = vmatpush2.bf16.msra.mxu0 0
      %513 = vmatprep.subr.bf16.mxu0 0
      %514 = vmatpush2.bf16.msra.mxu0 0
      %515 = vmatprep.mubr.bf16.mxu0 0
      %516 = vmatmul.mubr.bf16.gmra.mxu0 %v481
      %v517 = vpop.f32.mrf.mxu0
      %v518 = vadd.f32 0.0, %v517
      %v519 = vpop.f32.mrf.mxu0
      %v520 = vpop.f32.mrf.mxu0
      %v521 = vpop.f32.mrf.mxu0
      %522 = vdwg.mxu0
      %v523 = vadd.f32 %v468, %v518
      %v524 = vld [vmem:[%s191] sm:$0x6]
      %s525 = scalar_lea.vmem %s1, 48
      %v526 = vld [vmem:[%s525] sm:$0xf]
      %v527 = vld [vmem:[%s525 + $0x4] sm:$0xf]
      %v529 = vunpack.c.l.b16 %v524
      %v530 = vpack.c.b16 %v529, %v529
      %v531 = vrot.slane %v530, 1
      %v534 = vunpack.c.l.b16 %v526
      %v535 = vunpack.c.l.b16 %v527
      %v536 = vpack.c.b16 %v535, %v534
      %v539 = vsel %vm211, %v531, 0
      %541 = vmatprep.subr.bf16.mxu0 0
      %542 = vmatpush1.bf16.msra.mxu0 0
      %543 = vmatprep.subr.bf16.mxu0 0
      %544 = vmatpush1.bf16.msra.mxu0 0
      %545 = vmatprep.subr.bf16.mxu0 0
      %546 = vmatpush1.bf16.msra.mxu0 0
      %547 = vmatprep.subr.bf16.mxu0 0
      %548 = vmatpush1.bf16.msra.mxu0 0
      %549 = vmatprep.subr.bf16.mxu0 0
      %550 = vmatpush1.bf16.msra.mxu0 0
      %551 = vmatprep.subr.bf16.mxu0 0
      %552 = vmatpush1.bf16.msra.mxu0 0
      %553 = vmatprep.subr.bf16.mxu0 0
      %554 = vmatpush1.bf16.msra.mxu0 0
      %555 = vmatprep.subr.bf16.mxu0 0
      %556 = vmatpush1.bf16.msra.mxu0 %v536
      %557 = vmatprep.subr.bf16.mxu0 0
      %558 = vmatpush2.bf16.msra.mxu0 0
      %559 = vmatprep.subr.bf16.mxu0 0
      %560 = vmatpush2.bf16.msra.mxu0 0
      %561 = vmatprep.subr.bf16.mxu0 0
      %562 = vmatpush2.bf16.msra.mxu0 0
      %563 = vmatprep.subr.bf16.mxu0 0
      %564 = vmatpush2.bf16.msra.mxu0 0
      %565 = vmatprep.subr.bf16.mxu0 0
      %566 = vmatpush2.bf16.msra.mxu0 0
      %567 = vmatprep.subr.bf16.mxu0 0
      %568 = vmatpush2.bf16.msra.mxu0 0
      %569 = vmatprep.subr.bf16.mxu0 0
      %570 = vmatpush2.bf16.msra.mxu0 0
      %571 = vmatprep.subr.bf16.mxu0 0
      %572 = vmatpush2.bf16.msra.mxu0 0
      %573 = vmatprep.mubr.bf16.mxu0 0
      %574 = vmatmul.mubr.bf16.gmra.mxu0 %v539
      %v575 = vpop.f32.mrf.mxu0
      %v576 = vadd.f32 0.0, %v575
      %v577 = vpop.f32.mrf.mxu0
      %v578 = vpop.f32.mrf.mxu0
      %v579 = vpop.f32.mrf.mxu0
      %580 = vdwg.mxu0
      %v581 = vadd.f32 %v523, %v576
      %v582 = vld [vmem:[%s200] sm:$0x6]
      %s583 = scalar_lea.vmem %s1, 56
      %v584 = vld [vmem:[%s583] sm:$0xf]
      %v585 = vld [vmem:[%s583 + $0x4] sm:$0xf]
      %v587 = vunpack.c.l.b16 %v582
      %v588 = vpack.c.b16 %v587, %v587
      %v589 = vrot.slane %v588, 1
      %v592 = vunpack.c.l.b16 %v584
      %v593 = vunpack.c.l.b16 %v585
      %v594 = vpack.c.b16 %v593, %v592
      %v597 = vsel %vm211, %v589, 0
      %599 = vmatprep.subr.bf16.mxu0 0
      %600 = vmatpush1.bf16.msra.mxu0 0
      %601 = vmatprep.subr.bf16.mxu0 0
      %602 = vmatpush1.bf16.msra.mxu0 0
      %603 = vmatprep.subr.bf16.mxu0 0
      %604 = vmatpush1.bf16.msra.mxu0 0
      %605 = vmatprep.subr.bf16.mxu0 0
      %606 = vmatpush1.bf16.msra.mxu0 0
      %607 = vmatprep.subr.bf16.mxu0 0
      %608 = vmatpush1.bf16.msra.mxu0 0
      %609 = vmatprep.subr.bf16.mxu0 0
      %610 = vmatpush1.bf16.msra.mxu0 0
      %611 = vmatprep.subr.bf16.mxu0 0
      %612 = vmatpush1.bf16.msra.mxu0 0
      %613 = vmatprep.subr.bf16.mxu0 0
      %614 = vmatpush1.bf16.msra.mxu0 %v594
      %615 = vmatprep.subr.bf16.mxu0 0
      %616 = vmatpush2.bf16.msra.mxu0 0
      %617 = vmatprep.subr.bf16.mxu0 0
      %618 = vmatpush2.bf16.msra.mxu0 0
      %619 = vmatprep.subr.bf16.mxu0 0
      %620 = vmatpush2.bf16.msra.mxu0 0
      %621 = vmatprep.subr.bf16.mxu0 0
      %622 = vmatpush2.bf16.msra.mxu0 0
      %623 = vmatprep.subr.bf16.mxu0 0
      %624 = vmatpush2.bf16.msra.mxu0 0
      %625 = vmatprep.subr.bf16.mxu0 0
      %626 = vmatpush2.bf16.msra.mxu0 0
      %627 = vmatprep.subr.bf16.mxu0 0
      %628 = vmatpush2.bf16.msra.mxu0 0
      %629 = vmatprep.subr.bf16.mxu0 0
      %630 = vmatpush2.bf16.msra.mxu0 0
      %631 = vmatprep.mubr.bf16.mxu0 0
      %632 = vmatmul.mubr.bf16.gmra.mxu0 %v597
      %v633 = vpop.f32.mrf.mxu0
      %v634 = vadd.f32 0.0, %v633
      %v635 = vpop.f32.mrf.mxu0
      %v636 = vpop.f32.mrf.mxu0
      %v637 = vpop.f32.mrf.mxu0
      %638 = vdwg.mxu0
      %v639 = vadd.f32 %v581, %v634
      %v640 = vld [vmem:[%s304] sm:$0x6]
      %s641 = scalar_lea.vmem %s1, 64
      %v642 = vld [vmem:[%s641] sm:$0xf]
      %v643 = vld [vmem:[%s641 + $0x4] sm:$0xf]
      %v645 = vunpack.c.l.b16 %v640
      %v646 = vpack.c.b16 %v645, %v645
      %v647 = vrot.slane %v646, 1
      %v650 = vunpack.c.l.b16 %v642
      %v651 = vunpack.c.l.b16 %v643
      %v652 = vpack.c.b16 %v651, %v650
      %v655 = vsel %vm211, %v647, 0
      %657 = vmatprep.subr.bf16.mxu0 0
      %658 = vmatpush1.bf16.msra.mxu0 0
      %659 = vmatprep.subr.bf16.mxu0 0
      %660 = vmatpush1.bf16.msra.mxu0 0
      %661 = vmatprep.subr.bf16.mxu0 0
      %662 = vmatpush1.bf16.msra.mxu0 0
      %663 = vmatprep.subr.bf16.mxu0 0
      %664 = vmatpush1.bf16.msra.mxu0 0
      %665 = vmatprep.subr.bf16.mxu0 0
      %666 = vmatpush1.bf16.msra.mxu0 0
      %667 = vmatprep.subr.bf16.mxu0 0
      %668 = vmatpush1.bf16.msra.mxu0 0
      %669 = vmatprep.subr.bf16.mxu0 0
      %670 = vmatpush1.bf16.msra.mxu0 0
      %671 = vmatprep.subr.bf16.mxu0 0
      %672 = vmatpush1.bf16.msra.mxu0 %v652
      %673 = vmatprep.subr.bf16.mxu0 0
      %674 = vmatpush2.bf16.msra.mxu0 0
      %675 = vmatprep.subr.bf16.mxu0 0
      %676 = vmatpush2.bf16.msra.mxu0 0
      %677 = vmatprep.subr.bf16.mxu0 0
      %678 = vmatpush2.bf16.msra.mxu0 0
      %679 = vmatprep.subr.bf16.mxu0 0
      %680 = vmatpush2.bf16.msra.mxu0 0
      %681 = vmatprep.subr.bf16.mxu0 0
      %682 = vmatpush2.bf16.msra.mxu0 0
      %683 = vmatprep.subr.bf16.mxu0 0
      %684 = vmatpush2.bf16.msra.mxu0 0
      %685 = vmatprep.subr.bf16.mxu0 0
      %686 = vmatpush2.bf16.msra.mxu0 0
      %687 = vmatprep.subr.bf16.mxu0 0
      %688 = vmatpush2.bf16.msra.mxu0 0
      %689 = vmatprep.mubr.bf16.mxu0 0
      %690 = vmatmul.mubr.bf16.gmra.mxu0 %v655
      %v691 = vpop.f32.mrf.mxu0
      %v692 = vadd.f32 0.0, %v691
      %v693 = vpop.f32.mrf.mxu0
      %v694 = vpop.f32.mrf.mxu0
      %v695 = vpop.f32.mrf.mxu0
      %696 = vdwg.mxu0
      %v697 = vadd.f32 %v639, %v692
      %v698 = vld [vmem:[%s2] sm:$0x1]
      %v700 = vlaneseq
      %v701 = vshrl.u32 %v700, 7
      %v702 = vsub.s32 0, %v701
      %v703 = vrot.slane %v698, %v702
      %v705 = vmul.f32 %v697, %v703
      %v706 = vld [vmem:[%s3] sm:$0x1]
      %v708 = vlaneseq
      %v709 = vshrl.u32 %v708, 7
      %v710 = vsub.s32 0, %v709
      %v711 = vrot.slane %v706, %v710
      %v713 = vadd.f32 %v705, %v711
      %v714 = vmul.f32 %v713, 0.01
      %v715 = vmax.f32 %v713, %v714
      %v716 = vpack.c.bf16 %v715, %v715
      %vm717 = vcmask 254976
      %718 = vst.msk [vmem:[%s195] sm:$0x3] %vm717, %v716
      %p719 = scmp.lt.s32.totalorder %s15, 1
      %s720 = scalar_select %p719, %s15, 1
      %s721 = smul.addr %s720, 2
      %s722 = scalar_lea.vmem %s4, %s721
      // Predicated region
      $region37: #{forward.6} parent=35 // pred_check
        %p723 = pneg %p122
      $region38: #{forward.6} parent=35 // pred_check_branch
        %725 = sbr.rel (%p723) target = $region40
      $region39: #{forward.6} parent=35 // pred_region
        _
      $region40: #{forward.6} parent=35 // pred_fallthru
        _
    $region36: #{forward.6} parent=5 // pred_fallthru
      _
    %p726 = scmp.le.s32.totalorder 2, %s10
    // Predicated region
    $region41: #{forward.6} parent=5 // pred_check
      %p727 = pneg %p726
    $region42: #{forward.6} parent=5 // pred_check_branch
      %729 = sbr.rel (%p727) target = $region44
    $region43: #{forward.6} parent=5 // pred_region
      %s730 = ssub.s32 %s10, 2
      // Predicated region
      $region45: #{forward.6} parent=43 // pred_check
        %p731 = pneg %p128
      $region46: #{forward.6} parent=43 // pred_check_branch
        %733 = sbr.rel (%p731) target = $region48
      $region47: #{forward.6} parent=43 // pred_region
        %p734 = scmp.lt.s32.totalorder %s16, 1
        %s735 = scalar_select %p734, %s16, 1
        %s736 = smul.addr %s735, 2
        %s737 = scalar_lea.vmem %s4, %s736
      $region48: #{forward.6} parent=43 // pred_fallthru
        _
    $region44: #{forward.6} parent=5 // pred_fallthru
      _
  $region6: #{forward.6} parent=0 // loop_footer
    %s14 = sadd.s32 1, %s10
  $region7: #{forward.6} parent=0 // loop_footer_branch
    %9 = sbr.rel target = $region3
  $region8: #{forward.6} parent=0 // loop_exit
    _

// kernel: forward.5
$region0: #{forward.5}
  #allocation0 [shape = 'u32[]', space=smem, size = 0x4, offset = 0x4, fixed_abs, tag = 'smem constant byte address 0x4 - core index']
  #allocation1 [shape = 'u32[144,128]{1,0:T(1,128)}', space=vmem, size = 0x12000, scoped, tag = 'internal scratch']
  %s0 = inlined_call_operand.vmem [shape: bf16[2,6,20,8], index: 0, kind: input, shape index: {}]
  %s1 = inlined_call_operand.vmem [shape: bf16[9,8,16], index: 1, kind: input, shape index: {}]
  %s2 = inlined_call_operand.vmem [shape: f32[1,16], index: 2, kind: input, shape index: {}]
  %s3 = inlined_call_operand.vmem [shape: f32[1,16], index: 3, kind: input, shape index: {}]
  %s4 = inlined_call_operand.vmem [shape: bf16[2,16,16], index: 4, kind: output, shape index: {}]
  %s5 = sld [smem:[#allocation0]]
  $region49: #{forward.5} parent=0
    _
  %s7 = ssub.s32 1, %s5
  %s8 = scalar_select 0, %s7, %s5
  loop: start=0, step=1, limit=4
  $region2: #{forward.5} parent=0 // loop_pre_header
    _
  $region3: #{forward.5} parent=0 // loop_header
    %s10 = sphi 0, %s14
    %p11 = scmp.ge.s32.totalorder %s10, 4
    %s20 = sphi 0, %s22
    %s23 = sphi 0, %s20
    %s24 = sphi 0, %s23
    %s40 = sphi 0, %s24
    %s44 = sphi 0, %s44
    %s46 = sphi 0, %s44
    %s47 = sphi 0, %s46
    %s61 = sphi 0, %s47
    %s65 = sphi 0, %s65
    %s67 = sphi 0, %s65
    %s68 = sphi 0, %s67
    %s82 = sphi 0, %s68
    %s86 = sphi 0, %s86
    %s88 = sphi 0, %s86
    %s89 = sphi 0, %s88
    %s103 = sphi 0, %s89
    %s109 = sphi 0, %s111
    %s112 = sphi 0, %s109
    %s113 = sphi 0, %s112
    %s129 = sphi 0, %s113
  $region4: #{forward.5} parent=0 // loop_header_branch
    %13 = sbr.rel (%p11) target = $region8
  $region5: #{forward.5} parent=0 // loop_body
    %s15 = ssub.s32 %s10, 1
    %s16 = ssub.s32 %s10, 2
    %s17 = sadd.s32 %s10, 1
    %s18 = ssub.s32 %s10, %s17
    %p19 = scmp.eq.s32.totalorder %s18, 0
    %s21 = sadd.s32 %s20, 1
    %s22 = scalar_select %p19, %s20, %s21
    %p25 = pneg %p19
    %p26 = scmp.eq.s32.totalorder %s10, 1
    %p27 = por %p25, %p26
    %p28 = scmp.ne.s32.totalorder %s20, %s23
    %p29 = scmp.eq.s32.totalorder %s10, 0
    %p30 = por %p28, %p29
    %p31 = scmp.ne.s32.totalorder %s20, %s23
    %p32 = scmp.eq.s32.totalorder %s15, 1
    %p33 = por %p31, %p32
    %p34 = scmp.ne.s32.totalorder %s23, %s24
    %p35 = scmp.eq.s32.totalorder %s15, 0
    %p36 = por %p34, %p35
    %p37 = scmp.ne.s32.totalorder %s23, %s24
    %p38 = scmp.eq.s32.totalorder %s16, 1
    %p39 = por %p37, %p38
    %p41 = scmp.ne.s32.totalorder %s24, %s40
    %p42 = scmp.eq.s32.totalorder %s16, 0
    %p43 = por %p41, %p42
    %s45 = sadd.s32 %s44, 1
    %p48 = scmp.eq.s32.totalorder %s10, 1
    %p49 = scmp.ne.s32.totalorder %s44, %s46
    %p50 = scmp.eq.s32.totalorder %s10, 0
    %p51 = por %p49, %p50
    %p52 = scmp.ne.s32.totalorder %s44, %s46
    %p53 = scmp.eq.s32.totalorder %s15, 1
    %p54 = por %p52, %p53
    %p55 = scmp.ne.s32.totalorder %s46, %s47
    %p56 = scmp.eq.s32.totalorder %s15, 0
    %p57 = por %p55, %p56
    %p58 = scmp.ne.s32.totalorder %s46, %s47
    %p59 = scmp.eq.s32.totalorder %s16, 1
    %p60 = por %p58, %p59
    %p62 = scmp.ne.s32.totalorder %s47, %s61
    %p63 = scmp.eq.s32.totalorder %s16, 0
    %p64 = por %p62, %p63
    %s66 = sadd.s32 %s65, 1
    %p69 = scmp.eq.s32.totalorder %s10, 1
    %p70 = scmp.ne.s32.totalorder %s65, %s67
    %p71 = scmp.eq.s32.totalorder %s10, 0
    %p72 = por %p70, %p71
    %p73 = scmp.ne.s32.totalorder %s65, %s67
    %p74 = scmp.eq.s32.totalorder %s15, 1
    %p75 = por %p73, %p74
    %p76 = scmp.ne.s32.totalorder %s67, %s68
    %p77 = scmp.eq.s32.totalorder %s15, 0
    %p78 = por %p76, %p77
    %p79 = scmp.ne.s32.totalorder %s67, %s68
    %p80 = scmp.eq.s32.totalorder %s16, 1
    %p81 = por %p79, %p80
    %p83 = scmp.ne.s32.totalorder %s68, %s82
    %p84 = scmp.eq.s32.totalorder %s16, 0
    %p85 = por %p83, %p84
    %s87 = sadd.s32 %s86, 1
    %p90 = scmp.eq.s32.totalorder %s10, 1
    %p91 = scmp.ne.s32.totalorder %s86, %s88
    %p92 = scmp.eq.s32.totalorder %s10, 0
    %p93 = por %p91, %p92
    %p94 = scmp.ne.s32.totalorder %s86, %s88
    %p95 = scmp.eq.s32.totalorder %s15, 1
    %p96 = por %p94, %p95
    %p97 = scmp.ne.s32.totalorder %s88, %s89
    %p98 = scmp.eq.s32.totalorder %s15, 0
    %p99 = por %p97, %p98
    %p100 = scmp.ne.s32.totalorder %s88, %s89
    %p101 = scmp.eq.s32.totalorder %s16, 1
    %p102 = por %p100, %p101
    %p104 = scmp.ne.s32.totalorder %s89, %s103
    %p105 = scmp.eq.s32.totalorder %s16, 0
    %p106 = por %p104, %p105
    %s107 = ssub.s32 %s10, %s17
    %p108 = scmp.eq.s32.totalorder %s107, 0
    %s110 = sadd.s32 %s109, 1
    %s111 = scalar_select %p108, %s109, %s110
    %p114 = pneg %p108
    %p115 = scmp.eq.s32.totalorder %s10, 1
    %p116 = por %p114, %p115
    %p117 = scmp.ne.s32.totalorder %s109, %s112
    %p118 = scmp.eq.s32.totalorder %s10, 0
    %p119 = por %p117, %p118
    %p120 = scmp.ne.s32.totalorder %s109, %s112
    %p121 = scmp.eq.s32.totalorder %s15, 1
    %p122 = por %p120, %p121
    %p123 = scmp.ne.s32.totalorder %s112, %s113
    %p124 = scmp.eq.s32.totalorder %s15, 0
    %p125 = por %p123, %p124
    %p126 = scmp.ne.s32.totalorder %s112, %s113
    %p127 = scmp.eq.s32.totalorder %s16, 1
    %p128 = por %p126, %p127
    %p130 = scmp.ne.s32.totalorder %s113, %s129
    %p131 = scmp.eq.s32.totalorder %s16, 0
    %p132 = por %p130, %p131
    %p133 = scmp.le.s32.totalorder 1, %s10
    %p134 = scmp.lt.s32.totalorder %s10, 3
    %p135 = pnand %p133, %p134
    %p136 = pneg %p135
    // Predicated region
    $region9: #{forward.5} parent=5 // pred_check
      _
    $region10: #{forward.5} parent=5 // pred_check_branch
      %138 = sbr.rel (%p135) target = $region12
    $region11: #{forward.5} parent=5 // pred_region
      %s139 = ssub.s32 %s10, 1
      // Predicated region
      $region13: #{forward.5} parent=11 // pred_check
        %p140 = pneg %p57
      $region14: #{forward.5} parent=11 // pred_check_branch
        %142 = sbr.rel (%p140) target = $region16
      $region15: #{forward.5} parent=11 // pred_region
        _
      $region16: #{forward.5} parent=11 // pred_fallthru
        _
      // Predicated region
      $region17: #{forward.5} parent=11 // pred_check
        %p143 = pneg %p78
      $region18: #{forward.5} parent=11 // pred_check_branch
        %145 = sbr.rel (%p143) target = $region20
      $region19: #{forward.5} parent=11 // pred_region
        _
      $region20: #{forward.5} parent=11 // pred_fallthru
        _
      // Predicated region
      $region21: #{forward.5} parent=11 // pred_check
        %p146 = pneg %p99
      $region22: #{forward.5} parent=11 // pred_check_branch
        %148 = sbr.rel (%p146) target = $region24
      $region23: #{forward.5} parent=11 // pred_region
        _
      $region24: #{forward.5} parent=11 // pred_fallthru
        _
    $region12: #{forward.5} parent=5 // pred_fallthru
      _
    %p149 = scmp.lt.s32.totalorder %s10, 2
    // Predicated region
    $region25: #{forward.5} parent=5 // pred_check
      %p150 = pneg %p149
    $region26: #{forward.5} parent=5 // pred_check_branch
      %152 = sbr.rel (%p150) target = $region28
    $region27: #{forward.5} parent=5 // pred_region
      // Predicated region
      $region29: #{forward.5} parent=27 // pred_check
        %p153 = pneg %p30
      $region30: #{forward.5} parent=27 // pred_check_branch
        %155 = sbr.rel (%p153) target = $region32
      $region31: #{forward.5} parent=27 // pred_region
        %p156 = scmp.lt.s32.totalorder %s10, 1
        %s157 = scalar_select %p156, %s10, 1
        %s158 = smul.addr %s157, 18
        %s159 = smul.addr %s158, 4
        %s160 = scalar_lea.vmem %s0, %s159
      $region32: #{forward.5} parent=27 // pred_fallthru
        _
    $region28: #{forward.5} parent=5 // pred_fallthru
      _
    %p161 = scmp.le.s32.totalorder 1, %s10
    %p162 = scmp.lt.s32.totalorder %s10, 3
    %p163 = pnand %p161, %p162
    %p164 = pneg %p163
    // Predicated region
    $region33: #{forward.5} parent=5 // pred_check
      _
    $region34: #{forward.5} parent=5 // pred_check_branch
      %166 = sbr.rel (%p163) target = $region36
    $region35: #{forward.5} parent=5 // pred_region
      %s167 = ssub.s32 %s10, 1
      %p168 = scmp.lt.s32.totalorder %s15, 1
      %s169 = scalar_select %p168, %s15, 1
      %s170 = smul.addr %s169, 18
      %s171 = smul.addr %s170, 4
      %s172 = scalar_lea.vmem %s0, %s171
      %p173 = pneg %p36
      %p174 = pneg %p33
      %p175 = pneg %p57
      %p176 = pneg %p54
      %p177 = pneg %p78
      %p178 = pneg %p75
      %p179 = pneg %p99
      %p180 = pneg %p96
      %p181 = pneg %p125
      %p182 = pneg %p122
      %p183 = scmp.lt.s32.totalorder %s15, 1
      %s184 = scalar_select %p183, %s15, 1
      %s185 = smul.addr %s184, 2
      %s186 = smul.addr %s185, 4
      %s187 = scalar_lea.vmem %s4, %s186
      %p188 = scmp.lt.s32.totalorder %s15, 1
      %s189 = scalar_select %p188, %s15, 1
      %s190 = smul.addr %s189, 18
      %s191 = smul.addr %s190, 4
      %s192 = scalar_lea.vmem %s0, %s191
      %p193 = scmp.lt.s32.totalorder %s15, 1
      %s194 = scalar_select %p193, %s15, 1
      %s195 = smul.addr %s194, 2
      %s196 = smul.addr %s195, 4
      %s197 = scalar_lea.vmem %s4, %s196
      %v199 = vld [vmem:[%s192] sm:$0xf]
      %v200 = vld [vmem:[%s192 + $0x4] sm:$0xf]
      %v201 = vld [vmem:[%s1] sm:$0xf]
      %s202 = scalar_lea.vmem %s192, 12
      %v203 = vld [vmem:[%s202] sm:$0xf]
      %v204 = vld [vmem:[%s202 + $0x4] sm:$0xf]
      %s205 = scalar_lea.vmem %s1, 4
      %v206 = vld [vmem:[%s205] sm:$0xf]
      %v209 = vunpack.c.l.b16 %v203
      %v210 = vunpack.c.l.b16 %v204
      %v211 = vpack.c.b16 %v210, %v209
      %vm212 = vcmask 64512
      %v214 = vsel %vm212, %v211, 0
      %vm216 = vcmask 1043456
      %v218 = vsel %vm216, %v206, 0
      %220 = vmatprep.subr.bf16.mxu0 0
      %221 = vmatpush1.bf16.msra.mxu0 0
      %222 = vmatprep.subr.bf16.mxu0 0
      %223 = vmatpush1.bf16.msra.mxu0 0
      %224 = vmatprep.subr.bf16.mxu0 0
      %225 = vmatpush1.bf16.msra.mxu0 0
      %226 = vmatprep.subr.bf16.mxu0 0
      %227 = vmatpush1.bf16.msra.mxu0 0
      %228 = vmatprep.subr.bf16.mxu0 0
      %229 = vmatpush1.bf16.msra.mxu0 0
      %230 = vmatprep.subr.bf16.mxu0 0
      %231 = vmatpush1.bf16.msra.mxu0 0
      %232 = vmatprep.subr.bf16.mxu0 0
      %233 = vmatpush1.bf16.msra.mxu0 0
      %234 = vmatprep.subr.bf16.mxu0 0
      %235 = vmatpush1.bf16.msra.mxu0 %v218
      %236 = vmatprep.subr.bf16.mxu0 0
      %237 = vmatpush2.bf16.msra.mxu0 0
      %238 = vmatprep.subr.bf16.mxu0 0
      %239 = vmatpush2.bf16.msra.mxu0 0
      %240 = vmatprep.subr.bf16.mxu0 0
      %241 = vmatpush2.bf16.msra.mxu0 0
      %242 = vmatprep.subr.bf16.mxu0 0
      %243 = vmatpush2.bf16.msra.mxu0 0
      %244 = vmatprep.subr.bf16.mxu0 0
      %245 = vmatpush2.bf16.msra.mxu0 0
      %246 = vmatprep.subr.bf16.mxu0 0
      %247 = vmatpush2.bf16.msra.mxu0 0
      %248 = vmatprep.subr.bf16.mxu0 0
      %249 = vmatpush2.bf16.msra.mxu0 0
      %250 = vmatprep.subr.bf16.mxu0 0
      %251 = vmatpush2.bf16.msra.mxu0 0
      %252 = vmatprep.mubr.bf16.mxu0 0
      %253 = vmatmul.mubr.bf16.gmra.mxu0 %v214
      %v254 = vpop.f32.mrf.mxu0
      %v255 = vadd.f32 0.0, %v254
      %v256 = vpop.f32.mrf.mxu0
      %v257 = vpop.f32.mrf.mxu0
      %v258 = vadd.f32 0.0, %v257
      %v259 = vpop.f32.mrf.mxu0
      %260 = vdwg.mxu0
      %v263 = vunpack.c.l.b16 %v199
      %v264 = vunpack.c.l.b16 %v200
      %v265 = vpack.c.b16 %v264, %v263
      %v267 = vsel %vm212, %v265, 0
      %v270 = vsel %vm216, %v201, 0
      %272 = vmatprep.subr.bf16.mxu0 0
      %273 = vmatpush1.bf16.msra.mxu0 0
      %274 = vmatprep.subr.bf16.mxu0 0
      %275 = vmatpush1.bf16.msra.mxu0 0
      %276 = vmatprep.subr.bf16.mxu0 0
      %277 = vmatpush1.bf16.msra.mxu0 0
      %278 = vmatprep.subr.bf16.mxu0 0
      %279 = vmatpush1.bf16.msra.mxu0 0
      %280 = vmatprep.subr.bf16.mxu0 0
      %281 = vmatpush1.bf16.msra.mxu0 0
      %282 = vmatprep.subr.bf16.mxu0 0
      %283 = vmatpush1.bf16.msra.mxu0 0
      %284 = vmatprep.subr.bf16.mxu0 0
      %285 = vmatpush1.bf16.msra.mxu0 0
      %286 = vmatprep.subr.bf16.mxu0 0
      %287 = vmatpush1.bf16.msra.mxu0 %v270
      %288 = vmatprep.subr.bf16.mxu0 0
      %289 = vmatpush2.bf16.msra.mxu0 0
      %290 = vmatprep.subr.bf16.mxu0 0
      %291 = vmatpush2.bf16.msra.mxu0 0
      %292 = vmatprep.subr.bf16.mxu0 0
      %293 = vmatpush2.bf16.msra.mxu0 0
      %294 = vmatprep.subr.bf16.mxu0 0
      %295 = vmatpush2.bf16.msra.mxu0 0
      %296 = vmatprep.subr.bf16.mxu0 0
      %297 = vmatpush2.bf16.msra.mxu0 0
      %298 = vmatprep.subr.bf16.mxu0 0
      %299 = vmatpush2.bf16.msra.mxu0 0
      %300 = vmatprep.subr.bf16.mxu0 0
      %301 = vmatpush2.bf16.msra.mxu0 0
      %302 = vmatprep.subr.bf16.mxu0 0
      %303 = vmatpush2.bf16.msra.mxu0 0
      %304 = vmatprep.mubr.bf16.mxu0 0
      %305 = vmatmul.mubr.bf16.gmra.mxu0 %v267
      %v306 = vpop.f32.mrf.mxu0
      %v307 = vadd.f32 %v255, %v306
      %v308 = vpop.f32.mrf.mxu0
      %v309 = vpop.f32.mrf.mxu0
      %v310 = vadd.f32 %v258, %v309
      %v311 = vpop.f32.mrf.mxu0
      %312 = vdwg.mxu0
      %s313 = scalar_lea.vmem %s192, 24
      %v314 = vld [vmem:[%s313] sm:$0xf]
      %v315 = vld [vmem:[%s313 + $0x4] sm:$0xf]
      %s316 = scalar_lea.vmem %s1, 8
      %v317 = vld [vmem:[%s316] sm:$0xf]
      %v320 = vunpack.c.l.b16 %v314
      %v321 = vunpack.c.l.b16 %v315
      %v322 = vpack.c.b16 %v321, %v320
      %v324 = vsel %vm212, %v322, 0
      %v327 = vsel %vm216, %v317, 0
      %329 = vmatprep.subr.bf16.mxu0 0
      %330 = vmatpush1.bf16.msra.mxu0 0
      %331 = vmatprep.subr.bf16.mxu0 0
      %332 = vmatpush1.bf16.msra.mxu0 0
      %333 = vmatprep.subr.bf16.mxu0 0
      %334 = vmatpush1.bf16.msra.mxu0 0
      %335 = vmatprep.subr.bf16.mxu0 0
      %336 = vmatpush1.bf16.msra.mxu0 0
      %337 = vmatprep.subr.bf16.mxu0 0
      %338 = vmatpush1.bf16.msra.mxu0 0
      %339 = vmatprep.subr.bf16.mxu0 0
      %340 = vmatpush1.bf16.msra.mxu0 0
      %341 = vmatprep.subr.bf16.mxu0 0
      %342 = vmatpush1.bf16.msra.mxu0 0
      %343 = vmatprep.subr.bf16.mxu0 0
      %344 = vmatpush1.bf16.msra.mxu0 %v327
      %345 = vmatprep.subr.bf16.mxu0 0
      %346 = vmatpush2.bf16.msra.mxu0 0
      %347 = vmatprep.subr.bf16.mxu0 0
      %348 = vmatpush2.bf16.msra.mxu0 0
      %349 = vmatprep.subr.bf16.mxu0 0
      %350 = vmatpush2.bf16.msra.mxu0 0
      %351 = vmatprep.subr.bf16.mxu0 0
      %352 = vmatpush2.bf16.msra.mxu0 0
      %353 = vmatprep.subr.bf16.mxu0 0
      %354 = vmatpush2.bf16.msra.mxu0 0
      %355 = vmatprep.subr.bf16.mxu0 0
      %356 = vmatpush2.bf16.msra.mxu0 0
      %357 = vmatprep.subr.bf16.mxu0 0
      %358 = vmatpush2.bf16.msra.mxu0 0
      %359 = vmatprep.subr.bf16.mxu0 0
      %360 = vmatpush2.bf16.msra.mxu0 0
      %361 = vmatprep.mubr.bf16.mxu0 0
      %362 = vmatmul.mubr.bf16.gmra.mxu0 %v324
      %v363 = vpop.f32.mrf.mxu0
      %v364 = vadd.f32 0.0, %v363
      %v365 = vpop.f32.mrf.mxu0
      %v366 = vpop.f32.mrf.mxu0
      %v367 = vadd.f32 0.0, %v366
      %v368 = vpop.f32.mrf.mxu0
      %369 = vdwg.mxu0
      %v370 = vadd.f32 %v307, %v364
      %v371 = vadd.f32 %v310, %v367
      %s372 = scalar_lea.vmem %s192, 36
      %v373 = vld [vmem:[%s372] sm:$0xf]
      %v374 = vld [vmem:[%s372 + $0x4] sm:$0xf]
      %s375 = scalar_lea.vmem %s1, 12
      %v376 = vld [vmem:[%s375] sm:$0xf]
      %v379 = vunpack.c.l.b16 %v373
      %v380 = vunpack.c.l.b16 %v374
      %v381 = vpack.c.b16 %v380, %v379
      %v383 = vsel %vm212, %v381, 0
      %v386 = vsel %vm216, %v376, 0
      %388 = vmatprep.subr.bf16.mxu0 0
      %389 = vmatpush1.bf16.msra.mxu0 0
      %390 = vmatprep.subr.bf16.mxu0 0
      %391 = vmatpush1.bf16.msra.mxu0 0
      %392 = vmatprep.subr.bf16.mxu0 0
      %393 = vmatpush1.bf16.msra.mxu0 0
      %394 = vmatprep.subr.bf16.mxu0 0
      %395 = vmatpush1.bf16.msra.mxu0 0
      %396 = vmatprep.subr.bf16.mxu0 0
      %397 = vmatpush1.bf16.msra.mxu0 0
      %398 = vmatprep.subr.bf16.mxu0 0
      %399 = vmatpush1.bf16.msra.mxu0 0
      %400 = vmatprep.subr.bf16.mxu0 0
      %401 = vmatpush1.bf16.msra.mxu0 0
      %402 = vmatprep.subr.bf16.mxu0 0
      %403 = vmatpush1.bf16.msra.mxu0 %v386
      %404 = vmatprep.subr.bf16.mxu0 0
      %405 = vmatpush2.bf16.msra.mxu0 0
      %406 = vmatprep.subr.bf16.mxu0 0
      %407 = vmatpush2.bf16.msra.mxu0 0
      %408 = vmatprep.subr.bf16.mxu0 0
      %409 = vmatpush2.bf16.msra.mxu0 0
      %410 = vmatprep.subr.bf16.mxu0 0
      %411 = vmatpush2.bf16.msra.mxu0 0
      %412 = vmatprep.subr.bf16.mxu0 0
      %413 = vmatpush2.bf16.msra.mxu0 0
      %414 = vmatprep.subr.bf16.mxu0 0
      %415 = vmatpush2.bf16.msra.mxu0 0
      %416 = vmatprep.subr.bf16.mxu0 0
      %417 = vmatpush2.bf16.msra.mxu0 0
      %418 = vmatprep.subr.bf16.mxu0 0
      %419 = vmatpush2.bf16.msra.mxu0 0
      %420 = vmatprep.mubr.bf16.mxu0 0
      %421 = vmatmul.mubr.bf16.gmra.mxu0 %v383
      %v422 = vpop.f32.mrf.mxu0
      %v423 = vadd.f32 0.0, %v422
      %v424 = vpop.f32.mrf.mxu0
      %v425 = vpop.f32.mrf.mxu0
      %v426 = vadd.f32 0.0, %v425
      %v427 = vpop.f32.mrf.mxu0
      %428 = vdwg.mxu0
      %v429 = vadd.f32 %v370, %v423
      %v430 = vadd.f32 %v371, %v426
      %s431 = scalar_lea.vmem %s192, 48
      %v432 = vld [vmem:[%s431] sm:$0xf]
      %v433 = vld [vmem:[%s431 + $0x4] sm:$0xf]
      %s434 = scalar_lea.vmem %s1, 16
      %v435 = vld [vmem:[%s434] sm:$0xf]
      %v438 = vunpack.c.l.b16 %v432
      %v439 = vunpack.c.l.b16 %v433
      %v440 = vpack.c.b16 %v439, %v438
      %v442 = vsel %vm212, %v440, 0
      %v445 = vsel %vm216, %v435, 0
      %447 = vmatprep.subr.bf16.mxu0 0
      %448 = vmatpush1.bf16.msra.mxu0 0
      %449 = vmatprep.subr.bf16.mxu0 0
      %450 = vmatpush1.bf16.msra.mxu0 0
      %451 = vmatprep.subr.bf16.mxu0 0
      %452 = vmatpush1.bf16.msra.mxu0 0
      %453 = vmatprep.subr.bf16.mxu0 0
      %454 = vmatpush1.bf16.msra.mxu0 0
      %455 = vmatprep.subr.bf16.mxu0 0
      %456 = vmatpush1.bf16.msra.mxu0 0
      %457 = vmatprep.subr.bf16.mxu0 0
      %458 = vmatpush1.bf16.msra.mxu0 0
      %459 = vmatprep.subr.bf16.mxu0 0
      %460 = vmatpush1.bf16.msra.mxu0 0
      %461 = vmatprep.subr.bf16.mxu0 0
      %462 = vmatpush1.bf16.msra.mxu0 %v445
      %463 = vmatprep.subr.bf16.mxu0 0
      %464 = vmatpush2.bf16.msra.mxu0 0
      %465 = vmatprep.subr.bf16.mxu0 0
      %466 = vmatpush2.bf16.msra.mxu0 0
      %467 = vmatprep.subr.bf16.mxu0 0
      %468 = vmatpush2.bf16.msra.mxu0 0
      %469 = vmatprep.subr.bf16.mxu0 0
      %470 = vmatpush2.bf16.msra.mxu0 0
      %471 = vmatprep.subr.bf16.mxu0 0
      %472 = vmatpush2.bf16.msra.mxu0 0
      %473 = vmatprep.subr.bf16.mxu0 0
      %474 = vmatpush2.bf16.msra.mxu0 0
      %475 = vmatprep.subr.bf16.mxu0 0
      %476 = vmatpush2.bf16.msra.mxu0 0
      %477 = vmatprep.subr.bf16.mxu0 0
      %478 = vmatpush2.bf16.msra.mxu0 0
      %479 = vmatprep.mubr.bf16.mxu0 0
      %480 = vmatmul.mubr.bf16.gmra.mxu0 %v442
      %v481 = vpop.f32.mrf.mxu0
      %v482 = vadd.f32 0.0, %v481
      %v483 = vpop.f32.mrf.mxu0
      %v484 = vpop.f32.mrf.mxu0
      %v485 = vadd.f32 0.0, %v484
      %v486 = vpop.f32.mrf.mxu0
      %487 = vdwg.mxu0
      %v488 = vadd.f32 %v429, %v482
      %v489 = vadd.f32 %v430, %v485
      %s490 = scalar_lea.vmem %s192, 60
      %v491 = vld [vmem:[%s490] sm:$0xf]
      %v492 = vld [vmem:[%s490 + $0x4] sm:$0xf]
      %s493 = scalar_lea.vmem %s1, 20
      %v494 = vld [vmem:[%s493] sm:$0xf]
      %v497 = vunpack.c.l.b16 %v491
      %v498 = vunpack.c.l.b16 %v492
      %v499 = vpack.c.b16 %v498, %v497
      %v501 = vsel %vm212, %v499, 0
      %v504 = vsel %vm216, %v494, 0
      %506 = vmatprep.subr.bf16.mxu0 0
      %507 = vmatpush1.bf16.msra.mxu0 0
      %508 = vmatprep.subr.bf16.mxu0 0
      %509 = vmatpush1.bf16.msra.mxu0 0
      %510 = vmatprep.subr.bf16.mxu0 0
      %511 = vmatpush1.bf16.msra.mxu0 0
      %512 = vmatprep.subr.bf16.mxu0 0
      %513 = vmatpush1.bf16.msra.mxu0 0
      %514 = vmatprep.subr.bf16.mxu0 0
      %515 = vmatpush1.bf16.msra.mxu0 0
      %516 = vmatprep.subr.bf16.mxu0 0
      %517 = vmatpush1.bf16.msra.mxu0 0
      %518 = vmatprep.subr.bf16.mxu0 0
      %519 = vmatpush1.bf16.msra.mxu0 0
      %520 = vmatprep.subr.bf16.mxu0 0
      %521 = vmatpush1.bf16.msra.mxu0 %v504
      %522 = vmatprep.subr.bf16.mxu0 0
      %523 = vmatpush2.bf16.msra.mxu0 0
      %524 = vmatprep.subr.bf16.mxu0 0
      %525 = vmatpush2.bf16.msra.mxu0 0
      %526 = vmatprep.subr.bf16.mxu0 0
      %527 = vmatpush2.bf16.msra.mxu0 0
      %528 = vmatprep.subr.bf16.mxu0 0
      %529 = vmatpush2.bf16.msra.mxu0 0
      %530 = vmatprep.subr.bf16.mxu0 0
      %531 = vmatpush2.bf16.msra.mxu0 0
      %532 = vmatprep.subr.bf16.mxu0 0
      %533 = vmatpush2.bf16.msra.mxu0 0
      %534 = vmatprep.subr.bf16.mxu0 0
      %535 = vmatpush2.bf16.msra.mxu0 0
      %536 = vmatprep.subr.bf16.mxu0 0
      %537 = vmatpush2.bf16.msra.mxu0 0
      %538 = vmatprep.mubr.bf16.mxu0 0
      %539 = vmatmul.mubr.bf16.gmra.mxu0 %v501
      %v540 = vpop.f32.mrf.mxu0
      %v541 = vadd.f32 0.0, %v540
      %v542 = vpop.f32.mrf.mxu0
      %v543 = vpop.f32.mrf.mxu0
      %v544 = vadd.f32 0.0, %v543
      %v545 = vpop.f32.mrf.mxu0
      %546 = vdwg.mxu0
      %v547 = vadd.f32 %v488, %v541
      %v548 = vadd.f32 %v489, %v544
      %v549 = vld [vmem:[%s192] sm:$0xc]
      %v550 = vld [vmem:[%s192 + $0x4] sm:$0xf]
      %v551 = vld [vmem:[%s192 + $0x8] sm:$0x3]
      %s552 = scalar_lea.vmem %s1, 24
      %v553 = vld [vmem:[%s552] sm:$0xf]
      %v557 = vunpack.c.l.b16 %v549
      %v558 = vunpack.c.l.b16 %v550
      %v559 = vunpack.c.l.b16 %v551
      %v560 = vpack.c.b16 %v558, %v557
      %v561 = vpack.c.b16 %v559, %v559
      %vm562 = vcmask 1045504
      %v563 = vrot.slane %v560, 2
      %v564 = vrot.slane %v561, 2
      %v565 = vsel %vm562, %v563, %v564
      %v567 = vsel %vm212, %v565, 0
      %v570 = vsel %vm216, %v553, 0
      %572 = vmatprep.subr.bf16.mxu0 0
      %573 = vmatpush1.bf16.msra.mxu0 0
      %574 = vmatprep.subr.bf16.mxu0 0
      %575 = vmatpush1.bf16.msra.mxu0 0
      %576 = vmatprep.subr.bf16.mxu0 0
      %577 = vmatpush1.bf16.msra.mxu0 0
      %578 = vmatprep.subr.bf16.mxu0 0
      %579 = vmatpush1.bf16.msra.mxu0 0
      %580 = vmatprep.subr.bf16.mxu0 0
      %581 = vmatpush1.bf16.msra.mxu0 0
      %582 = vmatprep.subr.bf16.mxu0 0
      %583 = vmatpush1.bf16.msra.mxu0 0
      %584 = vmatprep.subr.bf16.mxu0 0
      %585 = vmatpush1.bf16.msra.mxu0 0
      %586 = vmatprep.subr.bf16.mxu0 0
      %587 = vmatpush1.bf16.msra.mxu0 %v570
      %588 = vmatprep.subr.bf16.mxu0 0
      %589 = vmatpush2.bf16.msra.mxu0 0
      %590 = vmatprep.subr.bf16.mxu0 0
      %591 = vmatpush2.bf16.msra.mxu0 0
      %592 = vmatprep.subr.bf16.mxu0 0
      %593 = vmatpush2.bf16.msra.mxu0 0
      %594 = vmatprep.subr.bf16.mxu0 0
      %595 = vmatpush2.bf16.msra.mxu0 0
      %596 = vmatprep.subr.bf16.mxu0 0
      %597 = vmatpush2.bf16.msra.mxu0 0
      %598 = vmatprep.subr.bf16.mxu0 0
      %599 = vmatpush2.bf16.msra.mxu0 0
      %600 = vmatprep.subr.bf16.mxu0 0
      %601 = vmatpush2.bf16.msra.mxu0 0
      %602 = vmatprep.subr.bf16.mxu0 0
      %603 = vmatpush2.bf16.msra.mxu0 0
      %604 = vmatprep.mubr.bf16.mxu0 0
      %605 = vmatmul.mubr.bf16.gmra.mxu0 %v567
      %v606 = vpop.f32.mrf.mxu0
      %v607 = vadd.f32 0.0, %v606
      %v608 = vpop.f32.mrf.mxu0
      %v609 = vpop.f32.mrf.mxu0
      %v610 = vadd.f32 0.0, %v609
      %v611 = vpop.f32.mrf.mxu0
      %612 = vdwg.mxu0
      %v613 = vadd.f32 %v547, %v607
      %v614 = vadd.f32 %v548, %v610
      %v615 = vld [vmem:[%s202] sm:$0xc]
      %v616 = vld [vmem:[%s202 + $0x4] sm:$0xf]
      %v617 = vld [vmem:[%s202 + $0x8] sm:$0x3]
      %s618 = scalar_lea.vmem %s1, 28
      %v619 = vld [vmem:[%s618] sm:$0xf]
      %v623 = vunpack.c.l.b16 %v615
      %v624 = vunpack.c.l.b16 %v616
      %v625 = vunpack.c.l.b16 %v617
      %v626 = vpack.c.b16 %v624, %v623
      %v627 = vpack.c.b16 %v625, %v625
      %v628 = vrot.slane %v626, 2
      %v629 = vrot.slane %v627, 2
      %v630 = vsel %vm562, %v628, %v629
      %v632 = vsel %vm212, %v630, 0
      %v635 = vsel %vm216, %v619, 0
      %637 = vmatprep.subr.bf16.mxu0 0
      %638 = vmatpush1.bf16.msra.mxu0 0
      %639 = vmatprep.subr.bf16.mxu0 0
      %640 = vmatpush1.bf16.msra.mxu0 0
      %641 = vmatprep.subr.bf16.mxu0 0
      %642 = vmatpush1.bf16.msra.mxu0 0
      %643 = vmatprep.subr.bf16.mxu0 0
      %644 = vmatpush1.bf16.msra.mxu0 0
      %645 = vmatprep.subr.bf16.mxu0 0
      %646 = vmatpush1.bf16.msra.mxu0 0
      %647 = vmatprep.subr.bf16.mxu0 0
      %648 = vmatpush1.bf16.msra.mxu0 0
      %649 = vmatprep.subr.bf16.mxu0 0
      %650 = vmatpush1.bf16.msra.mxu0 0
      %651 = vmatprep.subr.bf16.mxu0 0
      %652 = vmatpush1.bf16.msra.mxu0 %v635
      %653 = vmatprep.subr.bf16.mxu0 0
      %654 = vmatpush2.bf16.msra.mxu0 0
      %655 = vmatprep.subr.bf16.mxu0 0
      %656 = vmatpush2.bf16.msra.mxu0 0
      %657 = vmatprep.subr.bf16.mxu0 0
      %658 = vmatpush2.bf16.msra.mxu0 0
      %659 = vmatprep.subr.bf16.mxu0 0
      %660 = vmatpush2.bf16.msra.mxu0 0
      %661 = vmatprep.subr.bf16.mxu0 0
      %662 = vmatpush2.bf16.msra.mxu0 0
      %663 = vmatprep.subr.bf16.mxu0 0
      %664 = vmatpush2.bf16.msra.mxu0 0
      %665 = vmatprep.subr.bf16.mxu0 0
      %666 = vmatpush2.bf16.msra.mxu0 0
      %667 = vmatprep.subr.bf16.mxu0 0
      %668 = vmatpush2.bf16.msra.mxu0 0
      %669 = vmatprep.mubr.bf16.mxu0 0
      %670 = vmatmul.mubr.bf16.gmra.mxu0 %v632
      %v671 = vpop.f32.mrf.mxu0
      %v672 = vadd.f32 0.0, %v671
      %v673 = vpop.f32.mrf.mxu0
      %v674 = vpop.f32.mrf.mxu0
      %v675 = vadd.f32 0.0, %v674
      %v676 = vpop.f32.mrf.mxu0
      %677 = vdwg.mxu0
      %v678 = vadd.f32 %v613, %v672
      %v679 = vadd.f32 %v614, %v675
      %v680 = vld [vmem:[%s313] sm:$0xc]
      %v681 = vld [vmem:[%s313 + $0x4] sm:$0xf]
      %v682 = vld [vmem:[%s313 + $0x8] sm:$0x3]
      %s683 = scalar_lea.vmem %s1, 32
      %v684 = vld [vmem:[%s683] sm:$0xf]
      %v688 = vunpack.c.l.b16 %v680
      %v689 = vunpack.c.l.b16 %v681
      %v690 = vunpack.c.l.b16 %v682
      %v691 = vpack.c.b16 %v689, %v688
      %v692 = vpack.c.b16 %v690, %v690
      %v693 = vrot.slane %v691, 2
      %v694 = vrot.slane %v692, 2
      %v695 = vsel %vm562, %v693, %v694
      %v697 = vsel %vm212, %v695, 0
      %v700 = vsel %vm216, %v684, 0
      %702 = vmatprep.subr.bf16.mxu0 0
      %703 = vmatpush1.bf16.msra.mxu0 0
      %704 = vmatprep.subr.bf16.mxu0 0
      %705 = vmatpush1.bf16.msra.mxu0 0
      %706 = vmatprep.subr.bf16.mxu0 0
      %707 = vmatpush1.bf16.msra.mxu0 0
      %708 = vmatprep.subr.bf16.mxu0 0
      %709 = vmatpush1.bf16.msra.mxu0 0
      %710 = vmatprep.subr.bf16.mxu0 0
      %711 = vmatpush1.bf16.msra.mxu0 0
      %712 = vmatprep.subr.bf16.mxu0 0
      %713 = vmatpush1.bf16.msra.mxu0 0
      %714 = vmatprep.subr.bf16.mxu0 0
      %715 = vmatpush1.bf16.msra.mxu0 0
      %716 = vmatprep.subr.bf16.mxu0 0
      %717 = vmatpush1.bf16.msra.mxu0 %v700
      %718 = vmatprep.subr.bf16.mxu0 0
      %719 = vmatpush2.bf16.msra.mxu0 0
      %720 = vmatprep.subr.bf16.mxu0 0
      %721 = vmatpush2.bf16.msra.mxu0 0
      %722 = vmatprep.subr.bf16.mxu0 0
      %723 = vmatpush2.bf16.msra.mxu0 0
      %724 = vmatprep.subr.bf16.mxu0 0
      %725 = vmatpush2.bf16.msra.mxu0 0
      %726 = vmatprep.subr.bf16.mxu0 0
      %727 = vmatpush2.bf16.msra.mxu0 0
      %728 = vmatprep.subr.bf16.mxu0 0
      %729 = vmatpush2.bf16.msra.mxu0 0
      %730 = vmatprep.subr.bf16.mxu0 0
      %731 = vmatpush2.bf16.msra.mxu0 0
      %732 = vmatprep.subr.bf16.mxu0 0
      %733 = vmatpush2.bf16.msra.mxu0 0
      %734 = vmatprep.mubr.bf16.mxu0 0
      %735 = vmatmul.mubr.bf16.gmra.mxu0 %v697
      %v736 = vpop.f32.mrf.mxu0
      %v737 = vadd.f32 0.0, %v736
      %v738 = vpop.f32.mrf.mxu0
      %v739 = vpop.f32.mrf.mxu0
      %v740 = vadd.f32 0.0, %v739
      %v741 = vpop.f32.mrf.mxu0
      %742 = vdwg.mxu0
      %v743 = vadd.f32 %v678, %v737
      %v744 = vadd.f32 %v679, %v740
      %v745 = vld [vmem:[%s2] sm:$0x1]
      %v747 = vlaneseq
      %v748 = vshrl.u32 %v747, 7
      %v749 = vsub.s32 0, %v748
      %v750 = vrot.slane %v745, %v749
      %v752 = vmul.f32 %v743, %v750
      %v753 = vmul.f32 %v744, %v750
      %v754 = vld [vmem:[%s3] sm:$0x1]
      %v756 = vlaneseq
      %v757 = vshrl.u32 %v756, 7
      %v758 = vsub.s32 0, %v757
      %v759 = vrot.slane %v754, %v758
      %v761 = vadd.f32 %v752, %v759
      %v762 = vadd.f32 %v753, %v759
      %v763 = vmul.f32 %v761, 0.01
      %v764 = vmul.f32 %v762, 0.01
      %v765 = vmax.f32 %v761, %v763
      %v766 = vmax.f32 %v762, %v764
      %v767 = vpack.c.bf16 %v766, %v765
      %v769 = vunpack.c.l.b16 %v767
      %v770 = vunpack.c.h.b16 %v767
      %v771 = vpack.c.b16 %v769, %v769
      %v772 = vpack.c.b16 %v770, %v770
      %vm775 = vcmask 125952
      %776 = vst.msk [vmem:[%s197] sm:$0xf] %vm775, %v771
      %777 = vst.msk [vmem:[%s197 + $0x4] sm:$0xf] %vm775, %v772
      %p778 = scmp.lt.s32.totalorder %s15, 1
      %s779 = scalar_select %p778, %s15, 1
      %s780 = smul.addr %s779, 2
      %s781 = smul.addr %s780, 4
      %s782 = scalar_lea.vmem %s4, %s781
      // Predicated region
      $region37: #{forward.5} parent=35 // pred_check
        %p783 = pneg %p122
      $region38: #{forward.5} parent=35 // pred_check_branch
        %785 = sbr.rel (%p783) target = $region40
      $region39: #{forward.5} parent=35 // pred_region
        _
      $region40: #{forward.5} parent=35 // pred_fallthru
        _
    $region36: #{forward.5} parent=5 // pred_fallthru
      _
    %p786 = scmp.le.s32.totalorder 2, %s10
    // Predicated region
    $region41: #{forward.5} parent=5 // pred_check
      %p787 = pneg %p786
    $region42: #{forward.5} parent=5 // pred_check_branch
      %789 = sbr.rel (%p787) target = $region44
    $region43: #{forward.5} parent=5 // pred_region
      %s790 = ssub.s32 %s10, 2
      // Predicated region
      $region45: #{forward.5} parent=43 // pred_check
        %p791 = pneg %p128
      $region46: #{forward.5} parent=43 // pred_check_branch
        %793 = sbr.rel (%p791) target = $region48
      $region47: #{forward.5} parent=43 // pred_region
        %p794 = scmp.lt.s32.totalorder %s16, 1
        %s795 = scalar_select %p794, %s16, 1
        %s796 = smul.addr %s795, 2
        %s797 = smul.addr %s796, 4
        %s798 = scalar_lea.vmem %s4, %s797
      $region48: #{forward.5} parent=43 // pred_fallthru
        _
    $region44: #{forward.5} parent=5 // pred_fallthru
      _
  $region6: #{forward.5} parent=0 // loop_footer
    %s14 = sadd.s32 1, %s10
  $region7: #{forward.5} parent=0 // loop_footer_branch
    %9 = sbr.rel target = $region3
  $region8: #{forward.5} parent=0 // loop_exit
    _

// kernel: forward.7
$region0: #{forward.7}
  #allocation0 [shape = 'u32[]', space=smem, size = 0x4, offset = 0x4, fixed_abs, tag = 'smem constant byte address 0x4 - core index']
  #allocation1 [shape = 'u32[144,128]{1,0:T(1,128)}', space=vmem, size = 0x12000, scoped, tag = 'internal scratch']
  %s0 = inlined_call_operand.vmem [shape: bf16[2,6,2,32], index: 0, kind: input, shape index: {}]
  %s1 = inlined_call_operand.vmem [shape: bf16[9,32,64], index: 1, kind: input, shape index: {}]
  %s2 = inlined_call_operand.vmem [shape: f32[1,64], index: 2, kind: input, shape index: {}]
  %s3 = inlined_call_operand.vmem [shape: f32[1,64], index: 3, kind: input, shape index: {}]
  %s4 = inlined_call_operand.hbm [shape: f32[2,1,64], index: 4, kind: output, shape index: {}]
  %s5 = sld [smem:[#allocation0]]
  $region49: #{forward.7} parent=0
    _
  %s7 = ssub.s32 1, %s5
  %s8 = scalar_select 0, %s7, %s5
  $region1: #{forward.7} parent=0
    #allocation2 [shape = 'u8[1024]{0}', space=vmem, size = 0x400, scoped, tag = 'output window, operand 0']
    #allocation3 [shape = 's32[2]{0}', space=sflag, size = 0x8, scoped, tag = 'scoped memory for forward.7']
    %9 = vsyncpa [#allocation3], 0
    %s10 = scalar_lea.sflag [#allocation3], 1
    %11 = vsyncpa %s10, 0
    loop: start=0, step=1, limit=4
    $region2: #{forward.7} parent=1 // loop_pre_header
      _
    $region3: #{forward.7} parent=1 // loop_header
      %s13 = sphi 0, %s17
      %p14 = scmp.ge.s32.totalorder %s13, 4
      %s23 = sphi 0, %s25
      %s26 = sphi 0, %s23
      %s27 = sphi 0, %s26
      %s43 = sphi 0, %s27
      %s47 = sphi 0, %s47
      %s49 = sphi 0, %s47
      %s50 = sphi 0, %s49
      %s64 = sphi 0, %s50
      %s68 = sphi 0, %s68
      %s70 = sphi 0, %s68
      %s71 = sphi 0, %s70
      %s85 = sphi 0, %s71
      %s89 = sphi 0, %s89
      %s91 = sphi 0, %s89
      %s92 = sphi 0, %s91
      %s106 = sphi 0, %s92
      %s112 = sphi 0, %s114
      %s115 = sphi 0, %s112
      %s116 = sphi 0, %s115
      %s132 = sphi 0, %s116
    $region4: #{forward.7} parent=1 // loop_header_branch
      %16 = sbr.rel (%p14) target = $region8
    $region5: #{forward.7} parent=1 // loop_body
      %s18 = ssub.s32 %s13, 1
      %s19 = ssub.s32 %s13, 2
      %s20 = sadd.s32 %s13, 1
      %s21 = ssub.s32 %s13, %s20
      %p22 = scmp.eq.s32.totalorder %s21, 0
      %s24 = sadd.s32 %s23, 1
      %s25 = scalar_select %p22, %s23, %s24
      %p28 = pneg %p22
      %p29 = scmp.eq.s32.totalorder %s13, 1
      %p30 = por %p28, %p29
      %p31 = scmp.ne.s32.totalorder %s23, %s26
      %p32 = scmp.eq.s32.totalorder %s13, 0
      %p33 = por %p31, %p32
      %p34 = scmp.ne.s32.totalorder %s23, %s26
      %p35 = scmp.eq.s32.totalorder %s18, 1
      %p36 = por %p34, %p35
      %p37 = scmp.ne.s32.totalorder %s26, %s27
      %p38 = scmp.eq.s32.totalorder %s18, 0
      %p39 = por %p37, %p38
      %p40 = scmp.ne.s32.totalorder %s26, %s27
      %p41 = scmp.eq.s32.totalorder %s19, 1
      %p42 = por %p40, %p41
      %p44 = scmp.ne.s32.totalorder %s27, %s43
      %p45 = scmp.eq.s32.totalorder %s19, 0
      %p46 = por %p44, %p45
      %s48 = sadd.s32 %s47, 1
      %p51 = scmp.eq.s32.totalorder %s13, 1
      %p52 = scmp.ne.s32.totalorder %s47, %s49
      %p53 = scmp.eq.s32.totalorder %s13, 0
      %p54 = por %p52, %p53
      %p55 = scmp.ne.s32.totalorder %s47, %s49
      %p56 = scmp.eq.s32.totalorder %s18, 1
      %p57 = por %p55, %p56
      %p58 = scmp.ne.s32.totalorder %s49, %s50
      %p59 = scmp.eq.s32.totalorder %s18, 0
      %p60 = por %p58, %p59
      %p61 = scmp.ne.s32.totalorder %s49, %s50
      %p62 = scmp.eq.s32.totalorder %s19, 1
      %p63 = por %p61, %p62
      %p65 = scmp.ne.s32.totalorder %s50, %s64
      %p66 = scmp.eq.s32.totalorder %s19, 0
      %p67 = por %p65, %p66
      %s69 = sadd.s32 %s68, 1
      %p72 = scmp.eq.s32.totalorder %s13, 1
      %p73 = scmp.ne.s32.totalorder %s68, %s70
      %p74 = scmp.eq.s32.totalorder %s13, 0
      %p75 = por %p73, %p74
      %p76 = scmp.ne.s32.totalorder %s68, %s70
      %p77 = scmp.eq.s32.totalorder %s18, 1
      %p78 = por %p76, %p77
      %p79 = scmp.ne.s32.totalorder %s70, %s71
      %p80 = scmp.eq.s32.totalorder %s18, 0
      %p81 = por %p79, %p80
      %p82 = scmp.ne.s32.totalorder %s70, %s71
      %p83 = scmp.eq.s32.totalorder %s19, 1
      %p84 = por %p82, %p83
      %p86 = scmp.ne.s32.totalorder %s71, %s85
      %p87 = scmp.eq.s32.totalorder %s19, 0
      %p88 = por %p86, %p87
      %s90 = sadd.s32 %s89, 1
      %p93 = scmp.eq.s32.totalorder %s13, 1
      %p94 = scmp.ne.s32.totalorder %s89, %s91
      %p95 = scmp.eq.s32.totalorder %s13, 0
      %p96 = por %p94, %p95
      %p97 = scmp.ne.s32.totalorder %s89, %s91
      %p98 = scmp.eq.s32.totalorder %s18, 1
      %p99 = por %p97, %p98
      %p100 = scmp.ne.s32.totalorder %s91, %s92
      %p101 = scmp.eq.s32.totalorder %s18, 0
      %p102 = por %p100, %p101
      %p103 = scmp.ne.s32.totalorder %s91, %s92
      %p104 = scmp.eq.s32.totalorder %s19, 1
      %p105 = por %p103, %p104
      %p107 = scmp.ne.s32.totalorder %s92, %s106
      %p108 = scmp.eq.s32.totalorder %s19, 0
      %p109 = por %p107, %p108
      %s110 = ssub.s32 %s13, %s20
      %p111 = scmp.eq.s32.totalorder %s110, 0
      %s113 = sadd.s32 %s112, 1
      %s114 = scalar_select %p111, %s112, %s113
      %p117 = pneg %p111
      %p118 = scmp.eq.s32.totalorder %s13, 1
      %p119 = por %p117, %p118
      %p120 = scmp.ne.s32.totalorder %s112, %s115
      %p121 = scmp.eq.s32.totalorder %s13, 0
      %p122 = por %p120, %p121
      %p123 = scmp.ne.s32.totalorder %s112, %s115
      %p124 = scmp.eq.s32.totalorder %s18, 1
      %p125 = por %p123, %p124
      %p126 = scmp.ne.s32.totalorder %s115, %s116
      %p127 = scmp.eq.s32.totalorder %s18, 0
      %p128 = por %p126, %p127
      %p129 = scmp.ne.s32.totalorder %s115, %s116
      %p130 = scmp.eq.s32.totalorder %s19, 1
      %p131 = por %p129, %p130
      %p133 = scmp.ne.s32.totalorder %s116, %s132
      %p134 = scmp.eq.s32.totalorder %s19, 0
      %p135 = por %p133, %p134
      %p136 = scmp.le.s32.totalorder 1, %s13
      %p137 = scmp.lt.s32.totalorder %s13, 3
      %p138 = pnand %p136, %p137
      %p139 = pneg %p138
      // Predicated region
      $region9: #{forward.7} parent=5 // pred_check
        _
      $region10: #{forward.7} parent=5 // pred_check_branch
        %141 = sbr.rel (%p138) target = $region12
      $region11: #{forward.7} parent=5 // pred_region
        %s142 = ssub.s32 %s13, 1
        // Predicated region
        $region13: #{forward.7} parent=11 // pred_check
          %p143 = pneg %p60
        $region14: #{forward.7} parent=11 // pred_check_branch
          %145 = sbr.rel (%p143) target = $region16
        $region15: #{forward.7} parent=11 // pred_region
          _
        $region16: #{forward.7} parent=11 // pred_fallthru
          _
        // Predicated region
        $region17: #{forward.7} parent=11 // pred_check
          %p146 = pneg %p81
        $region18: #{forward.7} parent=11 // pred_check_branch
          %148 = sbr.rel (%p146) target = $region20
        $region19: #{forward.7} parent=11 // pred_region
          _
        $region20: #{forward.7} parent=11 // pred_fallthru
          _
        // Predicated region
        $region21: #{forward.7} parent=11 // pred_check
          %p149 = pneg %p102
        $region22: #{forward.7} parent=11 // pred_check_branch
          %151 = sbr.rel (%p149) target = $region24
        $region23: #{forward.7} parent=11 // pred_region
          _
        $region24: #{forward.7} parent=11 // pred_fallthru
          _
      $region12: #{forward.7} parent=5 // pred_fallthru
        _
      %p152 = scmp.lt.s32.totalorder %s13, 2
      // Predicated region
      $region25: #{forward.7} parent=5 // pred_check
        %p153 = pneg %p152
      $region26: #{forward.7} parent=5 // pred_check_branch
        %155 = sbr.rel (%p153) target = $region28
      $region27: #{forward.7} parent=5 // pred_region
        // Predicated region
        $region29: #{forward.7} parent=27 // pred_check
          %p156 = pneg %p33
        $region30: #{forward.7} parent=27 // pred_check_branch
          %158 = sbr.rel (%p156) target = $region32
        $region31: #{forward.7} parent=27 // pred_region
          %p159 = scmp.lt.s32.totalorder %s13, 1
          %s160 = scalar_select %p159, %s13, 1
          %s161 = smul.addr %s160, 6
          %s162 = scalar_lea.vmem %s0, %s161
        $region32: #{forward.7} parent=27 // pred_fallthru
          _
      $region28: #{forward.7} parent=5 // pred_fallthru
        _
      %p163 = scmp.le.s32.totalorder 1, %s13
      %p164 = scmp.lt.s32.totalorder %s13, 3
      %p165 = pnand %p163, %p164
      %p166 = pneg %p165
      // Predicated region
      $region33: #{forward.7} parent=5 // pred_check
        _
      $region34: #{forward.7} parent=5 // pred_check_branch
        %168 = sbr.rel (%p165) target = $region36
      $region35: #{forward.7} parent=5 // pred_region
        %s169 = ssub.s32 %s13, 1
        %p170 = scmp.lt.s32.totalorder %s18, 1
        %s171 = scalar_select %p170, %s18, 1
        %s172 = smul.addr %s171, 6
        %s173 = scalar_lea.vmem %s0, %s172
        %p174 = pneg %p39
        %p175 = pneg %p36
        %p176 = pneg %p60
        %p177 = pneg %p57
        %p178 = pneg %p81
        %p179 = pneg %p78
        %p180 = pneg %p102
        %p181 = pneg %p99
        %p182 = pneg %p128
        %p183 = pneg %p125
        %s184 = sand.u32 %s115, 1
        %s185 = scalar_lea.sflag [#allocation3], %s184
        %s186 = sand.u32 %s115, 1
        %s187 = scalar_lea.vmem [#allocation2], %s186
        %p188 = scmp.lt.s32.totalorder %s18, 1
        %s189 = scalar_select %p188, %s18, 1
        %s190 = smul.addr %s189, 6
        %s191 = scalar_lea.vmem %s0, %s190
        %v193 = vld [vmem:[%s191] sm:$0x1]
        %v194 = vld [vmem:[%s1] sm:$0xf]
        %v195 = vld [vmem:[%s1 + $0x4] sm:$0xf]
        %v196 = vld [vmem:[%s1 + $0x8] sm:$0xf]
        %v197 = vld [vmem:[%s1 + $0xc] sm:$0xf]
        %s198 = scalar_lea.vmem %s191, 1
        %v199 = vld [vmem:[%s198] sm:$0x1]
        %s200 = scalar_lea.vmem %s1, 16
        %v201 = vld [vmem:[%s200] sm:$0xf]
        %v202 = vld [vmem:[%s200 + $0x4] sm:$0xf]
        %v203 = vld [vmem:[%s200 + $0x8] sm:$0xf]
        %v204 = vld [vmem:[%s200 + $0xc] sm:$0xf]
        %v209 = vunpack.c.l.b16 %v201
        %v210 = vunpack.c.l.b16 %v202
        %v211 = vunpack.c.l.b16 %v203
        %v212 = vunpack.c.l.b16 %v204
        %v213 = vpack.c.b16 %v210, %v209
        %v214 = vpack.c.b16 %v212, %v211
        %vm217 = vcmask 261120
        %v219 = vsel %vm217, %v199, 0
        %221 = vmatprep.subr.bf16.mxu0 0
        %222 = vmatpush1.bf16.msra.mxu0 0
        %223 = vmatprep.subr.bf16.mxu0 0
        %224 = vmatpush1.bf16.msra.mxu0 0
        %225 = vmatprep.subr.bf16.mxu0 0
        %226 = vmatpush1.bf16.msra.mxu0 0
        %227 = vmatprep.subr.bf16.mxu0 0
        %228 = vmatpush1.bf16.msra.mxu0 0
        %229 = vmatprep.subr.bf16.mxu0 0
        %230 = vmatpush1.bf16.msra.mxu0 0
        %231 = vmatprep.subr.bf16.mxu0 0
        %232 = vmatpush1.bf16.msra.mxu0 0
        %233 = vmatprep.subr.bf16.mxu0 0
        %234 = vmatpush1.bf16.msra.mxu0 %v214
        %235 = vmatprep.subr.bf16.mxu0 0
        %236 = vmatpush1.bf16.msra.mxu0 %v213
        %237 = vmatprep.subr.bf16.mxu0 0
        %238 = vmatpush2.bf16.msra.mxu0 0
        %239 = vmatprep.subr.bf16.mxu0 0
        %240 = vmatpush2.bf16.msra.mxu0 0
        %241 = vmatprep.subr.bf16.mxu0 0
        %242 = vmatpush2.bf16.msra.mxu0 0
        %243 = vmatprep.subr.bf16.mxu0 0
        %244 = vmatpush2.bf16.msra.mxu0 0
        %245 = vmatprep.subr.bf16.mxu0 0
        %246 = vmatpush2.bf16.msra.mxu0 0
        %247 = vmatprep.subr.bf16.mxu0 0
        %248 = vmatpush2.bf16.msra.mxu0 0
        %249 = vmatprep.subr.bf16.mxu0 0
        %250 = vmatpush2.bf16.msra.mxu0 0
        %251 = vmatprep.subr.bf16.mxu0 0
        %252 = vmatpush2.bf16.msra.mxu0 0
        %253 = vmatprep.mubr.bf16.mxu0 0
        %254 = vmatmul.mubr.bf16.gmra.mxu0 %v219
        %v255 = vpop.f32.mrf.mxu0
        %v256 = vadd.f32 0.0, %v255
        %v257 = vpop.f32.mrf.mxu0
        %v258 = vpop.f32.mrf.mxu0
        %v259 = vpop.f32.mrf.mxu0
        %260 = vdwg.mxu0
        %v265 = vunpack.c.l.b16 %v194
        %v266 = vunpack.c.l.b16 %v195
        %v267 = vunpack.c.l.b16 %v196
        %v268 = vunpack.c.l.b16 %v197
        %v269 = vpack.c.b16 %v266, %v265
        %v270 = vpack.c.b16 %v268, %v267
        %v274 = vsel %vm217, %v193, 0
        %276 = vmatprep.subr.bf16.mxu0 0
        %277 = vmatpush1.bf16.msra.mxu0 0
        %278 = vmatprep.subr.bf16.mxu0 0
        %279 = vmatpush1.bf16.msra.mxu0 0
        %280 = vmatprep.subr.bf16.mxu0 0
        %281 = vmatpush1.bf16.msra.mxu0 0
        %282 = vmatprep.subr.bf16.mxu0 0
        %283 = vmatpush1.bf16.msra.mxu0 0
        %284 = vmatprep.subr.bf16.mxu0 0
        %285 = vmatpush1.bf16.msra.mxu0 0
        %286 = vmatprep.subr.bf16.mxu0 0
        %287 = vmatpush1.bf16.msra.mxu0 0
        %288 = vmatprep.subr.bf16.mxu0 0
        %289 = vmatpush1.bf16.msra.mxu0 %v270
        %290 = vmatprep.subr.bf16.mxu0 0
        %291 = vmatpush1.bf16.msra.mxu0 %v269
        %292 = vmatprep.subr.bf16.mxu0 0
        %293 = vmatpush2.bf16.msra.mxu0 0
        %294 = vmatprep.subr.bf16.mxu0 0
        %295 = vmatpush2.bf16.msra.mxu0 0
        %296 = vmatprep.subr.bf16.mxu0 0
        %297 = vmatpush2.bf16.msra.mxu0 0
        %298 = vmatprep.subr.bf16.mxu0 0
        %299 = vmatpush2.bf16.msra.mxu0 0
        %300 = vmatprep.subr.bf16.mxu0 0
        %301 = vmatpush2.bf16.msra.mxu0 0
        %302 = vmatprep.subr.bf16.mxu0 0
        %303 = vmatpush2.bf16.msra.mxu0 0
        %304 = vmatprep.subr.bf16.mxu0 0
        %305 = vmatpush2.bf16.msra.mxu0 0
        %306 = vmatprep.subr.bf16.mxu0 0
        %307 = vmatpush2.bf16.msra.mxu0 0
        %308 = vmatprep.mubr.bf16.mxu0 0
        %309 = vmatmul.mubr.bf16.gmra.mxu0 %v274
        %v310 = vpop.f32.mrf.mxu0
        %v311 = vadd.f32 %v256, %v310
        %v312 = vpop.f32.mrf.mxu0
        %v313 = vpop.f32.mrf.mxu0
        %v314 = vpop.f32.mrf.mxu0
        %315 = vdwg.mxu0
        %s316 = scalar_lea.vmem %s191, 2
        %v317 = vld [vmem:[%s316] sm:$0x1]
        %s318 = scalar_lea.vmem %s1, 32
        %v319 = vld [vmem:[%s318] sm:$0xf]
        %v320 = vld [vmem:[%s318 + $0x4] sm:$0xf]
        %v321 = vld [vmem:[%s318 + $0x8] sm:$0xf]
        %v322 = vld [vmem:[%s318 + $0xc] sm:$0xf]
        %v327 = vunpack.c.l.b16 %v319
        %v328 = vunpack.c.l.b16 %v320
        %v329 = vunpack.c.l.b16 %v321
        %v330 = vunpack.c.l.b16 %v322
        %v331 = vpack.c.b16 %v328, %v327
        %v332 = vpack.c.b16 %v330, %v329
        %v336 = vsel %vm217, %v317, 0
        %338 = vmatprep.subr.bf16.mxu0 0
        %339 = vmatpush1.bf16.msra.mxu0 0
        %340 = vmatprep.subr.bf16.mxu0 0
        %341 = vmatpush1.bf16.msra.mxu0 0
        %342 = vmatprep.subr.bf16.mxu0 0
        %343 = vmatpush1.bf16.msra.mxu0 0
        %344 = vmatprep.subr.bf16.mxu0 0
        %345 = vmatpush1.bf16.msra.mxu0 0
        %346 = vmatprep.subr.bf16.mxu0 0
        %347 = vmatpush1.bf16.msra.mxu0 0
        %348 = vmatprep.subr.bf16.mxu0 0
        %349 = vmatpush1.bf16.msra.mxu0 0
        %350 = vmatprep.subr.bf16.mxu0 0
        %351 = vmatpush1.bf16.msra.mxu0 %v332
        %352 = vmatprep.subr.bf16.mxu0 0
        %353 = vmatpush1.bf16.msra.mxu0 %v331
        %354 = vmatprep.subr.bf16.mxu0 0
        %355 = vmatpush2.bf16.msra.mxu0 0
        %356 = vmatprep.subr.bf16.mxu0 0
        %357 = vmatpush2.bf16.msra.mxu0 0
        %358 = vmatprep.subr.bf16.mxu0 0
        %359 = vmatpush2.bf16.msra.mxu0 0
        %360 = vmatprep.subr.bf16.mxu0 0
        %361 = vmatpush2.bf16.msra.mxu0 0
        %362 = vmatprep.subr.bf16.mxu0 0
        %363 = vmatpush2.bf16.msra.mxu0 0
        %364 = vmatprep.subr.bf16.mxu0 0
        %365 = vmatpush2.bf16.msra.mxu0 0
        %366 = vmatprep.subr.bf16.mxu0 0
        %367 = vmatpush2.bf16.msra.mxu0 0
        %368 = vmatprep.subr.bf16.mxu0 0
        %369 = vmatpush2.bf16.msra.mxu0 0
        %370 = vmatprep.mubr.bf16.mxu0 0
        %371 = vmatmul.mubr.bf16.gmra.mxu0 %v336
        %v372 = vpop.f32.mrf.mxu0
        %v373 = vadd.f32 0.0, %v372
        %v374 = vpop.f32.mrf.mxu0
        %v375 = vpop.f32.mrf.mxu0
        %v376 = vpop.f32.mrf.mxu0
        %377 = vdwg.mxu0
        %v378 = vadd.f32 %v311, %v373
        %s379 = scalar_lea.vmem %s191, 3
        %v380 = vld [vmem:[%s379] sm:$0x1]
        %s381 = scalar_lea.vmem %s1, 48
        %v382 = vld [vmem:[%s381] sm:$0xf]
        %v383 = vld [vmem:[%s381 + $0x4] sm:$0xf]
        %v384 = vld [vmem:[%s381 + $0x8] sm:$0xf]
        %v385 = vld [vmem:[%s381 + $0xc] sm:$0xf]
        %v390 = vunpack.c.l.b16 %v382
        %v391 = vunpack.c.l.b16 %v383
        %v392 = vunpack.c.l.b16 %v384
        %v393 = vunpack.c.l.b16 %v385
        %v394 = vpack.c.b16 %v391, %v390
        %v395 = vpack.c.b16 %v393, %v392
        %v399 = vsel %vm217, %v380, 0
        %401 = vmatprep.subr.bf16.mxu0 0
        %402 = vmatpush1.bf16.msra.mxu0 0
        %403 = vmatprep.subr.bf16.mxu0 0
        %404 = vmatpush1.bf16.msra.mxu0 0
        %405 = vmatprep.subr.bf16.mxu0 0
        %406 = vmatpush1.bf16.msra.mxu0 0
        %407 = vmatprep.subr.bf16.mxu0 0
        %408 = vmatpush1.bf16.msra.mxu0 0
        %409 = vmatprep.subr.bf16.mxu0 0
        %410 = vmatpush1.bf16.msra.mxu0 0
        %411 = vmatprep.subr.bf16.mxu0 0
        %412 = vmatpush1.bf16.msra.mxu0 0
        %413 = vmatprep.subr.bf16.mxu0 0
        %414 = vmatpush1.bf16.msra.mxu0 %v395
        %415 = vmatprep.subr.bf16.mxu0 0
        %416 = vmatpush1.bf16.msra.mxu0 %v394
        %417 = vmatprep.subr.bf16.mxu0 0
        %418 = vmatpush2.bf16.msra.mxu0 0
        %419 = vmatprep.subr.bf16.mxu0 0
        %420 = vmatpush2.bf16.msra.mxu0 0
        %421 = vmatprep.subr.bf16.mxu0 0
        %422 = vmatpush2.bf16.msra.mxu0 0
        %423 = vmatprep.subr.bf16.mxu0 0
        %424 = vmatpush2.bf16.msra.mxu0 0
        %425 = vmatprep.subr.bf16.mxu0 0
        %426 = vmatpush2.bf16.msra.mxu0 0
        %427 = vmatprep.subr.bf16.mxu0 0
        %428 = vmatpush2.bf16.msra.mxu0 0
        %429 = vmatprep.subr.bf16.mxu0 0
        %430 = vmatpush2.bf16.msra.mxu0 0
        %431 = vmatprep.subr.bf16.mxu0 0
        %432 = vmatpush2.bf16.msra.mxu0 0
        %433 = vmatprep.mubr.bf16.mxu0 0
        %434 = vmatmul.mubr.bf16.gmra.mxu0 %v399
        %v435 = vpop.f32.mrf.mxu0
        %v436 = vadd.f32 0.0, %v435
        %v437 = vpop.f32.mrf.mxu0
        %v438 = vpop.f32.mrf.mxu0
        %v439 = vpop.f32.mrf.mxu0
        %440 = vdwg.mxu0
        %v441 = vadd.f32 %v378, %v436
        %s442 = scalar_lea.vmem %s191, 4
        %v443 = vld [vmem:[%s442] sm:$0x1]
        %s444 = scalar_lea.vmem %s1, 64
        %v445 = vld [vmem:[%s444] sm:$0xf]
        %v446 = vld [vmem:[%s444 + $0x4] sm:$0xf]
        %v447 = vld [vmem:[%s444 + $0x8] sm:$0xf]
        %v448 = vld [vmem:[%s444 + $0xc] sm:$0xf]
        %v453 = vunpack.c.l.b16 %v445
        %v454 = vunpack.c.l.b16 %v446
        %v455 = vunpack.c.l.b16 %v447
        %v456 = vunpack.c.l.b16 %v448
        %v457 = vpack.c.b16 %v454, %v453
        %v458 = vpack.c.b16 %v456, %v455
        %v462 = vsel %vm217, %v443, 0
        %464 = vmatprep.subr.bf16.mxu0 0
        %465 = vmatpush1.bf16.msra.mxu0 0
        %466 = vmatprep.subr.bf16.mxu0 0
        %467 = vmatpush1.bf16.msra.mxu0 0
        %468 = vmatprep.subr.bf16.mxu0 0
        %469 = vmatpush1.bf16.msra.mxu0 0
        %470 = vmatprep.subr.bf16.mxu0 0
        %471 = vmatpush1.bf16.msra.mxu0 0
        %472 = vmatprep.subr.bf16.mxu0 0
        %473 = vmatpush1.bf16.msra.mxu0 0
        %474 = vmatprep.subr.bf16.mxu0 0
        %475 = vmatpush1.bf16.msra.mxu0 0
        %476 = vmatprep.subr.bf16.mxu0 0
        %477 = vmatpush1.bf16.msra.mxu0 %v458
        %478 = vmatprep.subr.bf16.mxu0 0
        %479 = vmatpush1.bf16.msra.mxu0 %v457
        %480 = vmatprep.subr.bf16.mxu0 0
        %481 = vmatpush2.bf16.msra.mxu0 0
        %482 = vmatprep.subr.bf16.mxu0 0
        %483 = vmatpush2.bf16.msra.mxu0 0
        %484 = vmatprep.subr.bf16.mxu0 0
        %485 = vmatpush2.bf16.msra.mxu0 0
        %486 = vmatprep.subr.bf16.mxu0 0
        %487 = vmatpush2.bf16.msra.mxu0 0
        %488 = vmatprep.subr.bf16.mxu0 0
        %489 = vmatpush2.bf16.msra.mxu0 0
        %490 = vmatprep.subr.bf16.mxu0 0
        %491 = vmatpush2.bf16.msra.mxu0 0
        %492 = vmatprep.subr.bf16.mxu0 0
        %493 = vmatpush2.bf16.msra.mxu0 0
        %494 = vmatprep.subr.bf16.mxu0 0
        %495 = vmatpush2.bf16.msra.mxu0 0
        %496 = vmatprep.mubr.bf16.mxu0 0
        %497 = vmatmul.mubr.bf16.gmra.mxu0 %v462
        %v498 = vpop.f32.mrf.mxu0
        %v499 = vadd.f32 0.0, %v498
        %v500 = vpop.f32.mrf.mxu0
        %v501 = vpop.f32.mrf.mxu0
        %v502 = vpop.f32.mrf.mxu0
        %503 = vdwg.mxu0
        %v504 = vadd.f32 %v441, %v499
        %s505 = scalar_lea.vmem %s191, 5
        %v506 = vld [vmem:[%s505] sm:$0x1]
        %s507 = scalar_lea.vmem %s1, 80
        %v508 = vld [vmem:[%s507] sm:$0xf]
        %v509 = vld [vmem:[%s507 + $0x4] sm:$0xf]
        %v510 = vld [vmem:[%s507 + $0x8] sm:$0xf]
        %v511 = vld [vmem:[%s507 + $0xc] sm:$0xf]
        %v516 = vunpack.c.l.b16 %v508
        %v517 = vunpack.c.l.b16 %v509
        %v518 = vunpack.c.l.b16 %v510
        %v519 = vunpack.c.l.b16 %v511
        %v520 = vpack.c.b16 %v517, %v516
        %v521 = vpack.c.b16 %v519, %v518
        %v525 = vsel %vm217, %v506, 0
        %527 = vmatprep.subr.bf16.mxu0 0
        %528 = vmatpush1.bf16.msra.mxu0 0
        %529 = vmatprep.subr.bf16.mxu0 0
        %530 = vmatpush1.bf16.msra.mxu0 0
        %531 = vmatprep.subr.bf16.mxu0 0
        %532 = vmatpush1.bf16.msra.mxu0 0
        %533 = vmatprep.subr.bf16.mxu0 0
        %534 = vmatpush1.bf16.msra.mxu0 0
        %535 = vmatprep.subr.bf16.mxu0 0
        %536 = vmatpush1.bf16.msra.mxu0 0
        %537 = vmatprep.subr.bf16.mxu0 0
        %538 = vmatpush1.bf16.msra.mxu0 0
        %539 = vmatprep.subr.bf16.mxu0 0
        %540 = vmatpush1.bf16.msra.mxu0 %v521
        %541 = vmatprep.subr.bf16.mxu0 0
        %542 = vmatpush1.bf16.msra.mxu0 %v520
        %543 = vmatprep.subr.bf16.mxu0 0
        %544 = vmatpush2.bf16.msra.mxu0 0
        %545 = vmatprep.subr.bf16.mxu0 0
        %546 = vmatpush2.bf16.msra.mxu0 0
        %547 = vmatprep.subr.bf16.mxu0 0
        %548 = vmatpush2.bf16.msra.mxu0 0
        %549 = vmatprep.subr.bf16.mxu0 0
        %550 = vmatpush2.bf16.msra.mxu0 0
        %551 = vmatprep.subr.bf16.mxu0 0
        %552 = vmatpush2.bf16.msra.mxu0 0
        %553 = vmatprep.subr.bf16.mxu0 0
        %554 = vmatpush2.bf16.msra.mxu0 0
        %555 = vmatprep.subr.bf16.mxu0 0
        %556 = vmatpush2.bf16.msra.mxu0 0
        %557 = vmatprep.subr.bf16.mxu0 0
        %558 = vmatpush2.bf16.msra.mxu0 0
        %559 = vmatprep.mubr.bf16.mxu0 0
        %560 = vmatmul.mubr.bf16.gmra.mxu0 %v525
        %v561 = vpop.f32.mrf.mxu0
        %v562 = vadd.f32 0.0, %v561
        %v563 = vpop.f32.mrf.mxu0
        %v564 = vpop.f32.mrf.mxu0
        %v565 = vpop.f32.mrf.mxu0
        %566 = vdwg.mxu0
        %v567 = vadd.f32 %v504, %v562
        %s568 = scalar_lea.vmem %s1, 96
        %v569 = vld [vmem:[%s568] sm:$0xf]
        %v570 = vld [vmem:[%s568 + $0x4] sm:$0xf]
        %v571 = vld [vmem:[%s568 + $0x8] sm:$0xf]
        %v572 = vld [vmem:[%s568 + $0xc] sm:$0xf]
        %v575 = vunpack.c.l.s4 1966171168
        %v576 = vunpack.c.0.s8 %v575
        %v577 = vlaneseq
        %v578 = vshrl.u32 %v577, 7
        %v579 = vsub.s32 %v576, %v578
        %v580 = vrot.slane %v193, %v579
        %v582 = vunpack.c.l.s4 1966171168
        %v583 = vunpack.c.0.s8 %v582
        %v584 = vlaneseq
        %v585 = vshrl.u32 %v584, 7
        %v586 = vsub.s32 %v583, %v585
        %v587 = vrot.slane %v580, %v586
        %v589 = vshrl.u32 %v587, 16
        %v595 = vunpack.c.l.b16 %v569
        %v596 = vunpack.c.l.b16 %v570
        %v597 = vunpack.c.l.b16 %v571
        %v598 = vunpack.c.l.b16 %v572
        %v599 = vpack.c.b16 %v596, %v595
        %v600 = vpack.c.b16 %v598, %v597
        %v604 = vsel %vm217, %v589, 0
        %606 = vmatprep.subr.bf16.mxu0 0
        %607 = vmatpush1.bf16.msra.mxu0 0
        %608 = vmatprep.subr.bf16.mxu0 0
        %609 = vmatpush1.bf16.msra.mxu0 0
        %610 = vmatprep.subr.bf16.mxu0 0
        %611 = vmatpush1.bf16.msra.mxu0 0
        %612 = vmatprep.subr.bf16.mxu0 0
        %613 = vmatpush1.bf16.msra.mxu0 0
        %614 = vmatprep.subr.bf16.mxu0 0
        %615 = vmatpush1.bf16.msra.mxu0 0
        %616 = vmatprep.subr.bf16.mxu0 0
        %617 = vmatpush1.bf16.msra.mxu0 0
        %618 = vmatprep.subr.bf16.mxu0 0
        %619 = vmatpush1.bf16.msra.mxu0 %v600
        %620 = vmatprep.subr.bf16.mxu0 0
        %621 = vmatpush1.bf16.msra.mxu0 %v599
        %622 = vmatprep.subr.bf16.mxu0 0
        %623 = vmatpush2.bf16.msra.mxu0 0
        %624 = vmatprep.subr.bf16.mxu0 0
        %625 = vmatpush2.bf16.msra.mxu0 0
        %626 = vmatprep.subr.bf16.mxu0 0
        %627 = vmatpush2.bf16.msra.mxu0 0
        %628 = vmatprep.subr.bf16.mxu0 0
        %629 = vmatpush2.bf16.msra.mxu0 0
        %630 = vmatprep.subr.bf16.mxu0 0
        %631 = vmatpush2.bf16.msra.mxu0 0
        %632 = vmatprep.subr.bf16.mxu0 0
        %633 = vmatpush2.bf16.msra.mxu0 0
        %634 = vmatprep.subr.bf16.mxu0 0
        %635 = vmatpush2.bf16.msra.mxu0 0
        %636 = vmatprep.subr.bf16.mxu0 0
        %637 = vmatpush2.bf16.msra.mxu0 0
        %638 = vmatprep.mubr.bf16.mxu0 0
        %639 = vmatmul.mubr.bf16.gmra.mxu0 %v604
        %v640 = vpop.f32.mrf.mxu0
        %v641 = vadd.f32 0.0, %v640
        %v642 = vpop.f32.mrf.mxu0
        %v643 = vpop.f32.mrf.mxu0
        %v644 = vpop.f32.mrf.mxu0
        %645 = vdwg.mxu0
        %v646 = vadd.f32 %v567, %v641
        %v647 = vld [vmem:[%s198] sm:$0x1]
        %s648 = scalar_lea.vmem %s1, 112
        %v649 = vld [vmem:[%s648] sm:$0xf]
        %v650 = vld [vmem:[%s648 + $0x4] sm:$0xf]
        %v651 = vld [vmem:[%s648 + $0x8] sm:$0xf]
        %v652 = vld [vmem:[%s648 + $0xc] sm:$0xf]
        %v655 = vunpack.c.l.s4 1966171168
        %v656 = vunpack.c.0.s8 %v655
        %v657 = vlaneseq
        %v658 = vshrl.u32 %v657, 7
        %v659 = vsub.s32 %v656, %v658
        %v660 = vrot.slane %v647, %v659
        %v662 = vunpack.c.l.s4 1966171168
        %v663 = vunpack.c.0.s8 %v662
        %v664 = vlaneseq
        %v665 = vshrl.u32 %v664, 7
        %v666 = vsub.s32 %v663, %v665
        %v667 = vrot.slane %v660, %v666
        %v669 = vshrl.u32 %v667, 16
        %v675 = vunpack.c.l.b16 %v649
        %v676 = vunpack.c.l.b16 %v650
        %v677 = vunpack.c.l.b16 %v651
        %v678 = vunpack.c.l.b16 %v652
        %v679 = vpack.c.b16 %v676, %v675
        %v680 = vpack.c.b16 %v678, %v677
        %v684 = vsel %vm217, %v669, 0
        %686 = vmatprep.subr.bf16.mxu0 0
        %687 = vmatpush1.bf16.msra.mxu0 0
        %688 = vmatprep.subr.bf16.mxu0 0
        %689 = vmatpush1.bf16.msra.mxu0 0
        %690 = vmatprep.subr.bf16.mxu0 0
        %691 = vmatpush1.bf16.msra.mxu0 0
        %692 = vmatprep.subr.bf16.mxu0 0
        %693 = vmatpush1.bf16.msra.mxu0 0
        %694 = vmatprep.subr.bf16.mxu0 0
        %695 = vmatpush1.bf16.msra.mxu0 0
        %696 = vmatprep.subr.bf16.mxu0 0
        %697 = vmatpush1.bf16.msra.mxu0 0
        %698 = vmatprep.subr.bf16.mxu0 0
        %699 = vmatpush1.bf16.msra.mxu0 %v680
        %700 = vmatprep.subr.bf16.mxu0 0
        %701 = vmatpush1.bf16.msra.mxu0 %v679
        %702 = vmatprep.subr.bf16.mxu0 0
        %703 = vmatpush2.bf16.msra.mxu0 0
        %704 = vmatprep.subr.bf16.mxu0 0
        %705 = vmatpush2.bf16.msra.mxu0 0
        %706 = vmatprep.subr.bf16.mxu0 0
        %707 = vmatpush2.bf16.msra.mxu0 0
        %708 = vmatprep.subr.bf16.mxu0 0
        %709 = vmatpush2.bf16.msra.mxu0 0
        %710 = vmatprep.subr.bf16.mxu0 0
        %711 = vmatpush2.bf16.msra.mxu0 0
        %712 = vmatprep.subr.bf16.mxu0 0
        %713 = vmatpush2.bf16.msra.mxu0 0
        %714 = vmatprep.subr.bf16.mxu0 0
        %715 = vmatpush2.bf16.msra.mxu0 0
        %716 = vmatprep.subr.bf16.mxu0 0
        %717 = vmatpush2.bf16.msra.mxu0 0
        %718 = vmatprep.mubr.bf16.mxu0 0
        %719 = vmatmul.mubr.bf16.gmra.mxu0 %v684
        %v720 = vpop.f32.mrf.mxu0
        %v721 = vadd.f32 0.0, %v720
        %v722 = vpop.f32.mrf.mxu0
        %v723 = vpop.f32.mrf.mxu0
        %v724 = vpop.f32.mrf.mxu0
        %725 = vdwg.mxu0
        %v726 = vadd.f32 %v646, %v721
        %v727 = vld [vmem:[%s316] sm:$0x1]
        %s728 = scalar_lea.vmem %s1, 128
        %v729 = vld [vmem:[%s728] sm:$0xf]
        %v730 = vld [vmem:[%s728 + $0x4] sm:$0xf]
        %v731 = vld [vmem:[%s728 + $0x8] sm:$0xf]
        %v732 = vld [vmem:[%s728 + $0xc] sm:$0xf]
        %v735 = vunpack.c.l.s4 1966171168
        %v736 = vunpack.c.0.s8 %v735
        %v737 = vlaneseq
        %v738 = vshrl.u32 %v737, 7
        %v739 = vsub.s32 %v736, %v738
        %v740 = vrot.slane %v727, %v739
        %v742 = vunpack.c.l.s4 1966171168
        %v743 = vunpack.c.0.s8 %v742
        %v744 = vlaneseq
        %v745 = vshrl.u32 %v744, 7
        %v746 = vsub.s32 %v743, %v745
        %v747 = vrot.slane %v740, %v746
        %v749 = vshrl.u32 %v747, 16
        %v755 = vunpack.c.l.b16 %v729
        %v756 = vunpack.c.l.b16 %v730
        %v757 = vunpack.c.l.b16 %v731
        %v758 = vunpack.c.l.b16 %v732
        %v759 = vpack.c.b16 %v756, %v755
        %v760 = vpack.c.b16 %v758, %v757
        %v764 = vsel %vm217, %v749, 0
        %766 = vmatprep.subr.bf16.mxu0 0
        %767 = vmatpush1.bf16.msra.mxu0 0
        %768 = vmatprep.subr.bf16.mxu0 0
        %769 = vmatpush1.bf16.msra.mxu0 0
        %770 = vmatprep.subr.bf16.mxu0 0
        %771 = vmatpush1.bf16.msra.mxu0 0
        %772 = vmatprep.subr.bf16.mxu0 0
        %773 = vmatpush1.bf16.msra.mxu0 0
        %774 = vmatprep.subr.bf16.mxu0 0
        %775 = vmatpush1.bf16.msra.mxu0 0
        %776 = vmatprep.subr.bf16.mxu0 0
        %777 = vmatpush1.bf16.msra.mxu0 0
        %778 = vmatprep.subr.bf16.mxu0 0
        %779 = vmatpush1.bf16.msra.mxu0 %v760
        %780 = vmatprep.subr.bf16.mxu0 0
        %781 = vmatpush1.bf16.msra.mxu0 %v759
        %782 = vmatprep.subr.bf16.mxu0 0
        %783 = vmatpush2.bf16.msra.mxu0 0
        %784 = vmatprep.subr.bf16.mxu0 0
        %785 = vmatpush2.bf16.msra.mxu0 0
        %786 = vmatprep.subr.bf16.mxu0 0
        %787 = vmatpush2.bf16.msra.mxu0 0
        %788 = vmatprep.subr.bf16.mxu0 0
        %789 = vmatpush2.bf16.msra.mxu0 0
        %790 = vmatprep.subr.bf16.mxu0 0
        %791 = vmatpush2.bf16.msra.mxu0 0
        %792 = vmatprep.subr.bf16.mxu0 0
        %793 = vmatpush2.bf16.msra.mxu0 0
        %794 = vmatprep.subr.bf16.mxu0 0
        %795 = vmatpush2.bf16.msra.mxu0 0
        %796 = vmatprep.subr.bf16.mxu0 0
        %797 = vmatpush2.bf16.msra.mxu0 0
        %798 = vmatprep.mubr.bf16.mxu0 0
        %799 = vmatmul.mubr.bf16.gmra.mxu0 %v764
        %v800 = vpop.f32.mrf.mxu0
        %v801 = vadd.f32 0.0, %v800
        %v802 = vpop.f32.mrf.mxu0
        %v803 = vpop.f32.mrf.mxu0
        %v804 = vpop.f32.mrf.mxu0
        %805 = vdwg.mxu0
        %v806 = vadd.f32 %v726, %v801
        %v807 = vld [vmem:[%s2] sm:$0x1]
        %v808 = vmul.f32 %v806, %v807
        %v809 = vld [vmem:[%s3] sm:$0x1]
        %v810 = vadd.f32 %v808, %v809
        %v811 = vmul.f32 %v810, 0.01
        %v812 = vmax.f32 %v810, %v811
        %vm813 = vcmask 516096
        %814 = vst.msk [vmem:[%s187] sm:$0x1] %vm813, %v812
        %s815 = sand.u32 %s115, 1
        %s816 = scalar_lea.sflag [#allocation3], %s815
        %s817 = sand.u32 %s115, 1
        %s818 = scalar_lea.vmem [#allocation2], %s817
        // Predicated region
        $region37: #{forward.7} parent=35 // pred_check
          %p819 = pneg %p125
        $region38: #{forward.7} parent=35 // pred_check_branch
          %821 = sbr.rel (%p819) target = $region40
        $region39: #{forward.7} parent=35 // pred_region
          %s823 = ssub.s32 16, 16
          %824 = vsyncadd %s816, %s823
          %s825 = smul.addr %s18, 16
          %s826 = scalar_lea.hbm %s4, %s825
          %s828 = sshll.u32 %s818, 4
          %s829 = int_to_ptr.vmem [resolvable:$true] %s828
          %831 = dma.vmem_to_hbm [thread:$0]  %s829, 16, %s826, %s816
        $region40: #{forward.7} parent=35 // pred_fallthru
          _
      $region36: #{forward.7} parent=5 // pred_fallthru
        _
      %p832 = scmp.le.s32.totalorder 2, %s13
      // Predicated region
      $region41: #{forward.7} parent=5 // pred_check
        %p833 = pneg %p832
      $region42: #{forward.7} parent=5 // pred_check_branch
        %835 = sbr.rel (%p833) target = $region44
      $region43: #{forward.7} parent=5 // pred_region
        %s836 = ssub.s32 %s13, 2
        // Predicated region
        $region45: #{forward.7} parent=43 // pred_check
          %p837 = pneg %p131
        $region46: #{forward.7} parent=43 // pred_check_branch
          %839 = sbr.rel (%p837) target = $region48
        $region47: #{forward.7} parent=43 // pred_region
          %s840 = sand.u32 %s116, 1
          %s841 = scalar_lea.sflag [#allocation3], %s840
          %s842 = sand.u32 %s116, 1
          %s843 = scalar_lea.vmem [#allocation2], %s842
          %844 = dma.done %s841, 16
        $region48: #{forward.7} parent=43 // pred_fallthru
          _
      $region44: #{forward.7} parent=5 // pred_fallthru
        _
    $region6: #{forward.7} parent=1 // loop_footer
      %s17 = sadd.s32 1, %s13
    $region7: #{forward.7} parent=1 // loop_footer_branch
      %12 = sbr.rel target = $region3
    $region8: #{forward.7} parent=1 // loop_exit
      _
    %845 = vsyncpa [#allocation3], 1
    %s846 = scalar_lea.sflag [#allocation3], 1
    %847 = vsyncpa %s846, 1

</llo_original>
